<compile_context>
chip_gen: v6e
topology: v6e:2x2x1
jax: 0.10.0
libtpu: 0.0.40
codegen_flags: <defaults>
</compile_context>

<pallas_src>
import jax
import jax.numpy as jnp
from jax.experimental import pallas as pl
from jax.experimental.pallas import tpu as pltpu

NUM_CLASSES = 9
BN_EPS = 1e-5
CONV3_CHUNK = 256   # conv3 output channels processed per MXU call


# ----------------------------------------------------------------------------
# Pallas kernel: one grid step == one batch tile of TB point clouds.
# ----------------------------------------------------------------------------
def pointnet_kernel(x_ref, w1_ref, b1_ref, w2_ref, b2_ref, w3_ref, b3_ref,
                    wo_pf_ref, wo_g_ref, bo_ref, out_ref):
    TB, N, _ = x_ref.shape
    M = TB * N
    mm_dtype = w2_ref.dtype                      # f32, or bf16 if use_bf16

    x = x_ref[...].reshape(M, 3)                 # (M, 3) — all clouds stacked

    # conv1 + bn1 + relu (BN folded into w1/b1).  K=3 contraction: three VPU
    # rank-1 FMAs instead of wasting the 128/256-deep MXU contraction dim.
    w1 = w1_ref[...]                             # (3, 64)
    h1 = (x[:, 0:1] * w1[0:1, :]
          + x[:, 1:2] * w1[1:2, :]
          + x[:, 2:3] * w1[2:3, :]
          + b1_ref[...])
    h1 = jnp.maximum(h1, 0.0)                    # (M, 64) f32
    h1_mm = h1.astype(mm_dtype)

    # conv2 + bn2 + relu
    h2 = jnp.dot(h1_mm, w2_ref[...],
                 preferred_element_type=jnp.float32) + b2_ref[...]
    h2 = jnp.maximum(h2, 0.0)                    # (M, 128) f32
    h2_mm = h2.astype(mm_dtype)

    # conv3 + bn3 + relu + global max pool + (g @ wo_g), chunked over conv3's
    # 1024 output channels so the (M, 1024) activation never exists.  Bias and
    # ReLU are applied after the max (exact — max is monotone, bias constant
    # along the reduced points axis).
    n_out3 = w3_ref.shape[1]
    gconst = jnp.zeros((TB, NUM_CLASSES), jnp.float32)
    for c0 in range(0, n_out3, CONV3_CHUNK):
        s = jnp.dot(h2_mm, w3_ref[:, c0:c0 + CONV3_CHUNK],
                    preferred_element_type=jnp.float32)          # (M, CK)
        m = jnp.max(s.reshape(TB, N, CONV3_CHUNK), axis=1)       # (TB, CK)
        g_c = jnp.maximum(m + b3_ref[:, c0:c0 + CONV3_CHUNK], 0.0)
        gconst = gconst + jnp.dot(g_c.astype(mm_dtype),
                                  wo_g_ref[c0:c0 + CONV3_CHUNK, :],
                                  preferred_element_type=jnp.float32)
    gconst = gconst + bo_ref[...]                # (TB, 9) per-cloud constant

    # out_conv over cat([point_features, global_repeated]) ==
    #   h1 @ Wout[:, :64].T  +  (g @ Wout[:, 64:].T + b_out)  broadcast over N.
    out_pf = jnp.dot(h1_mm, wo_pf_ref[...],
                     preferred_element_type=jnp.float32)         # (M, 9)
    out = out_pf.reshape(TB, N, NUM_CLASSES) + gconst[:, None, :]
    out_ref[...] = out.astype(out_ref.dtype)


# ----------------------------------------------------------------------------
# Wrapper: grid over batch tiles; weights passed whole (small, ~0.6 MiB).
# ----------------------------------------------------------------------------
def _pick_batch_tile(B, N):
    # Smallest divisor of B whose row count TB*N fills the 256-wide MXU M dim
    # (v6e/v7x); for larger B this also keeps >= 2 grid steps so the two
    # TensorCores on v7x (and megacore) still get distinct "parallel" steps.
    for tb in range(1, B + 1):
        if B % tb == 0 and tb * N >= 256:
            return tb
    return B


def pointnet_forward(x_ncw, kernel_params, *, batch_tile=None, use_bf16=False):
    (w1, b1, w2, b2, w3, b3, wo_pf, wo_g, bo) = kernel_params
    B, c_in, N = x_ncw.shape
    x = jnp.transpose(x_ncw, (0, 2, 1))                          # (B, N, 3)

    if use_bf16:
        # bf16 matmul inputs, f32 accumulation (2x MXU throughput and half the
        # weight bytes on v6e/v7x).  w1 + all biases stay f32 (VPU path).
        w2, w3, wo_pf, wo_g = (w2.astype(jnp.bfloat16),
                               w3.astype(jnp.bfloat16),
                               wo_pf.astype(jnp.bfloat16),
                               wo_g.astype(jnp.bfloat16))

    TB = batch_tile if batch_tile is not None else _pick_batch_tile(B, N)
    assert B % TB == 0, (B, TB)
    grid = (B // TB,)

    def full_spec(arr):
        nd = arr.ndim
        return pl.BlockSpec(arr.shape, lambda b, _nd=nd: (0,) * _nd)

    # TODO(synk): at realistic N (2048-4096) consider pipeline_mode=
    #             pl.Buffered(1) on the (grid-invariant) weight specs and an
    #             explicit vmem_limit_bytes; unnecessary at these sizes.
    in_specs = [
        pl.BlockSpec((TB, N, c_in), lambda b: (b, 0, 0)),
        full_spec(w1), full_spec(b1),
        full_spec(w2), full_spec(b2),
        full_spec(w3), full_spec(b3),
        full_spec(wo_pf), full_spec(wo_g), full_spec(bo),
    ]
    out_specs = pl.BlockSpec((TB, N, NUM_CLASSES), lambda b: (b, 0, 0))

    return pl.pallas_call(
        pointnet_kernel,
        out_shape=jax.ShapeDtypeStruct((B, N, NUM_CLASSES), jnp.float32),
        grid=grid,
        in_specs=in_specs,
        out_specs=out_specs,
        compiler_params=pltpu.CompilerParams(
            dimension_semantics=("parallel",)),
    )(x, w1, b1, w2, b2, w3, b3, wo_pf, wo_g, bo)


# ----------------------------------------------------------------------------
# Deterministic parameter init (shapes from PointNet.__init__) + BN folding.
# ----------------------------------------------------------------------------
def init_raw_params(key):
    ks = iter(jax.random.split(key, 32))

    def conv(in_c, out_c):
        bound = 1.0 / (in_c ** 0.5)
        w = jax.random.uniform(next(ks), (out_c, in_c), jnp.float32, -bound, bound)
        b = jax.random.uniform(next(ks), (out_c,), jnp.float32, -bound, bound)
        return w, b

    def bn(c):
        gamma = jax.random.uniform(next(ks), (c,), jnp.float32, 0.5, 1.5)
        beta = jax.random.uniform(next(ks), (c,), jnp.float32, -0.5, 0.5)
        mean = jax.random.uniform(next(ks), (c,), jnp.float32, -0.5, 0.5)
        var = jax.random.uniform(next(ks), (c,), jnp.float32, 0.5, 1.5)
        return gamma, beta, mean, var

    return {
        "conv1": conv(3, 64),
        "conv2": conv(64, 128),
        "conv3": conv(128, 1024),
        "out_conv": conv(1088, NUM_CLASSES),
        "bn1": bn(64),
        "bn2": bn(128),
        "bn3": bn(1024),
    }


def fold_params_for_kernel(raw):
    """Fold eval-mode BN into conv weights; transpose to (C_in, C_out)."""
    def fold(conv_wb, bn_p):
        w, b = conv_wb                                   # w: (Cout, Cin)
        gamma, beta, mean, var = bn_p
        s = gamma / jnp.sqrt(var + BN_EPS)
        w_f = w * s[:, None]
        b_f = s * (b - mean) + beta
        return w_f.T, b_f[None, :]                       # (Cin, Cout), (1, Cout)

    w1, b1 = fold(raw["conv1"], raw["bn1"])
    w2, b2 = fold(raw["conv2"], raw["bn2"])
    w3, b3 = fold(raw["conv3"], raw["bn3"])

    wo, bo = raw["out_conv"]                             # (9, 1088), (9,)
    wo_pf = wo[:, :64].T                                 # (64, 9)   point-feature part
    wo_g = wo[:, 64:].T                                  # (1024, 9) global-feature part
    return (w1, b1, w2, b2, w3, b3, wo_pf, wo_g, bo[None, :])


# ----------------------------------------------------------------------------
# Pure-JAX reference (mirrors the PyTorch forward, eval-mode BN).
# ----------------------------------------------------------------------------
def ref_forward(x, raw):
    def conv1d(h, w, b):                                 # h: (B, Cin, N)
        return jnp.einsum("oc,bcn->bon", w, h) + b[None, :, None]

    def bn_eval(h, gamma, beta, mean, var):
        s = gamma / jnp.sqrt(var + BN_EPS)
        return s[None, :, None] * (h - mean[None, :, None]) + beta[None, :, None]

    h = jax.nn.relu(bn_eval(conv1d(x, *raw["conv1"]), *raw["bn1"]))
    point_features = h
    h = jax.nn.relu(bn_eval(conv1d(h, *raw["conv2"]), *raw["bn2"]))
    h = jax.nn.relu(bn_eval(conv1d(h, *raw["conv3"]), *raw["bn3"]))
    g = jnp.max(h, axis=2, keepdims=True)
    g_rep = jnp.broadcast_to(g, h.shape)
    comb = jnp.concatenate([point_features, g_rep], axis=1)
    out = conv1d(comb, *raw["out_conv"])
    return jnp.transpose(out, (0, 2, 1))                 # (B, N, num_classes)


if __name__ == "__main__":
    key = jax.random.PRNGKey(0)
    k_params, k_x = jax.random.split(key)

    B, N = 2, 128                                        # small: 2 clouds x 128 points
    x = jax.random.normal(k_x, (B, 3, N), jnp.float32)   # NCW, like PyTorch Conv1d input

    raw = init_raw_params(k_params)
    kernel_params = fold_params_for_kernel(raw)

    ref = jax.block_until_ready(ref_forward(x, raw))

    # f32 path (exact vs reference).
    out = jax.block_until_ready(pointnet_forward(x, kernel_params))
    assert out.shape == (B, N, NUM_CLASSES), out.shape
    assert jnp.allclose(out, ref, rtol=1e-4, atol=1e-4), \
        float(jnp.max(jnp.abs(out - ref)))

    # Optional bf16-matmul path (v6e/v7x throughput); looser tolerance.
    out_bf16 = jax.block_until_ready(
        pointnet_forward(x, kernel_params, use_bf16=True))
    assert out_bf16.shape == (B, N, NUM_CLASSES), out_bf16.shape
    assert jnp.allclose(out_bf16, ref, rtol=5e-2, atol=5e-2), \
        float(jnp.max(jnp.abs(out_bf16 - ref)))

    print("KERNEL_OK")
</pallas_src>

<mosaic_0001>
module attributes {stable_mosaic.version = 11 : i64} {
  func.func @pointnet_kernel(%arg0: i32, %arg1: memref<2x128x3xf32, #tpu.memory_space<vmem>>, %arg2: memref<3x64xf32, #tpu.memory_space<vmem>>, %arg3: memref<1x64xf32, #tpu.memory_space<vmem>>, %arg4: memref<64x128xf32, #tpu.memory_space<vmem>>, %arg5: memref<1x128xf32, #tpu.memory_space<vmem>>, %arg6: memref<128x1024xf32, #tpu.memory_space<vmem>>, %arg7: memref<1x1024xf32, #tpu.memory_space<vmem>>, %arg8: memref<64x9xf32, #tpu.memory_space<vmem>>, %arg9: memref<1024x9xf32, #tpu.memory_space<vmem>>, %arg10: memref<1x9xf32, #tpu.memory_space<vmem>>, %arg11: memref<2x128x9xf32, #tpu.memory_space<vmem>>) attributes {dimension_semantics = [#tpu.dimension_semantics<parallel>], iteration_bounds = array<i64: 1>, scalar_prefetch = 0 : i64, scratch_operands = 0 : i64, tpu.core_type = #tpu.core_type<tc>, window_params = [{transform_indices = @transform_0, window_bounds = array<i64: 2, 128, 3>}, {pipeline_mode = #tpu.pipeline_mode<synchronous>, transform_indices = @transform_1, window_bounds = array<i64: 3, 64>}, {pipeline_mode = #tpu.pipeline_mode<synchronous>, transform_indices = @transform_2, window_bounds = array<i64: 1, 64>}, {pipeline_mode = #tpu.pipeline_mode<synchronous>, transform_indices = @transform_3, window_bounds = array<i64: 64, 128>}, {pipeline_mode = #tpu.pipeline_mode<synchronous>, transform_indices = @transform_4, window_bounds = array<i64: 1, 128>}, {pipeline_mode = #tpu.pipeline_mode<synchronous>, transform_indices = @transform_5, window_bounds = array<i64: 128, 1024>}, {pipeline_mode = #tpu.pipeline_mode<synchronous>, transform_indices = @transform_6, window_bounds = array<i64: 1, 1024>}, {pipeline_mode = #tpu.pipeline_mode<synchronous>, transform_indices = @transform_7, window_bounds = array<i64: 64, 9>}, {pipeline_mode = #tpu.pipeline_mode<synchronous>, transform_indices = @transform_8, window_bounds = array<i64: 1024, 9>}, {pipeline_mode = #tpu.pipeline_mode<synchronous>, transform_indices = @transform_9, window_bounds = array<i64: 1, 9>}, {transform_indices = @transform_10, window_bounds = array<i64: 2, 128, 9>}]} {
    %c0 = arith.constant 0 : index
    %c0_0 = arith.constant 0 : index
    %c0_1 = arith.constant 0 : index
    %0 = vector.load %arg1[%c0, %c0_0, %c0_1] : memref<2x128x3xf32, #tpu.memory_space<vmem>>, vector<2x128x3xf32>
    %1 = vector.shape_cast %0 : vector<2x128x3xf32> to vector<256x3xf32>
    %c0_2 = arith.constant 0 : index
    %c0_3 = arith.constant 0 : index
    %2 = vector.load %arg2[%c0_2, %c0_3] : memref<3x64xf32, #tpu.memory_space<vmem>>, vector<3x64xf32>
    %3 = vector.extract_strided_slice %1 {offsets = [0, 0], sizes = [256, 1], strides = [1, 1]} : vector<256x3xf32> to vector<256x1xf32>
    %4 = vector.extract_strided_slice %2 {offsets = [0, 0], sizes = [1, 64], strides = [1, 1]} : vector<3x64xf32> to vector<1x64xf32>
    %5 = vector.broadcast %3 : vector<256x1xf32> to vector<256x64xf32>
    %6 = vector.broadcast %4 : vector<1x64xf32> to vector<256x64xf32>
    %7 = arith.mulf %5, %6 : vector<256x64xf32>
    %8 = vector.extract_strided_slice %1 {offsets = [0, 1], sizes = [256, 1], strides = [1, 1]} : vector<256x3xf32> to vector<256x1xf32>
    %9 = vector.extract_strided_slice %2 {offsets = [1, 0], sizes = [1, 64], strides = [1, 1]} : vector<3x64xf32> to vector<1x64xf32>
    %10 = vector.broadcast %8 : vector<256x1xf32> to vector<256x64xf32>
    %11 = vector.broadcast %9 : vector<1x64xf32> to vector<256x64xf32>
    %12 = arith.mulf %10, %11 : vector<256x64xf32>
    %13 = arith.addf %7, %12 : vector<256x64xf32>
    %14 = vector.extract_strided_slice %1 {offsets = [0, 2], sizes = [256, 1], strides = [1, 1]} : vector<256x3xf32> to vector<256x1xf32>
    %15 = vector.extract_strided_slice %2 {offsets = [2, 0], sizes = [1, 64], strides = [1, 1]} : vector<3x64xf32> to vector<1x64xf32>
    %16 = vector.broadcast %14 : vector<256x1xf32> to vector<256x64xf32>
    %17 = vector.broadcast %15 : vector<1x64xf32> to vector<256x64xf32>
    %18 = arith.mulf %16, %17 : vector<256x64xf32>
    %19 = arith.addf %13, %18 : vector<256x64xf32>
    %c0_4 = arith.constant 0 : index
    %c0_5 = arith.constant 0 : index
    %20 = vector.load %arg3[%c0_4, %c0_5] : memref<1x64xf32, #tpu.memory_space<vmem>>, vector<1x64xf32>
    %21 = vector.broadcast %20 : vector<1x64xf32> to vector<256x64xf32>
    %22 = arith.addf %19, %21 : vector<256x64xf32>
    %cst = arith.constant 0.000000e+00 : f32
    %23 = vector.broadcast %cst : f32 to vector<256x64xf32>
    %24 = arith.maximumf %22, %23 : vector<256x64xf32>
    %c0_6 = arith.constant 0 : index
    %c0_7 = arith.constant 0 : index
    %25 = vector.load %arg4[%c0_6, %c0_7] : memref<64x128xf32, #tpu.memory_space<vmem>>, vector<64x128xf32>
    %cst_8 = arith.constant dense<0.000000e+00> : vector<256x128xf32>
    %26 = tpu.matmul %24, %25, %cst_8 {dimension_numbers = #tpu.dot_dimension_numbers<[1], [0], [0], [1], [0, 0, 1, 1], [], []>} : vector<256x64xf32>, vector<64x128xf32>, vector<256x128xf32> -> vector<256x128xf32>
    %c0_9 = arith.constant 0 : index
    %c0_10 = arith.constant 0 : index
    %27 = vector.load %arg5[%c0_9, %c0_10] : memref<1x128xf32, #tpu.memory_space<vmem>>, vector<1x128xf32>
    %28 = vector.broadcast %27 : vector<1x128xf32> to vector<256x128xf32>
    %29 = arith.addf %26, %28 : vector<256x128xf32>
    %cst_11 = arith.constant 0.000000e+00 : f32
    %30 = vector.broadcast %cst_11 : f32 to vector<256x128xf32>
    %31 = arith.maximumf %29, %30 : vector<256x128xf32>
    %cst_12 = arith.constant 0.000000e+00 : f32
    %32 = vector.broadcast %cst_12 : f32 to vector<2x9xf32>
    %c0_13 = arith.constant 0 : index
    %c0_14 = arith.constant 0 : index
    %33 = vector.load %arg6[%c0_13, %c0_14] : memref<128x1024xf32, #tpu.memory_space<vmem>>, vector<128x256xf32>
    %cst_15 = arith.constant dense<0.000000e+00> : vector<256x256xf32>
    %34 = tpu.matmul %31, %33, %cst_15 {dimension_numbers = #tpu.dot_dimension_numbers<[1], [0], [0], [1], [0, 0, 1, 1], [], []>} : vector<256x128xf32>, vector<128x256xf32>, vector<256x256xf32> -> vector<256x256xf32>
    %35 = vector.shape_cast %34 : vector<256x256xf32> to vector<2x128x256xf32>
    %cst_16 = arith.constant dense<0xFF800000> : vector<2x256xf32>
    %36 = vector.multi_reduction <maximumf>, %35, %cst_16 [1] : vector<2x128x256xf32> to vector<2x256xf32>
    %c0_17 = arith.constant 0 : index
    %c0_18 = arith.constant 0 : index
    %37 = vector.load %arg7[%c0_17, %c0_18] : memref<1x1024xf32, #tpu.memory_space<vmem>>, vector<1x256xf32>
    %38 = vector.broadcast %37 : vector<1x256xf32> to vector<2x256xf32>
    %39 = arith.addf %36, %38 : vector<2x256xf32>
    %cst_19 = arith.constant 0.000000e+00 : f32
    %40 = vector.broadcast %cst_19 : f32 to vector<2x256xf32>
    %41 = arith.maximumf %39, %40 : vector<2x256xf32>
    %c0_20 = arith.constant 0 : index
    %c0_21 = arith.constant 0 : index
    %42 = vector.load %arg9[%c0_20, %c0_21] : memref<1024x9xf32, #tpu.memory_space<vmem>>, vector<256x9xf32>
    %cst_22 = arith.constant dense<0.000000e+00> : vector<2x9xf32>
    %43 = tpu.matmul %41, %42, %cst_22 {dimension_numbers = #tpu.dot_dimension_numbers<[1], [0], [0], [1], [0, 0, 1, 1], [], []>} : vector<2x256xf32>, vector<256x9xf32>, vector<2x9xf32> -> vector<2x9xf32>
    %44 = arith.addf %32, %43 : vector<2x9xf32>
    %c0_23 = arith.constant 0 : index
    %c256 = arith.constant 256 : index
    %45 = vector.load %arg6[%c0_23, %c256] : memref<128x1024xf32, #tpu.memory_space<vmem>>, vector<128x256xf32>
    %cst_24 = arith.constant dense<0.000000e+00> : vector<256x256xf32>
    %46 = tpu.matmul %31, %45, %cst_24 {dimension_numbers = #tpu.dot_dimension_numbers<[1], [0], [0], [1], [0, 0, 1, 1], [], []>} : vector<256x128xf32>, vector<128x256xf32>, vector<256x256xf32> -> vector<256x256xf32>
    %47 = vector.shape_cast %46 : vector<256x256xf32> to vector<2x128x256xf32>
    %cst_25 = arith.constant dense<0xFF800000> : vector<2x256xf32>
    %48 = vector.multi_reduction <maximumf>, %47, %cst_25 [1] : vector<2x128x256xf32> to vector<2x256xf32>
    %c0_26 = arith.constant 0 : index
    %c256_27 = arith.constant 256 : index
    %49 = vector.load %arg7[%c0_26, %c256_27] : memref<1x1024xf32, #tpu.memory_space<vmem>>, vector<1x256xf32>
    %50 = vector.broadcast %49 : vector<1x256xf32> to vector<2x256xf32>
    %51 = arith.addf %48, %50 : vector<2x256xf32>
    %cst_28 = arith.constant 0.000000e+00 : f32
    %52 = vector.broadcast %cst_28 : f32 to vector<2x256xf32>
    %53 = arith.maximumf %51, %52 : vector<2x256xf32>
    %c256_29 = arith.constant 256 : index
    %c0_30 = arith.constant 0 : index
    %54 = vector.load %arg9[%c256_29, %c0_30] : memref<1024x9xf32, #tpu.memory_space<vmem>>, vector<256x9xf32>
    %cst_31 = arith.constant dense<0.000000e+00> : vector<2x9xf32>
    %55 = tpu.matmul %53, %54, %cst_31 {dimension_numbers = #tpu.dot_dimension_numbers<[1], [0], [0], [1], [0, 0, 1, 1], [], []>} : vector<2x256xf32>, vector<256x9xf32>, vector<2x9xf32> -> vector<2x9xf32>
    %56 = arith.addf %44, %55 : vector<2x9xf32>
    %c0_32 = arith.constant 0 : index
    %c512 = arith.constant 512 : index
    %57 = vector.load %arg6[%c0_32, %c512] : memref<128x1024xf32, #tpu.memory_space<vmem>>, vector<128x256xf32>
    %cst_33 = arith.constant dense<0.000000e+00> : vector<256x256xf32>
    %58 = tpu.matmul %31, %57, %cst_33 {dimension_numbers = #tpu.dot_dimension_numbers<[1], [0], [0], [1], [0, 0, 1, 1], [], []>} : vector<256x128xf32>, vector<128x256xf32>, vector<256x256xf32> -> vector<256x256xf32>
    %59 = vector.shape_cast %58 : vector<256x256xf32> to vector<2x128x256xf32>
    %cst_34 = arith.constant dense<0xFF800000> : vector<2x256xf32>
    %60 = vector.multi_reduction <maximumf>, %59, %cst_34 [1] : vector<2x128x256xf32> to vector<2x256xf32>
    %c0_35 = arith.constant 0 : index
    %c512_36 = arith.constant 512 : index
    %61 = vector.load %arg7[%c0_35, %c512_36] : memref<1x1024xf32, #tpu.memory_space<vmem>>, vector<1x256xf32>
    %62 = vector.broadcast %61 : vector<1x256xf32> to vector<2x256xf32>
    %63 = arith.addf %60, %62 : vector<2x256xf32>
    %cst_37 = arith.constant 0.000000e+00 : f32
    %64 = vector.broadcast %cst_37 : f32 to vector<2x256xf32>
    %65 = arith.maximumf %63, %64 : vector<2x256xf32>
    %c512_38 = arith.constant 512 : index
    %c0_39 = arith.constant 0 : index
    %66 = vector.load %arg9[%c512_38, %c0_39] : memref<1024x9xf32, #tpu.memory_space<vmem>>, vector<256x9xf32>
    %cst_40 = arith.constant dense<0.000000e+00> : vector<2x9xf32>
    %67 = tpu.matmul %65, %66, %cst_40 {dimension_numbers = #tpu.dot_dimension_numbers<[1], [0], [0], [1], [0, 0, 1, 1], [], []>} : vector<2x256xf32>, vector<256x9xf32>, vector<2x9xf32> -> vector<2x9xf32>
    %68 = arith.addf %56, %67 : vector<2x9xf32>
    %c0_41 = arith.constant 0 : index
    %c768 = arith.constant 768 : index
    %69 = vector.load %arg6[%c0_41, %c768] : memref<128x1024xf32, #tpu.memory_space<vmem>>, vector<128x256xf32>
    %cst_42 = arith.constant dense<0.000000e+00> : vector<256x256xf32>
    %70 = tpu.matmul %31, %69, %cst_42 {dimension_numbers = #tpu.dot_dimension_numbers<[1], [0], [0], [1], [0, 0, 1, 1], [], []>} : vector<256x128xf32>, vector<128x256xf32>, vector<256x256xf32> -> vector<256x256xf32>
    %71 = vector.shape_cast %70 : vector<256x256xf32> to vector<2x128x256xf32>
    %cst_43 = arith.constant dense<0xFF800000> : vector<2x256xf32>
    %72 = vector.multi_reduction <maximumf>, %71, %cst_43 [1] : vector<2x128x256xf32> to vector<2x256xf32>
    %c0_44 = arith.constant 0 : index
    %c768_45 = arith.constant 768 : index
    %73 = vector.load %arg7[%c0_44, %c768_45] : memref<1x1024xf32, #tpu.memory_space<vmem>>, vector<1x256xf32>
    %74 = vector.broadcast %73 : vector<1x256xf32> to vector<2x256xf32>
    %75 = arith.addf %72, %74 : vector<2x256xf32>
    %cst_46 = arith.constant 0.000000e+00 : f32
    %76 = vector.broadcast %cst_46 : f32 to vector<2x256xf32>
    %77 = arith.maximumf %75, %76 : vector<2x256xf32>
    %c768_47 = arith.constant 768 : index
    %c0_48 = arith.constant 0 : index
    %78 = vector.load %arg9[%c768_47, %c0_48] : memref<1024x9xf32, #tpu.memory_space<vmem>>, vector<256x9xf32>
    %cst_49 = arith.constant dense<0.000000e+00> : vector<2x9xf32>
    %79 = tpu.matmul %77, %78, %cst_49 {dimension_numbers = #tpu.dot_dimension_numbers<[1], [0], [0], [1], [0, 0, 1, 1], [], []>} : vector<2x256xf32>, vector<256x9xf32>, vector<2x9xf32> -> vector<2x9xf32>
    %80 = arith.addf %68, %79 : vector<2x9xf32>
    %c0_50 = arith.constant 0 : index
    %c0_51 = arith.constant 0 : index
    %81 = vector.load %arg10[%c0_50, %c0_51] : memref<1x9xf32, #tpu.memory_space<vmem>>, vector<1x9xf32>
    %82 = vector.broadcast %81 : vector<1x9xf32> to vector<2x9xf32>
    %83 = arith.addf %80, %82 : vector<2x9xf32>
    %c0_52 = arith.constant 0 : index
    %c0_53 = arith.constant 0 : index
    %84 = vector.load %arg8[%c0_52, %c0_53] : memref<64x9xf32, #tpu.memory_space<vmem>>, vector<64x9xf32>
    %cst_54 = arith.constant dense<0.000000e+00> : vector<256x9xf32>
    %85 = tpu.matmul %24, %84, %cst_54 {dimension_numbers = #tpu.dot_dimension_numbers<[1], [0], [0], [1], [0, 0, 1, 1], [], []>} : vector<256x64xf32>, vector<64x9xf32>, vector<256x9xf32> -> vector<256x9xf32>
    %86 = vector.shape_cast %85 : vector<256x9xf32> to vector<2x128x9xf32>
    %87 = vector.shape_cast %83 : vector<2x9xf32> to vector<2x1x9xf32>
    %88 = vector.broadcast %87 : vector<2x1x9xf32> to vector<2x128x9xf32>
    %89 = arith.addf %86, %88 : vector<2x128x9xf32>
    %c0_55 = arith.constant 0 : index
    %c0_56 = arith.constant 0 : index
    %c0_57 = arith.constant 0 : index
    %90 = vector.load %arg11[%c0_55, %c0_56, %c0_57] : memref<2x128x9xf32, #tpu.memory_space<vmem>>, vector<2x128x9xf32>
    tpu.vector_store %arg11[%c0_55, %c0_56, %c0_57], %89 {strides = array<i32>} : memref<2x128x9xf32, #tpu.memory_space<vmem>>, vector<2x128x9xf32>,
    return
  }
  func.func @transform_0(%arg0: i32) -> (i32, i32, i32) {
    %c0_i32 = arith.constant 0 : i32
    %c0_i32_0 = arith.constant 0 : i32
    %c0_i32_1 = arith.constant 0 : i32
    return %arg0, %c0_i32, %c0_i32_0 : i32, i32, i32
  }
  func.func @transform_1(%arg0: i32) -> (i32, i32) {
    %c0_i32 = arith.constant 0 : i32
    %c0_i32_0 = arith.constant 0 : i32
    %c0_i32_1 = arith.constant 0 : i32
    return %c0_i32, %c0_i32_0 : i32, i32
  }
  func.func @transform_2(%arg0: i32) -> (i32, i32) {
    %c0_i32 = arith.constant 0 : i32
    %c0_i32_0 = arith.constant 0 : i32
    %c0_i32_1 = arith.constant 0 : i32
    return %c0_i32, %c0_i32_0 : i32, i32
  }
  func.func @transform_3(%arg0: i32) -> (i32, i32) {
    %c0_i32 = arith.constant 0 : i32
    %c0_i32_0 = arith.constant 0 : i32
    %c0_i32_1 = arith.constant 0 : i32
    return %c0_i32, %c0_i32_0 : i32, i32
  }
  func.func @transform_4(%arg0: i32) -> (i32, i32) {
    %c0_i32 = arith.constant 0 : i32
    %c0_i32_0 = arith.constant 0 : i32
    %c0_i32_1 = arith.constant 0 : i32
    return %c0_i32, %c0_i32_0 : i32, i32
  }
  func.func @transform_5(%arg0: i32) -> (i32, i32) {
    %c0_i32 = arith.constant 0 : i32
    %c0_i32_0 = arith.constant 0 : i32
    %c0_i32_1 = arith.constant 0 : i32
    return %c0_i32, %c0_i32_0 : i32, i32
  }
  func.func @transform_6(%arg0: i32) -> (i32, i32) {
    %c0_i32 = arith.constant 0 : i32
    %c0_i32_0 = arith.constant 0 : i32
    %c0_i32_1 = arith.constant 0 : i32
    return %c0_i32, %c0_i32_0 : i32, i32
  }
  func.func @transform_7(%arg0: i32) -> (i32, i32) {
    %c0_i32 = arith.constant 0 : i32
    %c0_i32_0 = arith.constant 0 : i32
    %c0_i32_1 = arith.constant 0 : i32
    return %c0_i32, %c0_i32_0 : i32, i32
  }
  func.func @transform_8(%arg0: i32) -> (i32, i32) {
    %c0_i32 = arith.constant 0 : i32
    %c0_i32_0 = arith.constant 0 : i32
    %c0_i32_1 = arith.constant 0 : i32
    return %c0_i32, %c0_i32_0 : i32, i32
  }
  func.func @transform_9(%arg0: i32) -> (i32, i32) {
    %c0_i32 = arith.constant 0 : i32
    %c0_i32_0 = arith.constant 0 : i32
    %c0_i32_1 = arith.constant 0 : i32
    return %c0_i32, %c0_i32_0 : i32, i32
  }
  func.func @transform_10(%arg0: i32) -> (i32, i32, i32) {
    %c0_i32 = arith.constant 0 : i32
    %c0_i32_0 = arith.constant 0 : i32
    %c0_i32_1 = arith.constant 0 : i32
    return %arg0, %c0_i32, %c0_i32_0 : i32, i32, i32
  }
}

</mosaic_0001>

<llo_original>
// kernel: tpu_custom_call.1
$region0: #{tpu_custom_call.1}
  #allocation0 [shape = 'u32[]', space=smem, size = 0x4, offset = 0x4, fixed_abs, tag = 'smem constant byte address 0x4 - core index']
  #allocation1 [shape = 'u32[144,128]{1,0:T(1,128)}', space=vmem, size = 0x12000, scoped, tag = 'internal scratch']
  %s0 = inlined_call_operand.vmem [shape: f32[2,128,3], index: 0, kind: input, shape index: {}]
  %s1 = inlined_call_operand.vmem [shape: f32[3,64], index: 1, kind: input, shape index: {}]
  %s2 = inlined_call_operand.vmem [shape: f32[1,64], index: 2, kind: input, shape index: {}]
  %s3 = inlined_call_operand.vmem [shape: f32[64,128], index: 3, kind: input, shape index: {}]
  %s4 = inlined_call_operand.vmem [shape: f32[1,128], index: 4, kind: input, shape index: {}]
  %s5 = inlined_call_operand.vmem [shape: f32[128,1024], index: 5, kind: input, shape index: {}]
  %s6 = inlined_call_operand.vmem [shape: f32[1,1024], index: 6, kind: input, shape index: {}]
  %s7 = inlined_call_operand.vmem [shape: f32[64,9], index: 7, kind: input, shape index: {}]
  %s8 = inlined_call_operand.vmem [shape: f32[1024,9], index: 8, kind: input, shape index: {}]
  %s9 = inlined_call_operand.vmem [shape: f32[1,9], index: 9, kind: input, shape index: {}]
  %s10 = inlined_call_operand.vmem [shape: f32[2,128,9], index: 10, kind: output, shape index: {}]
  %s11 = sld [smem:[#allocation0]]
  $region50: #{tpu_custom_call.1} parent=0
    _
  %s13 = ssub.s32 1, %s11
  %s14 = scalar_select 0, %s13, %s11
  // Predicated region
  $region2: #{tpu_custom_call.1} parent=0 // pred_check
    _
  $region3: #{tpu_custom_call.1} parent=0 // pred_check_branch
    %16 = sbr.rel (0) target = $region5
  $region4: #{tpu_custom_call.1} parent=0 // pred_region
    _
  $region5: #{tpu_custom_call.1} parent=0 // pred_fallthru
    _
  // Predicated region
  $region6: #{tpu_custom_call.1} parent=0 // pred_check
    _
  $region7: #{tpu_custom_call.1} parent=0 // pred_check_branch
    %18 = sbr.rel (0) target = $region9
  $region8: #{tpu_custom_call.1} parent=0 // pred_region
    _
  $region9: #{tpu_custom_call.1} parent=0 // pred_fallthru
    _
  // Predicated region
  $region10: #{tpu_custom_call.1} parent=0 // pred_check
    _
  $region11: #{tpu_custom_call.1} parent=0 // pred_check_branch
    %20 = sbr.rel (0) target = $region13
  $region12: #{tpu_custom_call.1} parent=0 // pred_region
    _
  $region13: #{tpu_custom_call.1} parent=0 // pred_fallthru
    _
  // Predicated region
  $region14: #{tpu_custom_call.1} parent=0 // pred_check
    _
  $region15: #{tpu_custom_call.1} parent=0 // pred_check_branch
    %22 = sbr.rel (0) target = $region17
  $region16: #{tpu_custom_call.1} parent=0 // pred_region
    _
  $region17: #{tpu_custom_call.1} parent=0 // pred_fallthru
    _
  // Predicated region
  $region18: #{tpu_custom_call.1} parent=0 // pred_check
    _
  $region19: #{tpu_custom_call.1} parent=0 // pred_check_branch
    %24 = sbr.rel (0) target = $region21
  $region20: #{tpu_custom_call.1} parent=0 // pred_region
    _
  $region21: #{tpu_custom_call.1} parent=0 // pred_fallthru
    _
  // Predicated region
  $region22: #{tpu_custom_call.1} parent=0 // pred_check
    _
  $region23: #{tpu_custom_call.1} parent=0 // pred_check_branch
    %26 = sbr.rel (0) target = $region25
  $region24: #{tpu_custom_call.1} parent=0 // pred_region
    _
  $region25: #{tpu_custom_call.1} parent=0 // pred_fallthru
    _
  // Predicated region
  $region26: #{tpu_custom_call.1} parent=0 // pred_check
    _
  $region27: #{tpu_custom_call.1} parent=0 // pred_check_branch
    %28 = sbr.rel (0) target = $region29
  $region28: #{tpu_custom_call.1} parent=0 // pred_region
    _
  $region29: #{tpu_custom_call.1} parent=0 // pred_fallthru
    _
  // Predicated region
  $region30: #{tpu_custom_call.1} parent=0 // pred_check
    _
  $region31: #{tpu_custom_call.1} parent=0 // pred_check_branch
    %30 = sbr.rel (0) target = $region33
  $region32: #{tpu_custom_call.1} parent=0 // pred_region
    _
  $region33: #{tpu_custom_call.1} parent=0 // pred_fallthru
    _
  // Predicated region
  $region34: #{tpu_custom_call.1} parent=0 // pred_check
    _
  $region35: #{tpu_custom_call.1} parent=0 // pred_check_branch
    %32 = sbr.rel (0) target = $region37
  $region36: #{tpu_custom_call.1} parent=0 // pred_region
    _
  $region37: #{tpu_custom_call.1} parent=0 // pred_fallthru
    _
  // Predicated region
  $region38: #{tpu_custom_call.1} parent=0 // pred_check
    _
  $region39: #{tpu_custom_call.1} parent=0 // pred_check_branch
    %34 = sbr.rel (0) target = $region41
  $region40: #{tpu_custom_call.1} parent=0 // pred_region
    _
  $region41: #{tpu_custom_call.1} parent=0 // pred_fallthru
    _
  %v35 = vld [vmem:[%s0] sm:$0xff]
  %v36 = vld [vmem:[%s0 + $0x8] sm:$0xff]
  %v37 = vld [vmem:[%s0 + $0x10] sm:$0xff]
  %v38 = vld [vmem:[%s0 + $0x18] sm:$0xff]
  %v39 = vld [vmem:[%s0 + $0x20] sm:$0xff]
  %v40 = vld [vmem:[%s0 + $0x28] sm:$0xff]
  %v41 = vld [vmem:[%s0 + $0x30] sm:$0xff]
  %v42 = vld [vmem:[%s0 + $0x38] sm:$0xff]
  %v43 = vld [vmem:[%s0 + $0x40] sm:$0xff]
  %v44 = vld [vmem:[%s0 + $0x48] sm:$0xff]
  %v45 = vld [vmem:[%s0 + $0x50] sm:$0xff]
  %v46 = vld [vmem:[%s0 + $0x58] sm:$0xff]
  %v47 = vld [vmem:[%s0 + $0x60] sm:$0xff]
  %v48 = vld [vmem:[%s0 + $0x68] sm:$0xff]
  %v49 = vld [vmem:[%s0 + $0x70] sm:$0xff]
  %v50 = vld [vmem:[%s0 + $0x78] sm:$0xff]
  %v51 = vld [vmem:[%s0 + $0x80] sm:$0xff]
  %v52 = vld [vmem:[%s0 + $0x88] sm:$0xff]
  %v53 = vld [vmem:[%s0 + $0x90] sm:$0xff]
  %v54 = vld [vmem:[%s0 + $0x98] sm:$0xff]
  %v55 = vld [vmem:[%s0 + $0xa0] sm:$0xff]
  %v56 = vld [vmem:[%s0 + $0xa8] sm:$0xff]
  %v57 = vld [vmem:[%s0 + $0xb0] sm:$0xff]
  %v58 = vld [vmem:[%s0 + $0xb8] sm:$0xff]
  %v59 = vld [vmem:[%s0 + $0xc0] sm:$0xff]
  %v60 = vld [vmem:[%s0 + $0xc8] sm:$0xff]
  %v61 = vld [vmem:[%s0 + $0xd0] sm:$0xff]
  %v62 = vld [vmem:[%s0 + $0xd8] sm:$0xff]
  %v63 = vld [vmem:[%s0 + $0xe0] sm:$0xff]
  %v64 = vld [vmem:[%s0 + $0xe8] sm:$0xff]
  %v65 = vld [vmem:[%s0 + $0xf0] sm:$0xff]
  %v66 = vld [vmem:[%s0 + $0xf8] sm:$0xff]
  %v67 = vld [vmem:[%s1] sm:$0x7]
  %69 = vset.pattern.permute.xlu0 0
  %70 = vperm.xlu0 %69, %v35
  %v71 = vpop.permute.xlu0 %70
  %74 = vset.pattern.permute.xlu0 0
  %75 = vperm.xlu0 %74, %v36
  %v76 = vpop.permute.xlu0 %75
  %79 = vset.pattern.permute.xlu0 0
  %80 = vperm.xlu0 %79, %v37
  %v81 = vpop.permute.xlu0 %80
  %84 = vset.pattern.permute.xlu0 0
  %85 = vperm.xlu0 %84, %v38
  %v86 = vpop.permute.xlu0 %85
  %89 = vset.pattern.permute.xlu0 0
  %90 = vperm.xlu0 %89, %v39
  %v91 = vpop.permute.xlu0 %90
  %94 = vset.pattern.permute.xlu0 0
  %95 = vperm.xlu0 %94, %v40
  %v96 = vpop.permute.xlu0 %95
  %99 = vset.pattern.permute.xlu0 0
  %100 = vperm.xlu0 %99, %v41
  %v101 = vpop.permute.xlu0 %100
  %104 = vset.pattern.permute.xlu0 0
  %105 = vperm.xlu0 %104, %v42
  %v106 = vpop.permute.xlu0 %105
  %109 = vset.pattern.permute.xlu0 0
  %110 = vperm.xlu0 %109, %v43
  %v111 = vpop.permute.xlu0 %110
  %114 = vset.pattern.permute.xlu0 0
  %115 = vperm.xlu0 %114, %v44
  %v116 = vpop.permute.xlu0 %115
  %119 = vset.pattern.permute.xlu0 0
  %120 = vperm.xlu0 %119, %v45
  %v121 = vpop.permute.xlu0 %120
  %124 = vset.pattern.permute.xlu0 0
  %125 = vperm.xlu0 %124, %v46
  %v126 = vpop.permute.xlu0 %125
  %129 = vset.pattern.permute.xlu0 0
  %130 = vperm.xlu0 %129, %v47
  %v131 = vpop.permute.xlu0 %130
  %134 = vset.pattern.permute.xlu0 0
  %135 = vperm.xlu0 %134, %v48
  %v136 = vpop.permute.xlu0 %135
  %139 = vset.pattern.permute.xlu0 0
  %140 = vperm.xlu0 %139, %v49
  %v141 = vpop.permute.xlu0 %140
  %144 = vset.pattern.permute.xlu0 0
  %145 = vperm.xlu0 %144, %v50
  %v146 = vpop.permute.xlu0 %145
  %149 = vset.pattern.permute.xlu0 0
  %150 = vperm.xlu0 %149, %v51
  %v151 = vpop.permute.xlu0 %150
  %154 = vset.pattern.permute.xlu0 0
  %155 = vperm.xlu0 %154, %v52
  %v156 = vpop.permute.xlu0 %155
  %159 = vset.pattern.permute.xlu0 0
  %160 = vperm.xlu0 %159, %v53
  %v161 = vpop.permute.xlu0 %160
  %164 = vset.pattern.permute.xlu0 0
  %165 = vperm.xlu0 %164, %v54
  %v166 = vpop.permute.xlu0 %165
  %169 = vset.pattern.permute.xlu0 0
  %170 = vperm.xlu0 %169, %v55
  %v171 = vpop.permute.xlu0 %170
  %174 = vset.pattern.permute.xlu0 0
  %175 = vperm.xlu0 %174, %v56
  %v176 = vpop.permute.xlu0 %175
  %179 = vset.pattern.permute.xlu0 0
  %180 = vperm.xlu0 %179, %v57
  %v181 = vpop.permute.xlu0 %180
  %184 = vset.pattern.permute.xlu0 0
  %185 = vperm.xlu0 %184, %v58
  %v186 = vpop.permute.xlu0 %185
  %189 = vset.pattern.permute.xlu0 0
  %190 = vperm.xlu0 %189, %v59
  %v191 = vpop.permute.xlu0 %190
  %194 = vset.pattern.permute.xlu0 0
  %195 = vperm.xlu0 %194, %v60
  %v196 = vpop.permute.xlu0 %195
  %199 = vset.pattern.permute.xlu0 0
  %200 = vperm.xlu0 %199, %v61
  %v201 = vpop.permute.xlu0 %200
  %204 = vset.pattern.permute.xlu0 0
  %205 = vperm.xlu0 %204, %v62
  %v206 = vpop.permute.xlu0 %205
  %209 = vset.pattern.permute.xlu0 0
  %210 = vperm.xlu0 %209, %v63
  %v211 = vpop.permute.xlu0 %210
  %214 = vset.pattern.permute.xlu0 0
  %215 = vperm.xlu0 %214, %v64
  %v216 = vpop.permute.xlu0 %215
  %219 = vset.pattern.permute.xlu0 0
  %220 = vperm.xlu0 %219, %v65
  %v221 = vpop.permute.xlu0 %220
  %224 = vset.pattern.permute.xlu0 0
  %225 = vperm.xlu0 %224, %v66
  %v226 = vpop.permute.xlu0 %225
  %v228 = vlaneseq
  %v229 = vshrl.u32 %v228, 7
  %v230 = vsub.s32 0, %v229
  %v231 = vrot.slane %v67, %v230
  %v232 = vmul.f32 %v71, %v231
  %v233 = vmul.f32 %v76, %v231
  %v234 = vmul.f32 %v81, %v231
  %v235 = vmul.f32 %v86, %v231
  %v236 = vmul.f32 %v91, %v231
  %v237 = vmul.f32 %v96, %v231
  %v238 = vmul.f32 %v101, %v231
  %v239 = vmul.f32 %v106, %v231
  %v240 = vmul.f32 %v111, %v231
  %v241 = vmul.f32 %v116, %v231
  %v242 = vmul.f32 %v121, %v231
  %v243 = vmul.f32 %v126, %v231
  %v244 = vmul.f32 %v131, %v231
  %v245 = vmul.f32 %v136, %v231
  %v246 = vmul.f32 %v141, %v231
  %v247 = vmul.f32 %v146, %v231
  %v248 = vmul.f32 %v151, %v231
  %v249 = vmul.f32 %v156, %v231
  %v250 = vmul.f32 %v161, %v231
  %v251 = vmul.f32 %v166, %v231
  %v252 = vmul.f32 %v171, %v231
  %v253 = vmul.f32 %v176, %v231
  %v254 = vmul.f32 %v181, %v231
  %v255 = vmul.f32 %v186, %v231
  %v256 = vmul.f32 %v191, %v231
  %v257 = vmul.f32 %v196, %v231
  %v258 = vmul.f32 %v201, %v231
  %v259 = vmul.f32 %v206, %v231
  %v260 = vmul.f32 %v211, %v231
  %v261 = vmul.f32 %v216, %v231
  %v262 = vmul.f32 %v221, %v231
  %v263 = vmul.f32 %v226, %v231
  %264 = vset.pattern.permute.xlu0 1
  %265 = vperm.xlu0 %264, %v35
  %v266 = vpop.permute.xlu0 %265
  %268 = vset.pattern.permute.xlu0 1
  %269 = vperm.xlu0 %268, %v36
  %v270 = vpop.permute.xlu0 %269
  %272 = vset.pattern.permute.xlu0 1
  %273 = vperm.xlu0 %272, %v37
  %v274 = vpop.permute.xlu0 %273
  %276 = vset.pattern.permute.xlu0 1
  %277 = vperm.xlu0 %276, %v38
  %v278 = vpop.permute.xlu0 %277
  %280 = vset.pattern.permute.xlu0 1
  %281 = vperm.xlu0 %280, %v39
  %v282 = vpop.permute.xlu0 %281
  %284 = vset.pattern.permute.xlu0 1
  %285 = vperm.xlu0 %284, %v40
  %v286 = vpop.permute.xlu0 %285
  %288 = vset.pattern.permute.xlu0 1
  %289 = vperm.xlu0 %288, %v41
  %v290 = vpop.permute.xlu0 %289
  %292 = vset.pattern.permute.xlu0 1
  %293 = vperm.xlu0 %292, %v42
  %v294 = vpop.permute.xlu0 %293
  %296 = vset.pattern.permute.xlu0 1
  %297 = vperm.xlu0 %296, %v43
  %v298 = vpop.permute.xlu0 %297
  %300 = vset.pattern.permute.xlu0 1
  %301 = vperm.xlu0 %300, %v44
  %v302 = vpop.permute.xlu0 %301
  %304 = vset.pattern.permute.xlu0 1
  %305 = vperm.xlu0 %304, %v45
  %v306 = vpop.permute.xlu0 %305
  %308 = vset.pattern.permute.xlu0 1
  %309 = vperm.xlu0 %308, %v46
  %v310 = vpop.permute.xlu0 %309
  %312 = vset.pattern.permute.xlu0 1
  %313 = vperm.xlu0 %312, %v47
  %v314 = vpop.permute.xlu0 %313
  %316 = vset.pattern.permute.xlu0 1
  %317 = vperm.xlu0 %316, %v48
  %v318 = vpop.permute.xlu0 %317
  %320 = vset.pattern.permute.xlu0 1
  %321 = vperm.xlu0 %320, %v49
  %v322 = vpop.permute.xlu0 %321
  %324 = vset.pattern.permute.xlu0 1
  %325 = vperm.xlu0 %324, %v50
  %v326 = vpop.permute.xlu0 %325
  %328 = vset.pattern.permute.xlu0 1
  %329 = vperm.xlu0 %328, %v51
  %v330 = vpop.permute.xlu0 %329
  %332 = vset.pattern.permute.xlu0 1
  %333 = vperm.xlu0 %332, %v52
  %v334 = vpop.permute.xlu0 %333
  %336 = vset.pattern.permute.xlu0 1
  %337 = vperm.xlu0 %336, %v53
  %v338 = vpop.permute.xlu0 %337
  %340 = vset.pattern.permute.xlu0 1
  %341 = vperm.xlu0 %340, %v54
  %v342 = vpop.permute.xlu0 %341
  %344 = vset.pattern.permute.xlu0 1
  %345 = vperm.xlu0 %344, %v55
  %v346 = vpop.permute.xlu0 %345
  %348 = vset.pattern.permute.xlu0 1
  %349 = vperm.xlu0 %348, %v56
  %v350 = vpop.permute.xlu0 %349
  %352 = vset.pattern.permute.xlu0 1
  %353 = vperm.xlu0 %352, %v57
  %v354 = vpop.permute.xlu0 %353
  %356 = vset.pattern.permute.xlu0 1
  %357 = vperm.xlu0 %356, %v58
  %v358 = vpop.permute.xlu0 %357
  %360 = vset.pattern.permute.xlu0 1
  %361 = vperm.xlu0 %360, %v59
  %v362 = vpop.permute.xlu0 %361
  %364 = vset.pattern.permute.xlu0 1
  %365 = vperm.xlu0 %364, %v60
  %v366 = vpop.permute.xlu0 %365
  %368 = vset.pattern.permute.xlu0 1
  %369 = vperm.xlu0 %368, %v61
  %v370 = vpop.permute.xlu0 %369
  %372 = vset.pattern.permute.xlu0 1
  %373 = vperm.xlu0 %372, %v62
  %v374 = vpop.permute.xlu0 %373
  %376 = vset.pattern.permute.xlu0 1
  %377 = vperm.xlu0 %376, %v63
  %v378 = vpop.permute.xlu0 %377
  %380 = vset.pattern.permute.xlu0 1
  %381 = vperm.xlu0 %380, %v64
  %v382 = vpop.permute.xlu0 %381
  %384 = vset.pattern.permute.xlu0 1
  %385 = vperm.xlu0 %384, %v65
  %v386 = vpop.permute.xlu0 %385
  %388 = vset.pattern.permute.xlu0 1
  %389 = vperm.xlu0 %388, %v66
  %v390 = vpop.permute.xlu0 %389
  %v392 = vlaneseq
  %v393 = vshrl.u32 %v392, 7
  %v394 = vsub.s32 1, %v393
  %v395 = vrot.slane %v67, %v394
  %v396 = vmul.f32 %v266, %v395
  %v397 = vmul.f32 %v270, %v395
  %v398 = vmul.f32 %v274, %v395
  %v399 = vmul.f32 %v278, %v395
  %v400 = vmul.f32 %v282, %v395
  %v401 = vmul.f32 %v286, %v395
  %v402 = vmul.f32 %v290, %v395
  %v403 = vmul.f32 %v294, %v395
  %v404 = vmul.f32 %v298, %v395
  %v405 = vmul.f32 %v302, %v395
  %v406 = vmul.f32 %v306, %v395
  %v407 = vmul.f32 %v310, %v395
  %v408 = vmul.f32 %v314, %v395
  %v409 = vmul.f32 %v318, %v395
  %v410 = vmul.f32 %v322, %v395
  %v411 = vmul.f32 %v326, %v395
  %v412 = vmul.f32 %v330, %v395
  %v413 = vmul.f32 %v334, %v395
  %v414 = vmul.f32 %v338, %v395
  %v415 = vmul.f32 %v342, %v395
  %v416 = vmul.f32 %v346, %v395
  %v417 = vmul.f32 %v350, %v395
  %v418 = vmul.f32 %v354, %v395
  %v419 = vmul.f32 %v358, %v395
  %v420 = vmul.f32 %v362, %v395
  %v421 = vmul.f32 %v366, %v395
  %v422 = vmul.f32 %v370, %v395
  %v423 = vmul.f32 %v374, %v395
  %v424 = vmul.f32 %v378, %v395
  %v425 = vmul.f32 %v382, %v395
  %v426 = vmul.f32 %v386, %v395
  %v427 = vmul.f32 %v390, %v395
  %v428 = vadd.f32 %v232, %v396
  %v429 = vadd.f32 %v233, %v397
  %v430 = vadd.f32 %v234, %v398
  %v431 = vadd.f32 %v235, %v399
  %v432 = vadd.f32 %v236, %v400
  %v433 = vadd.f32 %v237, %v401
  %v434 = vadd.f32 %v238, %v402
  %v435 = vadd.f32 %v239, %v403
  %v436 = vadd.f32 %v240, %v404
  %v437 = vadd.f32 %v241, %v405
  %v438 = vadd.f32 %v242, %v406
  %v439 = vadd.f32 %v243, %v407
  %v440 = vadd.f32 %v244, %v408
  %v441 = vadd.f32 %v245, %v409
  %v442 = vadd.f32 %v246, %v410
  %v443 = vadd.f32 %v247, %v411
  %v444 = vadd.f32 %v248, %v412
  %v445 = vadd.f32 %v249, %v413
  %v446 = vadd.f32 %v250, %v414
  %v447 = vadd.f32 %v251, %v415
  %v448 = vadd.f32 %v252, %v416
  %v449 = vadd.f32 %v253, %v417
  %v450 = vadd.f32 %v254, %v418
  %v451 = vadd.f32 %v255, %v419
  %v452 = vadd.f32 %v256, %v420
  %v453 = vadd.f32 %v257, %v421
  %v454 = vadd.f32 %v258, %v422
  %v455 = vadd.f32 %v259, %v423
  %v456 = vadd.f32 %v260, %v424
  %v457 = vadd.f32 %v261, %v425
  %v458 = vadd.f32 %v262, %v426
  %v459 = vadd.f32 %v263, %v427
  %460 = vset.pattern.permute.xlu0 2
  %461 = vperm.xlu0 %460, %v35
  %v462 = vpop.permute.xlu0 %461
  %464 = vset.pattern.permute.xlu0 2
  %465 = vperm.xlu0 %464, %v36
  %v466 = vpop.permute.xlu0 %465
  %468 = vset.pattern.permute.xlu0 2
  %469 = vperm.xlu0 %468, %v37
  %v470 = vpop.permute.xlu0 %469
  %472 = vset.pattern.permute.xlu0 2
  %473 = vperm.xlu0 %472, %v38
  %v474 = vpop.permute.xlu0 %473
  %476 = vset.pattern.permute.xlu0 2
  %477 = vperm.xlu0 %476, %v39
  %v478 = vpop.permute.xlu0 %477
  %480 = vset.pattern.permute.xlu0 2
  %481 = vperm.xlu0 %480, %v40
  %v482 = vpop.permute.xlu0 %481
  %484 = vset.pattern.permute.xlu0 2
  %485 = vperm.xlu0 %484, %v41
  %v486 = vpop.permute.xlu0 %485
  %488 = vset.pattern.permute.xlu0 2
  %489 = vperm.xlu0 %488, %v42
  %v490 = vpop.permute.xlu0 %489
  %492 = vset.pattern.permute.xlu0 2
  %493 = vperm.xlu0 %492, %v43
  %v494 = vpop.permute.xlu0 %493
  %496 = vset.pattern.permute.xlu0 2
  %497 = vperm.xlu0 %496, %v44
  %v498 = vpop.permute.xlu0 %497
  %500 = vset.pattern.permute.xlu0 2
  %501 = vperm.xlu0 %500, %v45
  %v502 = vpop.permute.xlu0 %501
  %504 = vset.pattern.permute.xlu0 2
  %505 = vperm.xlu0 %504, %v46
  %v506 = vpop.permute.xlu0 %505
  %508 = vset.pattern.permute.xlu0 2
  %509 = vperm.xlu0 %508, %v47
  %v510 = vpop.permute.xlu0 %509
  %512 = vset.pattern.permute.xlu0 2
  %513 = vperm.xlu0 %512, %v48
  %v514 = vpop.permute.xlu0 %513
  %516 = vset.pattern.permute.xlu0 2
  %517 = vperm.xlu0 %516, %v49
  %v518 = vpop.permute.xlu0 %517
  %520 = vset.pattern.permute.xlu0 2
  %521 = vperm.xlu0 %520, %v50
  %v522 = vpop.permute.xlu0 %521
  %524 = vset.pattern.permute.xlu0 2
  %525 = vperm.xlu0 %524, %v51
  %v526 = vpop.permute.xlu0 %525
  %528 = vset.pattern.permute.xlu0 2
  %529 = vperm.xlu0 %528, %v52
  %v530 = vpop.permute.xlu0 %529
  %532 = vset.pattern.permute.xlu0 2
  %533 = vperm.xlu0 %532, %v53
  %v534 = vpop.permute.xlu0 %533
  %536 = vset.pattern.permute.xlu0 2
  %537 = vperm.xlu0 %536, %v54
  %v538 = vpop.permute.xlu0 %537
  %540 = vset.pattern.permute.xlu0 2
  %541 = vperm.xlu0 %540, %v55
  %v542 = vpop.permute.xlu0 %541
  %544 = vset.pattern.permute.xlu0 2
  %545 = vperm.xlu0 %544, %v56
  %v546 = vpop.permute.xlu0 %545
  %548 = vset.pattern.permute.xlu0 2
  %549 = vperm.xlu0 %548, %v57
  %v550 = vpop.permute.xlu0 %549
  %552 = vset.pattern.permute.xlu0 2
  %553 = vperm.xlu0 %552, %v58
  %v554 = vpop.permute.xlu0 %553
  %556 = vset.pattern.permute.xlu0 2
  %557 = vperm.xlu0 %556, %v59
  %v558 = vpop.permute.xlu0 %557
  %560 = vset.pattern.permute.xlu0 2
  %561 = vperm.xlu0 %560, %v60
  %v562 = vpop.permute.xlu0 %561
  %564 = vset.pattern.permute.xlu0 2
  %565 = vperm.xlu0 %564, %v61
  %v566 = vpop.permute.xlu0 %565
  %568 = vset.pattern.permute.xlu0 2
  %569 = vperm.xlu0 %568, %v62
  %v570 = vpop.permute.xlu0 %569
  %572 = vset.pattern.permute.xlu0 2
  %573 = vperm.xlu0 %572, %v63
  %v574 = vpop.permute.xlu0 %573
  %576 = vset.pattern.permute.xlu0 2
  %577 = vperm.xlu0 %576, %v64
  %v578 = vpop.permute.xlu0 %577
  %580 = vset.pattern.permute.xlu0 2
  %581 = vperm.xlu0 %580, %v65
  %v582 = vpop.permute.xlu0 %581
  %584 = vset.pattern.permute.xlu0 2
  %585 = vperm.xlu0 %584, %v66
  %v586 = vpop.permute.xlu0 %585
  %v588 = vlaneseq
  %v589 = vshrl.u32 %v588, 7
  %v590 = vsub.s32 2, %v589
  %v591 = vrot.slane %v67, %v590
  %v592 = vmul.f32 %v462, %v591
  %v593 = vmul.f32 %v466, %v591
  %v594 = vmul.f32 %v470, %v591
  %v595 = vmul.f32 %v474, %v591
  %v596 = vmul.f32 %v478, %v591
  %v597 = vmul.f32 %v482, %v591
  %v598 = vmul.f32 %v486, %v591
  %v599 = vmul.f32 %v490, %v591
  %v600 = vmul.f32 %v494, %v591
  %v601 = vmul.f32 %v498, %v591
  %v602 = vmul.f32 %v502, %v591
  %v603 = vmul.f32 %v506, %v591
  %v604 = vmul.f32 %v510, %v591
  %v605 = vmul.f32 %v514, %v591
  %v606 = vmul.f32 %v518, %v591
  %v607 = vmul.f32 %v522, %v591
  %v608 = vmul.f32 %v526, %v591
  %v609 = vmul.f32 %v530, %v591
  %v610 = vmul.f32 %v534, %v591
  %v611 = vmul.f32 %v538, %v591
  %v612 = vmul.f32 %v542, %v591
  %v613 = vmul.f32 %v546, %v591
  %v614 = vmul.f32 %v550, %v591
  %v615 = vmul.f32 %v554, %v591
  %v616 = vmul.f32 %v558, %v591
  %v617 = vmul.f32 %v562, %v591
  %v618 = vmul.f32 %v566, %v591
  %v619 = vmul.f32 %v570, %v591
  %v620 = vmul.f32 %v574, %v591
  %v621 = vmul.f32 %v578, %v591
  %v622 = vmul.f32 %v582, %v591
  %v623 = vmul.f32 %v586, %v591
  %v624 = vadd.f32 %v428, %v592
  %v625 = vadd.f32 %v429, %v593
  %v626 = vadd.f32 %v430, %v594
  %v627 = vadd.f32 %v431, %v595
  %v628 = vadd.f32 %v432, %v596
  %v629 = vadd.f32 %v433, %v597
  %v630 = vadd.f32 %v434, %v598
  %v631 = vadd.f32 %v435, %v599
  %v632 = vadd.f32 %v436, %v600
  %v633 = vadd.f32 %v437, %v601
  %v634 = vadd.f32 %v438, %v602
  %v635 = vadd.f32 %v439, %v603
  %v636 = vadd.f32 %v440, %v604
  %v637 = vadd.f32 %v441, %v605
  %v638 = vadd.f32 %v442, %v606
  %v639 = vadd.f32 %v443, %v607
  %v640 = vadd.f32 %v444, %v608
  %v641 = vadd.f32 %v445, %v609
  %v642 = vadd.f32 %v446, %v610
  %v643 = vadd.f32 %v447, %v611
  %v644 = vadd.f32 %v448, %v612
  %v645 = vadd.f32 %v449, %v613
  %v646 = vadd.f32 %v450, %v614
  %v647 = vadd.f32 %v451, %v615
  %v648 = vadd.f32 %v452, %v616
  %v649 = vadd.f32 %v453, %v617
  %v650 = vadd.f32 %v454, %v618
  %v651 = vadd.f32 %v455, %v619
  %v652 = vadd.f32 %v456, %v620
  %v653 = vadd.f32 %v457, %v621
  %v654 = vadd.f32 %v458, %v622
  %v655 = vadd.f32 %v459, %v623
  %v656 = vld [vmem:[%s2] sm:$0x1]
  %v658 = vlaneseq
  %v659 = vshrl.u32 %v658, 7
  %v660 = vsub.s32 0, %v659
  %v661 = vrot.slane %v656, %v660
  %v663 = vadd.f32 %v624, %v661
  %v664 = vadd.f32 %v625, %v661
  %v665 = vadd.f32 %v626, %v661
  %v666 = vadd.f32 %v627, %v661
  %v667 = vadd.f32 %v628, %v661
  %v668 = vadd.f32 %v629, %v661
  %v669 = vadd.f32 %v630, %v661
  %v670 = vadd.f32 %v631, %v661
  %v671 = vadd.f32 %v632, %v661
  %v672 = vadd.f32 %v633, %v661
  %v673 = vadd.f32 %v634, %v661
  %v674 = vadd.f32 %v635, %v661
  %v675 = vadd.f32 %v636, %v661
  %v676 = vadd.f32 %v637, %v661
  %v677 = vadd.f32 %v638, %v661
  %v678 = vadd.f32 %v639, %v661
  %v679 = vadd.f32 %v640, %v661
  %v680 = vadd.f32 %v641, %v661
  %v681 = vadd.f32 %v642, %v661
  %v682 = vadd.f32 %v643, %v661
  %v683 = vadd.f32 %v644, %v661
  %v684 = vadd.f32 %v645, %v661
  %v685 = vadd.f32 %v646, %v661
  %v686 = vadd.f32 %v647, %v661
  %v687 = vadd.f32 %v648, %v661
  %v688 = vadd.f32 %v649, %v661
  %v689 = vadd.f32 %v650, %v661
  %v690 = vadd.f32 %v651, %v661
  %v691 = vadd.f32 %v652, %v661
  %v692 = vadd.f32 %v653, %v661
  %v693 = vadd.f32 %v654, %v661
  %v694 = vadd.f32 %v655, %v661
  %v695 = vmax.f32 %v663, 0.0
  %v696 = vmax.f32 %v664, 0.0
  %v697 = vmax.f32 %v665, 0.0
  %v698 = vmax.f32 %v666, 0.0
  %v699 = vmax.f32 %v667, 0.0
  %v700 = vmax.f32 %v668, 0.0
  %v701 = vmax.f32 %v669, 0.0
  %v702 = vmax.f32 %v670, 0.0
  %v703 = vmax.f32 %v671, 0.0
  %v704 = vmax.f32 %v672, 0.0
  %v705 = vmax.f32 %v673, 0.0
  %v706 = vmax.f32 %v674, 0.0
  %v707 = vmax.f32 %v675, 0.0
  %v708 = vmax.f32 %v676, 0.0
  %v709 = vmax.f32 %v677, 0.0
  %v710 = vmax.f32 %v678, 0.0
  %v711 = vmax.f32 %v679, 0.0
  %v712 = vmax.f32 %v680, 0.0
  %v713 = vmax.f32 %v681, 0.0
  %v714 = vmax.f32 %v682, 0.0
  %v715 = vmax.f32 %v683, 0.0
  %v716 = vmax.f32 %v684, 0.0
  %v717 = vmax.f32 %v685, 0.0
  %v718 = vmax.f32 %v686, 0.0
  %v719 = vmax.f32 %v687, 0.0
  %v720 = vmax.f32 %v688, 0.0
  %v721 = vmax.f32 %v689, 0.0
  %v722 = vmax.f32 %v690, 0.0
  %v723 = vmax.f32 %v691, 0.0
  %v724 = vmax.f32 %v692, 0.0
  %v725 = vmax.f32 %v693, 0.0
  %v726 = vmax.f32 %v694, 0.0
  %v727 = vld [vmem:[%s3] sm:$0xff]
  %v728 = vld [vmem:[%s3 + $0x8] sm:$0xff]
  %v729 = vld [vmem:[%s3 + $0x10] sm:$0xff]
  %v730 = vld [vmem:[%s3 + $0x18] sm:$0xff]
  %v731 = vld [vmem:[%s3 + $0x20] sm:$0xff]
  %v732 = vld [vmem:[%s3 + $0x28] sm:$0xff]
  %v733 = vld [vmem:[%s3 + $0x30] sm:$0xff]
  %v734 = vld [vmem:[%s3 + $0x38] sm:$0xff]
  %v735 = vld [vmem:[%s4] sm:$0x1]
  %v737 = vlaneseq
  %v738 = vshrl.u32 %v737, 7
  %v739 = vsub.s32 0, %v738
  %v740 = vrot.slane %v735, %v739
  %vm742 = vcmask 523264
  %v744 = vsel %vm742, %v695, 0
  %v747 = vsel %vm742, %v696, 0
  %v750 = vsel %vm742, %v697, 0
  %v753 = vsel %vm742, %v698, 0
  %v756 = vsel %vm742, %v699, 0
  %v759 = vsel %vm742, %v700, 0
  %v762 = vsel %vm742, %v701, 0
  %v765 = vsel %vm742, %v702, 0
  %v768 = vsel %vm742, %v703, 0
  %v771 = vsel %vm742, %v704, 0
  %v774 = vsel %vm742, %v705, 0
  %v777 = vsel %vm742, %v706, 0
  %v780 = vsel %vm742, %v707, 0
  %v783 = vsel %vm742, %v708, 0
  %v786 = vsel %vm742, %v709, 0
  %v789 = vsel %vm742, %v710, 0
  %v792 = vsel %vm742, %v711, 0
  %v795 = vsel %vm742, %v712, 0
  %v798 = vsel %vm742, %v713, 0
  %v801 = vsel %vm742, %v714, 0
  %v804 = vsel %vm742, %v715, 0
  %v807 = vsel %vm742, %v716, 0
  %v810 = vsel %vm742, %v717, 0
  %v813 = vsel %vm742, %v718, 0
  %v816 = vsel %vm742, %v719, 0
  %v819 = vsel %vm742, %v720, 0
  %v822 = vsel %vm742, %v721, 0
  %v825 = vsel %vm742, %v722, 0
  %v828 = vsel %vm742, %v723, 0
  %v831 = vsel %vm742, %v724, 0
  %v834 = vsel %vm742, %v725, 0
  %v837 = vsel %vm742, %v726, 0
  %839 = vmatprep.subr.mxu0 0.0
  %840 = vmatpush1.msra.mxu0 0.0
  %841 = vmatprep.subr.mxu0 0.0
  %842 = vmatpush1.msra.mxu0 0.0
  %843 = vmatprep.subr.mxu0 0.0
  %844 = vmatpush1.msra.mxu0 0.0
  %845 = vmatprep.subr.mxu0 0.0
  %846 = vmatpush1.msra.mxu0 0.0
  %847 = vmatprep.subr.mxu0 0.0
  %848 = vmatpush1.msra.mxu0 0.0
  %849 = vmatprep.subr.mxu0 0.0
  %850 = vmatpush1.msra.mxu0 0.0
  %851 = vmatprep.subr.mxu0 0.0
  %852 = vmatpush1.msra.mxu0 0.0
  %853 = vmatprep.subr.mxu0 0.0
  %854 = vmatpush1.msra.mxu0 0.0
  %855 = vmatprep.subr.mxu0 0.0
  %856 = vmatpush1.msra.mxu0 %v734
  %857 = vmatprep.subr.mxu0 0.0
  %858 = vmatpush1.msra.mxu0 %v733
  %859 = vmatprep.subr.mxu0 0.0
  %860 = vmatpush1.msra.mxu0 %v732
  %861 = vmatprep.subr.mxu0 0.0
  %862 = vmatpush1.msra.mxu0 %v731
  %863 = vmatprep.subr.mxu0 0.0
  %864 = vmatpush1.msra.mxu0 %v730
  %865 = vmatprep.subr.mxu0 0.0
  %866 = vmatpush1.msra.mxu0 %v729
  %867 = vmatprep.subr.mxu0 0.0
  %868 = vmatpush1.msra.mxu0 %v728
  %869 = vmatprep.subr.mxu0 0.0
  %870 = vmatpush1.msra.mxu0 %v727
  %871 = vmatprep.subr.mxu0 0.0
  %872 = vmatpush2.msra.mxu0 0.0
  %873 = vmatprep.subr.mxu0 0.0
  %874 = vmatpush2.msra.mxu0 0.0
  %875 = vmatprep.subr.mxu0 0.0
  %876 = vmatpush2.msra.mxu0 0.0
  %877 = vmatprep.subr.mxu0 0.0
  %878 = vmatpush2.msra.mxu0 0.0
  %879 = vmatprep.subr.mxu0 0.0
  %880 = vmatpush2.msra.mxu0 0.0
  %881 = vmatprep.subr.mxu0 0.0
  %882 = vmatpush2.msra.mxu0 0.0
  %883 = vmatprep.subr.mxu0 0.0
  %884 = vmatpush2.msra.mxu0 0.0
  %885 = vmatprep.subr.mxu0 0.0
  %886 = vmatpush2.msra.mxu0 0.0
  %887 = vmatprep.subr.mxu0 0.0
  %888 = vmatpush2.msra.mxu0 0.0
  %889 = vmatprep.subr.mxu0 0.0
  %890 = vmatpush2.msra.mxu0 0.0
  %891 = vmatprep.subr.mxu0 0.0
  %892 = vmatpush2.msra.mxu0 0.0
  %893 = vmatprep.subr.mxu0 0.0
  %894 = vmatpush2.msra.mxu0 0.0
  %895 = vmatprep.subr.mxu0 0.0
  %896 = vmatpush2.msra.mxu0 0.0
  %897 = vmatprep.subr.mxu0 0.0
  %898 = vmatpush2.msra.mxu0 0.0
  %899 = vmatprep.subr.mxu0 0.0
  %900 = vmatpush2.msra.mxu0 0.0
  %901 = vmatprep.subr.mxu0 0.0
  %902 = vmatpush2.msra.mxu0 0.0
  %903 = vmatprep.mubr.f32.mxu0 0.0
  %904 = vmatmul.mubr.f32.gmra.mxu0 %v744
  %v905 = vpop.f32.mrf.mxu0
  %v906 = vadd.f32 %v740, %v905
  %v907 = vpop.f32.mrf.mxu0
  %908 = vmatprep.mubr.f32.mxu0 0.0
  %909 = vmatmul.mubr.f32.gmra.mxu0 %v747
  %v910 = vpop.f32.mrf.mxu0
  %v911 = vadd.f32 %v740, %v910
  %v912 = vpop.f32.mrf.mxu0
  %913 = vmatprep.mubr.f32.mxu0 0.0
  %914 = vmatmul.mubr.f32.gmra.mxu0 %v750
  %v915 = vpop.f32.mrf.mxu0
  %v916 = vadd.f32 %v740, %v915
  %v917 = vpop.f32.mrf.mxu0
  %918 = vmatprep.mubr.f32.mxu0 0.0
  %919 = vmatmul.mubr.f32.gmra.mxu0 %v753
  %v920 = vpop.f32.mrf.mxu0
  %v921 = vadd.f32 %v740, %v920
  %v922 = vpop.f32.mrf.mxu0
  %923 = vmatprep.mubr.f32.mxu0 0.0
  %924 = vmatmul.mubr.f32.gmra.mxu0 %v756
  %v925 = vpop.f32.mrf.mxu0
  %v926 = vadd.f32 %v740, %v925
  %v927 = vpop.f32.mrf.mxu0
  %928 = vmatprep.mubr.f32.mxu0 0.0
  %929 = vmatmul.mubr.f32.gmra.mxu0 %v759
  %v930 = vpop.f32.mrf.mxu0
  %v931 = vadd.f32 %v740, %v930
  %v932 = vpop.f32.mrf.mxu0
  %933 = vmatprep.mubr.f32.mxu0 0.0
  %934 = vmatmul.mubr.f32.gmra.mxu0 %v762
  %v935 = vpop.f32.mrf.mxu0
  %v936 = vadd.f32 %v740, %v935
  %v937 = vpop.f32.mrf.mxu0
  %938 = vmatprep.mubr.f32.mxu0 0.0
  %939 = vmatmul.mubr.f32.gmra.mxu0 %v765
  %v940 = vpop.f32.mrf.mxu0
  %v941 = vadd.f32 %v740, %v940
  %v942 = vpop.f32.mrf.mxu0
  %943 = vmatprep.mubr.f32.mxu0 0.0
  %944 = vmatmul.mubr.f32.gmra.mxu0 %v768
  %v945 = vpop.f32.mrf.mxu0
  %v946 = vadd.f32 %v740, %v945
  %v947 = vpop.f32.mrf.mxu0
  %948 = vmatprep.mubr.f32.mxu0 0.0
  %949 = vmatmul.mubr.f32.gmra.mxu0 %v771
  %v950 = vpop.f32.mrf.mxu0
  %v951 = vadd.f32 %v740, %v950
  %v952 = vpop.f32.mrf.mxu0
  %953 = vmatprep.mubr.f32.mxu0 0.0
  %954 = vmatmul.mubr.f32.gmra.mxu0 %v774
  %v955 = vpop.f32.mrf.mxu0
  %v956 = vadd.f32 %v740, %v955
  %v957 = vpop.f32.mrf.mxu0
  %958 = vmatprep.mubr.f32.mxu0 0.0
  %959 = vmatmul.mubr.f32.gmra.mxu0 %v777
  %v960 = vpop.f32.mrf.mxu0
  %v961 = vadd.f32 %v740, %v960
  %v962 = vpop.f32.mrf.mxu0
  %963 = vmatprep.mubr.f32.mxu0 0.0
  %964 = vmatmul.mubr.f32.gmra.mxu0 %v780
  %v965 = vpop.f32.mrf.mxu0
  %v966 = vadd.f32 %v740, %v965
  %v967 = vpop.f32.mrf.mxu0
  %968 = vmatprep.mubr.f32.mxu0 0.0
  %969 = vmatmul.mubr.f32.gmra.mxu0 %v783
  %v970 = vpop.f32.mrf.mxu0
  %v971 = vadd.f32 %v740, %v970
  %v972 = vpop.f32.mrf.mxu0
  %973 = vmatprep.mubr.f32.mxu0 0.0
  %974 = vmatmul.mubr.f32.gmra.mxu0 %v786
  %v975 = vpop.f32.mrf.mxu0
  %v976 = vadd.f32 %v740, %v975
  %v977 = vpop.f32.mrf.mxu0
  %978 = vmatprep.mubr.f32.mxu0 0.0
  %979 = vmatmul.mubr.f32.gmra.mxu0 %v789
  %v980 = vpop.f32.mrf.mxu0
  %v981 = vadd.f32 %v740, %v980
  %v982 = vpop.f32.mrf.mxu0
  %983 = vmatprep.mubr.f32.mxu0 0.0
  %984 = vmatmul.mubr.f32.gmra.mxu0 %v792
  %v985 = vpop.f32.mrf.mxu0
  %v986 = vadd.f32 %v740, %v985
  %v987 = vpop.f32.mrf.mxu0
  %988 = vmatprep.mubr.f32.mxu0 0.0
  %989 = vmatmul.mubr.f32.gmra.mxu0 %v795
  %v990 = vpop.f32.mrf.mxu0
  %v991 = vadd.f32 %v740, %v990
  %v992 = vpop.f32.mrf.mxu0
  %993 = vmatprep.mubr.f32.mxu0 0.0
  %994 = vmatmul.mubr.f32.gmra.mxu0 %v798
  %v995 = vpop.f32.mrf.mxu0
  %v996 = vadd.f32 %v740, %v995
  %v997 = vpop.f32.mrf.mxu0
  %998 = vmatprep.mubr.f32.mxu0 0.0
  %999 = vmatmul.mubr.f32.gmra.mxu0 %v801
  %v1000 = vpop.f32.mrf.mxu0
  %v1001 = vadd.f32 %v740, %v1000
  %v1002 = vpop.f32.mrf.mxu0
  %1003 = vmatprep.mubr.f32.mxu0 0.0
  %1004 = vmatmul.mubr.f32.gmra.mxu0 %v804
  %v1005 = vpop.f32.mrf.mxu0
  %v1006 = vadd.f32 %v740, %v1005
  %v1007 = vpop.f32.mrf.mxu0
  %1008 = vmatprep.mubr.f32.mxu0 0.0
  %1009 = vmatmul.mubr.f32.gmra.mxu0 %v807
  %v1010 = vpop.f32.mrf.mxu0
  %v1011 = vadd.f32 %v740, %v1010
  %v1012 = vpop.f32.mrf.mxu0
  %1013 = vmatprep.mubr.f32.mxu0 0.0
  %1014 = vmatmul.mubr.f32.gmra.mxu0 %v810
  %v1015 = vpop.f32.mrf.mxu0
  %v1016 = vadd.f32 %v740, %v1015
  %v1017 = vpop.f32.mrf.mxu0
  %1018 = vmatprep.mubr.f32.mxu0 0.0
  %1019 = vmatmul.mubr.f32.gmra.mxu0 %v813
  %v1020 = vpop.f32.mrf.mxu0
  %v1021 = vadd.f32 %v740, %v1020
  %v1022 = vpop.f32.mrf.mxu0
  %1023 = vmatprep.mubr.f32.mxu0 0.0
  %1024 = vmatmul.mubr.f32.gmra.mxu0 %v816
  %v1025 = vpop.f32.mrf.mxu0
  %v1026 = vadd.f32 %v740, %v1025
  %v1027 = vpop.f32.mrf.mxu0
  %1028 = vmatprep.mubr.f32.mxu0 0.0
  %1029 = vmatmul.mubr.f32.gmra.mxu0 %v819
  %v1030 = vpop.f32.mrf.mxu0
  %v1031 = vadd.f32 %v740, %v1030
  %v1032 = vpop.f32.mrf.mxu0
  %1033 = vmatprep.mubr.f32.mxu0 0.0
  %1034 = vmatmul.mubr.f32.gmra.mxu0 %v822
  %v1035 = vpop.f32.mrf.mxu0
  %v1036 = vadd.f32 %v740, %v1035
  %v1037 = vpop.f32.mrf.mxu0
  %1038 = vmatprep.mubr.f32.mxu0 0.0
  %1039 = vmatmul.mubr.f32.gmra.mxu0 %v825
  %v1040 = vpop.f32.mrf.mxu0
  %v1041 = vadd.f32 %v740, %v1040
  %v1042 = vpop.f32.mrf.mxu0
  %1043 = vmatprep.mubr.f32.mxu0 0.0
  %1044 = vmatmul.mubr.f32.gmra.mxu0 %v828
  %v1045 = vpop.f32.mrf.mxu0
  %v1046 = vadd.f32 %v740, %v1045
  %v1047 = vpop.f32.mrf.mxu0
  %1048 = vmatprep.mubr.f32.mxu0 0.0
  %1049 = vmatmul.mubr.f32.gmra.mxu0 %v831
  %v1050 = vpop.f32.mrf.mxu0
  %v1051 = vadd.f32 %v740, %v1050
  %v1052 = vpop.f32.mrf.mxu0
  %1053 = vmatprep.mubr.f32.mxu0 0.0
  %1054 = vmatmul.mubr.f32.gmra.mxu0 %v834
  %v1055 = vpop.f32.mrf.mxu0
  %v1056 = vadd.f32 %v740, %v1055
  %v1057 = vpop.f32.mrf.mxu0
  %1058 = vmatprep.mubr.f32.mxu0 0.0
  %1059 = vmatmul.mubr.f32.gmra.mxu0 %v837
  %v1060 = vpop.f32.mrf.mxu0
  %v1061 = vadd.f32 %v740, %v1060
  %v1062 = vpop.f32.mrf.mxu0
  %1063 = vdwg.mxu0
  %v1064 = vmax.f32 %v906, 0.0
  %v1065 = vmax.f32 %v911, 0.0
  %v1066 = vmax.f32 %v916, 0.0
  %v1067 = vmax.f32 %v921, 0.0
  %v1068 = vmax.f32 %v926, 0.0
  %v1069 = vmax.f32 %v931, 0.0
  %v1070 = vmax.f32 %v936, 0.0
  %v1071 = vmax.f32 %v941, 0.0
  %v1072 = vmax.f32 %v946, 0.0
  %v1073 = vmax.f32 %v951, 0.0
  %v1074 = vmax.f32 %v956, 0.0
  %v1075 = vmax.f32 %v961, 0.0
  %v1076 = vmax.f32 %v966, 0.0
  %v1077 = vmax.f32 %v971, 0.0
  %v1078 = vmax.f32 %v976, 0.0
  %v1079 = vmax.f32 %v981, 0.0
  %v1080 = vmax.f32 %v986, 0.0
  %v1081 = vmax.f32 %v991, 0.0
  %v1082 = vmax.f32 %v996, 0.0
  %v1083 = vmax.f32 %v1001, 0.0
  %v1084 = vmax.f32 %v1006, 0.0
  %v1085 = vmax.f32 %v1011, 0.0
  %v1086 = vmax.f32 %v1016, 0.0
  %v1087 = vmax.f32 %v1021, 0.0
  %v1088 = vmax.f32 %v1026, 0.0
  %v1089 = vmax.f32 %v1031, 0.0
  %v1090 = vmax.f32 %v1036, 0.0
  %v1091 = vmax.f32 %v1041, 0.0
  %v1092 = vmax.f32 %v1046, 0.0
  %v1093 = vmax.f32 %v1051, 0.0
  %v1094 = vmax.f32 %v1056, 0.0
  %v1095 = vmax.f32 %v1061, 0.0
  %v1096 = vld [vmem:[%s5] sm:$0xff]
  %v1097 = vld [vmem:[%s5 + $0x8] sm:$0xff]
  %v1098 = vld [vmem:[%s5 + $0x40] sm:$0xff]
  %v1099 = vld [vmem:[%s5 + $0x48] sm:$0xff]
  %v1100 = vld [vmem:[%s5 + $0x80] sm:$0xff]
  %v1101 = vld [vmem:[%s5 + $0x88] sm:$0xff]
  %v1102 = vld [vmem:[%s5 + $0xc0] sm:$0xff]
  %v1103 = vld [vmem:[%s5 + $0xc8] sm:$0xff]
  %v1104 = vld [vmem:[%s5 + $0x100] sm:$0xff]
  %v1105 = vld [vmem:[%s5 + $0x108] sm:$0xff]
  %v1106 = vld [vmem:[%s5 + $0x140] sm:$0xff]
  %v1107 = vld [vmem:[%s5 + $0x148] sm:$0xff]
  %v1108 = vld [vmem:[%s5 + $0x180] sm:$0xff]
  %v1109 = vld [vmem:[%s5 + $0x188] sm:$0xff]
  %v1110 = vld [vmem:[%s5 + $0x1c0] sm:$0xff]
  %v1111 = vld [vmem:[%s5 + $0x1c8] sm:$0xff]
  %v1112 = vld [vmem:[%s5 + $0x200] sm:$0xff]
  %v1113 = vld [vmem:[%s5 + $0x208] sm:$0xff]
  %v1114 = vld [vmem:[%s5 + $0x240] sm:$0xff]
  %v1115 = vld [vmem:[%s5 + $0x248] sm:$0xff]
  %v1116 = vld [vmem:[%s5 + $0x280] sm:$0xff]
  %v1117 = vld [vmem:[%s5 + $0x288] sm:$0xff]
  %v1118 = vld [vmem:[%s5 + $0x2c0] sm:$0xff]
  %v1119 = vld [vmem:[%s5 + $0x2c8] sm:$0xff]
  %v1120 = vld [vmem:[%s5 + $0x300] sm:$0xff]
  %v1121 = vld [vmem:[%s5 + $0x308] sm:$0xff]
  %v1122 = vld [vmem:[%s5 + $0x340] sm:$0xff]
  %v1123 = vld [vmem:[%s5 + $0x348] sm:$0xff]
  %v1124 = vld [vmem:[%s5 + $0x380] sm:$0xff]
  %v1125 = vld [vmem:[%s5 + $0x388] sm:$0xff]
  %v1126 = vld [vmem:[%s5 + $0x3c0] sm:$0xff]
  %v1127 = vld [vmem:[%s5 + $0x3c8] sm:$0xff]
  %1128 = vmatprep.subr.mxu0 %v1127
  %1129 = vmatpush1.msra.mxu0 %v1126
  %1130 = vmatprep.subr.mxu0 %v1125
  %1131 = vmatpush1.msra.mxu0 %v1124
  %1132 = vmatprep.subr.mxu0 %v1123
  %1133 = vmatpush1.msra.mxu0 %v1122
  %1134 = vmatprep.subr.mxu0 %v1121
  %1135 = vmatpush1.msra.mxu0 %v1120
  %1136 = vmatprep.subr.mxu0 %v1119
  %1137 = vmatpush1.msra.mxu0 %v1118
  %1138 = vmatprep.subr.mxu0 %v1117
  %1139 = vmatpush1.msra.mxu0 %v1116
  %1140 = vmatprep.subr.mxu0 %v1115
  %1141 = vmatpush1.msra.mxu0 %v1114
  %1142 = vmatprep.subr.mxu0 %v1113
  %1143 = vmatpush1.msra.mxu0 %v1112
  %1144 = vmatprep.subr.mxu0 %v1111
  %1145 = vmatpush1.msra.mxu0 %v1110
  %1146 = vmatprep.subr.mxu0 %v1109
  %1147 = vmatpush1.msra.mxu0 %v1108
  %1148 = vmatprep.subr.mxu0 %v1107
  %1149 = vmatpush1.msra.mxu0 %v1106
  %1150 = vmatprep.subr.mxu0 %v1105
  %1151 = vmatpush1.msra.mxu0 %v1104
  %1152 = vmatprep.subr.mxu0 %v1103
  %1153 = vmatpush1.msra.mxu0 %v1102
  %1154 = vmatprep.subr.mxu0 %v1101
  %1155 = vmatpush1.msra.mxu0 %v1100
  %1156 = vmatprep.subr.mxu0 %v1099
  %1157 = vmatpush1.msra.mxu0 %v1098
  %1158 = vmatprep.subr.mxu0 %v1097
  %1159 = vmatpush1.msra.mxu0 %v1096
  %1160 = vmatprep.subr.mxu0 0.0
  %1161 = vmatpush2.msra.mxu0 0.0
  %1162 = vmatprep.subr.mxu0 0.0
  %1163 = vmatpush2.msra.mxu0 0.0
  %1164 = vmatprep.subr.mxu0 0.0
  %1165 = vmatpush2.msra.mxu0 0.0
  %1166 = vmatprep.subr.mxu0 0.0
  %1167 = vmatpush2.msra.mxu0 0.0
  %1168 = vmatprep.subr.mxu0 0.0
  %1169 = vmatpush2.msra.mxu0 0.0
  %1170 = vmatprep.subr.mxu0 0.0
  %1171 = vmatpush2.msra.mxu0 0.0
  %1172 = vmatprep.subr.mxu0 0.0
  %1173 = vmatpush2.msra.mxu0 0.0
  %1174 = vmatprep.subr.mxu0 0.0
  %1175 = vmatpush2.msra.mxu0 0.0
  %1176 = vmatprep.subr.mxu0 0.0
  %1177 = vmatpush2.msra.mxu0 0.0
  %1178 = vmatprep.subr.mxu0 0.0
  %1179 = vmatpush2.msra.mxu0 0.0
  %1180 = vmatprep.subr.mxu0 0.0
  %1181 = vmatpush2.msra.mxu0 0.0
  %1182 = vmatprep.subr.mxu0 0.0
  %1183 = vmatpush2.msra.mxu0 0.0
  %1184 = vmatprep.subr.mxu0 0.0
  %1185 = vmatpush2.msra.mxu0 0.0
  %1186 = vmatprep.subr.mxu0 0.0
  %1187 = vmatpush2.msra.mxu0 0.0
  %1188 = vmatprep.subr.mxu0 0.0
  %1189 = vmatpush2.msra.mxu0 0.0
  %1190 = vmatprep.subr.mxu0 0.0
  %1191 = vmatpush2.msra.mxu0 0.0
  %1192 = vmatprep.mubr.f32.mxu0 0.0
  %1193 = vmatmul.mubr.f32.gmra.mxu0 %v1064
  %v1194 = vpop.f32.mrf.mxu0
  %v1195 = vadd.f32 0.0, %v1194
  %v1196 = vpop.f32.mrf.mxu0
  %v1197 = vadd.f32 0.0, %v1196
  %1198 = vmatprep.mubr.f32.mxu0 0.0
  %1199 = vmatmul.mubr.f32.gmra.mxu0 %v1065
  %v1200 = vpop.f32.mrf.mxu0
  %v1201 = vadd.f32 0.0, %v1200
  %v1202 = vpop.f32.mrf.mxu0
  %v1203 = vadd.f32 0.0, %v1202
  %1204 = vmatprep.mubr.f32.mxu0 0.0
  %1205 = vmatmul.mubr.f32.gmra.mxu0 %v1066
  %v1206 = vpop.f32.mrf.mxu0
  %v1207 = vadd.f32 0.0, %v1206
  %v1208 = vpop.f32.mrf.mxu0
  %v1209 = vadd.f32 0.0, %v1208
  %1210 = vmatprep.mubr.f32.mxu0 0.0
  %1211 = vmatmul.mubr.f32.gmra.mxu0 %v1067
  %v1212 = vpop.f32.mrf.mxu0
  %v1213 = vadd.f32 0.0, %v1212
  %v1214 = vpop.f32.mrf.mxu0
  %v1215 = vadd.f32 0.0, %v1214
  %1216 = vmatprep.mubr.f32.mxu0 0.0
  %1217 = vmatmul.mubr.f32.gmra.mxu0 %v1068
  %v1218 = vpop.f32.mrf.mxu0
  %v1219 = vadd.f32 0.0, %v1218
  %v1220 = vpop.f32.mrf.mxu0
  %v1221 = vadd.f32 0.0, %v1220
  %1222 = vmatprep.mubr.f32.mxu0 0.0
  %1223 = vmatmul.mubr.f32.gmra.mxu0 %v1069
  %v1224 = vpop.f32.mrf.mxu0
  %v1225 = vadd.f32 0.0, %v1224
  %v1226 = vpop.f32.mrf.mxu0
  %v1227 = vadd.f32 0.0, %v1226
  %1228 = vmatprep.mubr.f32.mxu0 0.0
  %1229 = vmatmul.mubr.f32.gmra.mxu0 %v1070
  %v1230 = vpop.f32.mrf.mxu0
  %v1231 = vadd.f32 0.0, %v1230
  %v1232 = vpop.f32.mrf.mxu0
  %v1233 = vadd.f32 0.0, %v1232
  %1234 = vmatprep.mubr.f32.mxu0 0.0
  %1235 = vmatmul.mubr.f32.gmra.mxu0 %v1071
  %v1236 = vpop.f32.mrf.mxu0
  %v1237 = vadd.f32 0.0, %v1236
  %v1238 = vpop.f32.mrf.mxu0
  %v1239 = vadd.f32 0.0, %v1238
  %1240 = vmatprep.mubr.f32.mxu0 0.0
  %1241 = vmatmul.mubr.f32.gmra.mxu0 %v1072
  %v1242 = vpop.f32.mrf.mxu0
  %v1243 = vadd.f32 0.0, %v1242
  %v1244 = vpop.f32.mrf.mxu0
  %v1245 = vadd.f32 0.0, %v1244
  %1246 = vmatprep.mubr.f32.mxu0 0.0
  %1247 = vmatmul.mubr.f32.gmra.mxu0 %v1073
  %v1248 = vpop.f32.mrf.mxu0
  %v1249 = vadd.f32 0.0, %v1248
  %v1250 = vpop.f32.mrf.mxu0
  %v1251 = vadd.f32 0.0, %v1250
  %1252 = vmatprep.mubr.f32.mxu0 0.0
  %1253 = vmatmul.mubr.f32.gmra.mxu0 %v1074
  %v1254 = vpop.f32.mrf.mxu0
  %v1255 = vadd.f32 0.0, %v1254
  %v1256 = vpop.f32.mrf.mxu0
  %v1257 = vadd.f32 0.0, %v1256
  %1258 = vmatprep.mubr.f32.mxu0 0.0
  %1259 = vmatmul.mubr.f32.gmra.mxu0 %v1075
  %v1260 = vpop.f32.mrf.mxu0
  %v1261 = vadd.f32 0.0, %v1260
  %v1262 = vpop.f32.mrf.mxu0
  %v1263 = vadd.f32 0.0, %v1262
  %1264 = vmatprep.mubr.f32.mxu0 0.0
  %1265 = vmatmul.mubr.f32.gmra.mxu0 %v1076
  %v1266 = vpop.f32.mrf.mxu0
  %v1267 = vadd.f32 0.0, %v1266
  %v1268 = vpop.f32.mrf.mxu0
  %v1269 = vadd.f32 0.0, %v1268
  %1270 = vmatprep.mubr.f32.mxu0 0.0
  %1271 = vmatmul.mubr.f32.gmra.mxu0 %v1077
  %v1272 = vpop.f32.mrf.mxu0
  %v1273 = vadd.f32 0.0, %v1272
  %v1274 = vpop.f32.mrf.mxu0
  %v1275 = vadd.f32 0.0, %v1274
  %1276 = vmatprep.mubr.f32.mxu0 0.0
  %1277 = vmatmul.mubr.f32.gmra.mxu0 %v1078
  %v1278 = vpop.f32.mrf.mxu0
  %v1279 = vadd.f32 0.0, %v1278
  %v1280 = vpop.f32.mrf.mxu0
  %v1281 = vadd.f32 0.0, %v1280
  %1282 = vmatprep.mubr.f32.mxu0 0.0
  %1283 = vmatmul.mubr.f32.gmra.mxu0 %v1079
  %v1284 = vpop.f32.mrf.mxu0
  %v1285 = vadd.f32 0.0, %v1284
  %v1286 = vpop.f32.mrf.mxu0
  %v1287 = vadd.f32 0.0, %v1286
  %1288 = vmatprep.mubr.f32.mxu0 0.0
  %1289 = vmatmul.mubr.f32.gmra.mxu0 %v1080
  %v1290 = vpop.f32.mrf.mxu0
  %v1291 = vadd.f32 0.0, %v1290
  %v1292 = vpop.f32.mrf.mxu0
  %v1293 = vadd.f32 0.0, %v1292
  %1294 = vmatprep.mubr.f32.mxu0 0.0
  %1295 = vmatmul.mubr.f32.gmra.mxu0 %v1081
  %v1296 = vpop.f32.mrf.mxu0
  %v1297 = vadd.f32 0.0, %v1296
  %v1298 = vpop.f32.mrf.mxu0
  %v1299 = vadd.f32 0.0, %v1298
  %1300 = vmatprep.mubr.f32.mxu0 0.0
  %1301 = vmatmul.mubr.f32.gmra.mxu0 %v1082
  %v1302 = vpop.f32.mrf.mxu0
  %v1303 = vadd.f32 0.0, %v1302
  %v1304 = vpop.f32.mrf.mxu0
  %v1305 = vadd.f32 0.0, %v1304
  %1306 = vmatprep.mubr.f32.mxu0 0.0
  %1307 = vmatmul.mubr.f32.gmra.mxu0 %v1083
  %v1308 = vpop.f32.mrf.mxu0
  %v1309 = vadd.f32 0.0, %v1308
  %v1310 = vpop.f32.mrf.mxu0
  %v1311 = vadd.f32 0.0, %v1310
  %1312 = vmatprep.mubr.f32.mxu0 0.0
  %1313 = vmatmul.mubr.f32.gmra.mxu0 %v1084
  %v1314 = vpop.f32.mrf.mxu0
  %v1315 = vadd.f32 0.0, %v1314
  %v1316 = vpop.f32.mrf.mxu0
  %v1317 = vadd.f32 0.0, %v1316
  %1318 = vmatprep.mubr.f32.mxu0 0.0
  %1319 = vmatmul.mubr.f32.gmra.mxu0 %v1085
  %v1320 = vpop.f32.mrf.mxu0
  %v1321 = vadd.f32 0.0, %v1320
  %v1322 = vpop.f32.mrf.mxu0
  %v1323 = vadd.f32 0.0, %v1322
  %1324 = vmatprep.mubr.f32.mxu0 0.0
  %1325 = vmatmul.mubr.f32.gmra.mxu0 %v1086
  %v1326 = vpop.f32.mrf.mxu0
  %v1327 = vadd.f32 0.0, %v1326
  %v1328 = vpop.f32.mrf.mxu0
  %v1329 = vadd.f32 0.0, %v1328
  %1330 = vmatprep.mubr.f32.mxu0 0.0
  %1331 = vmatmul.mubr.f32.gmra.mxu0 %v1087
  %v1332 = vpop.f32.mrf.mxu0
  %v1333 = vadd.f32 0.0, %v1332
  %v1334 = vpop.f32.mrf.mxu0
  %v1335 = vadd.f32 0.0, %v1334
  %1336 = vmatprep.mubr.f32.mxu0 0.0
  %1337 = vmatmul.mubr.f32.gmra.mxu0 %v1088
  %v1338 = vpop.f32.mrf.mxu0
  %v1339 = vadd.f32 0.0, %v1338
  %v1340 = vpop.f32.mrf.mxu0
  %v1341 = vadd.f32 0.0, %v1340
  %1342 = vmatprep.mubr.f32.mxu0 0.0
  %1343 = vmatmul.mubr.f32.gmra.mxu0 %v1089
  %v1344 = vpop.f32.mrf.mxu0
  %v1345 = vadd.f32 0.0, %v1344
  %v1346 = vpop.f32.mrf.mxu0
  %v1347 = vadd.f32 0.0, %v1346
  %1348 = vmatprep.mubr.f32.mxu0 0.0
  %1349 = vmatmul.mubr.f32.gmra.mxu0 %v1090
  %v1350 = vpop.f32.mrf.mxu0
  %v1351 = vadd.f32 0.0, %v1350
  %v1352 = vpop.f32.mrf.mxu0
  %v1353 = vadd.f32 0.0, %v1352
  %1354 = vmatprep.mubr.f32.mxu0 0.0
  %1355 = vmatmul.mubr.f32.gmra.mxu0 %v1091
  %v1356 = vpop.f32.mrf.mxu0
  %v1357 = vadd.f32 0.0, %v1356
  %v1358 = vpop.f32.mrf.mxu0
  %v1359 = vadd.f32 0.0, %v1358
  %1360 = vmatprep.mubr.f32.mxu0 0.0
  %1361 = vmatmul.mubr.f32.gmra.mxu0 %v1092
  %v1362 = vpop.f32.mrf.mxu0
  %v1363 = vadd.f32 0.0, %v1362
  %v1364 = vpop.f32.mrf.mxu0
  %v1365 = vadd.f32 0.0, %v1364
  %1366 = vmatprep.mubr.f32.mxu0 0.0
  %1367 = vmatmul.mubr.f32.gmra.mxu0 %v1093
  %v1368 = vpop.f32.mrf.mxu0
  %v1369 = vadd.f32 0.0, %v1368
  %v1370 = vpop.f32.mrf.mxu0
  %v1371 = vadd.f32 0.0, %v1370
  %1372 = vmatprep.mubr.f32.mxu0 0.0
  %1373 = vmatmul.mubr.f32.gmra.mxu0 %v1094
  %v1374 = vpop.f32.mrf.mxu0
  %v1375 = vadd.f32 0.0, %v1374
  %v1376 = vpop.f32.mrf.mxu0
  %v1377 = vadd.f32 0.0, %v1376
  %1378 = vmatprep.mubr.f32.mxu0 0.0
  %1379 = vmatmul.mubr.f32.gmra.mxu0 %v1095
  %v1380 = vpop.f32.mrf.mxu0
  %v1381 = vadd.f32 0.0, %v1380
  %v1382 = vpop.f32.mrf.mxu0
  %v1383 = vadd.f32 0.0, %v1382
  %1384 = vdwg.mxu0
  %v1385 = vmax.f32 %v1195, %v1201
  %v1386 = vmax.f32 %v1385, %v1207
  %v1387 = vmax.f32 %v1386, %v1213
  %v1388 = vmax.f32 %v1387, %v1219
  %v1389 = vmax.f32 %v1388, %v1225
  %v1390 = vmax.f32 %v1389, %v1231
  %v1391 = vmax.f32 %v1390, %v1237
  %v1392 = vmax.f32 %v1391, %v1243
  %v1393 = vmax.f32 %v1392, %v1249
  %v1394 = vmax.f32 %v1393, %v1255
  %v1395 = vmax.f32 %v1394, %v1261
  %v1396 = vmax.f32 %v1395, %v1267
  %v1397 = vmax.f32 %v1396, %v1273
  %v1398 = vmax.f32 %v1397, %v1279
  %v1399 = vmax.f32 %v1398, %v1285
  %v1400 = vrot.slane %v1399, 4
  %v1401 = vmax.f32 %v1399, %v1400
  %v1402 = vrot.slane %v1401, 2
  %v1403 = vmax.f32 %v1401, %v1402
  %v1404 = vrot.slane %v1403, 1
  %v1405 = vmax.f32 %v1403, %v1404
  %v1406 = vmax.f32 %v1197, %v1203
  %v1407 = vmax.f32 %v1406, %v1209
  %v1408 = vmax.f32 %v1407, %v1215
  %v1409 = vmax.f32 %v1408, %v1221
  %v1410 = vmax.f32 %v1409, %v1227
  %v1411 = vmax.f32 %v1410, %v1233
  %v1412 = vmax.f32 %v1411, %v1239
  %v1413 = vmax.f32 %v1412, %v1245
  %v1414 = vmax.f32 %v1413, %v1251
  %v1415 = vmax.f32 %v1414, %v1257
  %v1416 = vmax.f32 %v1415, %v1263
  %v1417 = vmax.f32 %v1416, %v1269
  %v1418 = vmax.f32 %v1417, %v1275
  %v1419 = vmax.f32 %v1418, %v1281
  %v1420 = vmax.f32 %v1419, %v1287
  %v1421 = vrot.slane %v1420, 4
  %v1422 = vmax.f32 %v1420, %v1421
  %v1423 = vrot.slane %v1422, 2
  %v1424 = vmax.f32 %v1422, %v1423
  %v1425 = vrot.slane %v1424, 1
  %v1426 = vmax.f32 %v1424, %v1425
  %v1427 = vmax.f32 %v1291, %v1297
  %v1428 = vmax.f32 %v1427, %v1303
  %v1429 = vmax.f32 %v1428, %v1309
  %v1430 = vmax.f32 %v1429, %v1315
  %v1431 = vmax.f32 %v1430, %v1321
  %v1432 = vmax.f32 %v1431, %v1327
  %v1433 = vmax.f32 %v1432, %v1333
  %v1434 = vmax.f32 %v1433, %v1339
  %v1435 = vmax.f32 %v1434, %v1345
  %v1436 = vmax.f32 %v1435, %v1351
  %v1437 = vmax.f32 %v1436, %v1357
  %v1438 = vmax.f32 %v1437, %v1363
  %v1439 = vmax.f32 %v1438, %v1369
  %v1440 = vmax.f32 %v1439, %v1375
  %v1441 = vmax.f32 %v1440, %v1381
  %v1442 = vrot.slane %v1441, 4
  %v1443 = vmax.f32 %v1441, %v1442
  %v1444 = vrot.slane %v1443, 2
  %v1445 = vmax.f32 %v1443, %v1444
  %v1446 = vrot.slane %v1445, 1
  %v1447 = vmax.f32 %v1445, %v1446
  %v1448 = vmax.f32 %v1293, %v1299
  %v1449 = vmax.f32 %v1448, %v1305
  %v1450 = vmax.f32 %v1449, %v1311
  %v1451 = vmax.f32 %v1450, %v1317
  %v1452 = vmax.f32 %v1451, %v1323
  %v1453 = vmax.f32 %v1452, %v1329
  %v1454 = vmax.f32 %v1453, %v1335
  %v1455 = vmax.f32 %v1454, %v1341
  %v1456 = vmax.f32 %v1455, %v1347
  %v1457 = vmax.f32 %v1456, %v1353
  %v1458 = vmax.f32 %v1457, %v1359
  %v1459 = vmax.f32 %v1458, %v1365
  %v1460 = vmax.f32 %v1459, %v1371
  %v1461 = vmax.f32 %v1460, %v1377
  %v1462 = vmax.f32 %v1461, %v1383
  %v1463 = vrot.slane %v1462, 4
  %v1464 = vmax.f32 %v1462, %v1463
  %v1465 = vrot.slane %v1464, 2
  %v1466 = vmax.f32 %v1464, %v1465
  %v1467 = vrot.slane %v1466, 1
  %v1468 = vmax.f32 %v1466, %v1467
  %v1469 = vld [vmem:[%s6] sm:$0x3]
  %v1471 = vlaneseq
  %v1472 = vshrl.u32 %v1471, 7
  %v1473 = vsub.s32 0, %v1472
  %v1474 = vrot.slane %v1469, %v1473
  %v1475 = vlaneseq
  %v1476 = vshrl.u32 %v1475, 7
  %v1477 = vsub.s32 1, %v1476
  %v1478 = vrot.slane %v1469, %v1477
  %v1481 = vadd.f32 %v1405, %v1474
  %v1482 = vadd.f32 %v1426, %v1478
  %v1483 = vadd.f32 %v1447, %v1474
  %v1484 = vadd.f32 %v1468, %v1478
  %v1485 = vmax.f32 %v1481, 0.0
  %v1486 = vmax.f32 %v1482, 0.0
  %v1487 = vmax.f32 %v1483, 0.0
  %v1488 = vmax.f32 %v1484, 0.0
  %v1489 = vld [vmem:[%s8] sm:$0xff]
  %v1490 = vld [vmem:[%s8 + $0x8] sm:$0xff]
  %v1491 = vld [vmem:[%s8 + $0x10] sm:$0xff]
  %v1492 = vld [vmem:[%s8 + $0x18] sm:$0xff]
  %v1493 = vld [vmem:[%s8 + $0x20] sm:$0xff]
  %v1494 = vld [vmem:[%s8 + $0x28] sm:$0xff]
  %v1495 = vld [vmem:[%s8 + $0x30] sm:$0xff]
  %v1496 = vld [vmem:[%s8 + $0x38] sm:$0xff]
  %v1497 = vld [vmem:[%s8 + $0x40] sm:$0xff]
  %v1498 = vld [vmem:[%s8 + $0x48] sm:$0xff]
  %v1499 = vld [vmem:[%s8 + $0x50] sm:$0xff]
  %v1500 = vld [vmem:[%s8 + $0x58] sm:$0xff]
  %v1501 = vld [vmem:[%s8 + $0x60] sm:$0xff]
  %v1502 = vld [vmem:[%s8 + $0x68] sm:$0xff]
  %v1503 = vld [vmem:[%s8 + $0x70] sm:$0xff]
  %v1504 = vld [vmem:[%s8 + $0x78] sm:$0xff]
  %v1505 = vld [vmem:[%s8 + $0x80] sm:$0xff]
  %v1506 = vld [vmem:[%s8 + $0x88] sm:$0xff]
  %v1507 = vld [vmem:[%s8 + $0x90] sm:$0xff]
  %v1508 = vld [vmem:[%s8 + $0x98] sm:$0xff]
  %v1509 = vld [vmem:[%s8 + $0xa0] sm:$0xff]
  %v1510 = vld [vmem:[%s8 + $0xa8] sm:$0xff]
  %v1511 = vld [vmem:[%s8 + $0xb0] sm:$0xff]
  %v1512 = vld [vmem:[%s8 + $0xb8] sm:$0xff]
  %v1513 = vld [vmem:[%s8 + $0xc0] sm:$0xff]
  %v1514 = vld [vmem:[%s8 + $0xc8] sm:$0xff]
  %v1515 = vld [vmem:[%s8 + $0xd0] sm:$0xff]
  %v1516 = vld [vmem:[%s8 + $0xd8] sm:$0xff]
  %v1517 = vld [vmem:[%s8 + $0xe0] sm:$0xff]
  %v1518 = vld [vmem:[%s8 + $0xe8] sm:$0xff]
  %v1519 = vld [vmem:[%s8 + $0xf0] sm:$0xff]
  %v1520 = vld [vmem:[%s8 + $0xf8] sm:$0xff]
  %v1521 = vld [vmem:[%s5 + $0x10] sm:$0xff]
  %v1522 = vld [vmem:[%s5 + $0x18] sm:$0xff]
  %v1523 = vld [vmem:[%s5 + $0x50] sm:$0xff]
  %v1524 = vld [vmem:[%s5 + $0x58] sm:$0xff]
  %v1525 = vld [vmem:[%s5 + $0x90] sm:$0xff]
  %v1526 = vld [vmem:[%s5 + $0x98] sm:$0xff]
  %v1527 = vld [vmem:[%s5 + $0xd0] sm:$0xff]
  %v1528 = vld [vmem:[%s5 + $0xd8] sm:$0xff]
  %v1529 = vld [vmem:[%s5 + $0x110] sm:$0xff]
  %v1530 = vld [vmem:[%s5 + $0x118] sm:$0xff]
  %v1531 = vld [vmem:[%s5 + $0x150] sm:$0xff]
  %v1532 = vld [vmem:[%s5 + $0x158] sm:$0xff]
  %v1533 = vld [vmem:[%s5 + $0x190] sm:$0xff]
  %v1534 = vld [vmem:[%s5 + $0x198] sm:$0xff]
  %v1535 = vld [vmem:[%s5 + $0x1d0] sm:$0xff]
  %v1536 = vld [vmem:[%s5 + $0x1d8] sm:$0xff]
  %v1537 = vld [vmem:[%s5 + $0x210] sm:$0xff]
  %v1538 = vld [vmem:[%s5 + $0x218] sm:$0xff]
  %v1539 = vld [vmem:[%s5 + $0x250] sm:$0xff]
  %v1540 = vld [vmem:[%s5 + $0x258] sm:$0xff]
  %v1541 = vld [vmem:[%s5 + $0x290] sm:$0xff]
  %v1542 = vld [vmem:[%s5 + $0x298] sm:$0xff]
  %v1543 = vld [vmem:[%s5 + $0x2d0] sm:$0xff]
  %v1544 = vld [vmem:[%s5 + $0x2d8] sm:$0xff]
  %v1545 = vld [vmem:[%s5 + $0x310] sm:$0xff]
  %v1546 = vld [vmem:[%s5 + $0x318] sm:$0xff]
  %v1547 = vld [vmem:[%s5 + $0x350] sm:$0xff]
  %v1548 = vld [vmem:[%s5 + $0x358] sm:$0xff]
  %v1549 = vld [vmem:[%s5 + $0x390] sm:$0xff]
  %v1550 = vld [vmem:[%s5 + $0x398] sm:$0xff]
  %v1551 = vld [vmem:[%s5 + $0x3d0] sm:$0xff]
  %v1552 = vld [vmem:[%s5 + $0x3d8] sm:$0xff]
  %1553 = vmatprep.subr.mxu0 %v1552
  %1554 = vmatpush1.msra.mxu0 %v1551
  %1555 = vmatprep.subr.mxu0 %v1550
  %1556 = vmatpush1.msra.mxu0 %v1549
  %1557 = vmatprep.subr.mxu0 %v1548
  %1558 = vmatpush1.msra.mxu0 %v1547
  %1559 = vmatprep.subr.mxu0 %v1546
  %1560 = vmatpush1.msra.mxu0 %v1545
  %1561 = vmatprep.subr.mxu0 %v1544
  %1562 = vmatpush1.msra.mxu0 %v1543
  %1563 = vmatprep.subr.mxu0 %v1542
  %1564 = vmatpush1.msra.mxu0 %v1541
  %1565 = vmatprep.subr.mxu0 %v1540
  %1566 = vmatpush1.msra.mxu0 %v1539
  %1567 = vmatprep.subr.mxu0 %v1538
  %1568 = vmatpush1.msra.mxu0 %v1537
  %1569 = vmatprep.subr.mxu0 %v1536
  %1570 = vmatpush1.msra.mxu0 %v1535
  %1571 = vmatprep.subr.mxu0 %v1534
  %1572 = vmatpush1.msra.mxu0 %v1533
  %1573 = vmatprep.subr.mxu0 %v1532
  %1574 = vmatpush1.msra.mxu0 %v1531
  %1575 = vmatprep.subr.mxu0 %v1530
  %1576 = vmatpush1.msra.mxu0 %v1529
  %1577 = vmatprep.subr.mxu0 %v1528
  %1578 = vmatpush1.msra.mxu0 %v1527
  %1579 = vmatprep.subr.mxu0 %v1526
  %1580 = vmatpush1.msra.mxu0 %v1525
  %1581 = vmatprep.subr.mxu0 %v1524
  %1582 = vmatpush1.msra.mxu0 %v1523
  %1583 = vmatprep.subr.mxu0 %v1522
  %1584 = vmatpush1.msra.mxu0 %v1521
  %1585 = vmatprep.subr.mxu0 0.0
  %1586 = vmatpush2.msra.mxu0 0.0
  %1587 = vmatprep.subr.mxu0 0.0
  %1588 = vmatpush2.msra.mxu0 0.0
  %1589 = vmatprep.subr.mxu0 0.0
  %1590 = vmatpush2.msra.mxu0 0.0
  %1591 = vmatprep.subr.mxu0 0.0
  %1592 = vmatpush2.msra.mxu0 0.0
  %1593 = vmatprep.subr.mxu0 0.0
  %1594 = vmatpush2.msra.mxu0 0.0
  %1595 = vmatprep.subr.mxu0 0.0
  %1596 = vmatpush2.msra.mxu0 0.0
  %1597 = vmatprep.subr.mxu0 0.0
  %1598 = vmatpush2.msra.mxu0 0.0
  %1599 = vmatprep.subr.mxu0 0.0
  %1600 = vmatpush2.msra.mxu0 0.0
  %1601 = vmatprep.subr.mxu0 0.0
  %1602 = vmatpush2.msra.mxu0 0.0
  %1603 = vmatprep.subr.mxu0 0.0
  %1604 = vmatpush2.msra.mxu0 0.0
  %1605 = vmatprep.subr.mxu0 0.0
  %1606 = vmatpush2.msra.mxu0 0.0
  %1607 = vmatprep.subr.mxu0 0.0
  %1608 = vmatpush2.msra.mxu0 0.0
  %1609 = vmatprep.subr.mxu0 0.0
  %1610 = vmatpush2.msra.mxu0 0.0
  %1611 = vmatprep.subr.mxu0 0.0
  %1612 = vmatpush2.msra.mxu0 0.0
  %1613 = vmatprep.subr.mxu0 0.0
  %1614 = vmatpush2.msra.mxu0 0.0
  %1615 = vmatprep.subr.mxu0 0.0
  %1616 = vmatpush2.msra.mxu0 0.0
  %1617 = vmatprep.mubr.f32.mxu0 0.0
  %1618 = vmatmul.mubr.f32.gmra.mxu0 %v1064
  %v1619 = vpop.f32.mrf.mxu0
  %v1620 = vadd.f32 0.0, %v1619
  %v1621 = vpop.f32.mrf.mxu0
  %v1622 = vadd.f32 0.0, %v1621
  %1623 = vmatprep.mubr.f32.mxu0 0.0
  %1624 = vmatmul.mubr.f32.gmra.mxu0 %v1065
  %v1625 = vpop.f32.mrf.mxu0
  %v1626 = vadd.f32 0.0, %v1625
  %v1627 = vpop.f32.mrf.mxu0
  %v1628 = vadd.f32 0.0, %v1627
  %1629 = vmatprep.mubr.f32.mxu0 0.0
  %1630 = vmatmul.mubr.f32.gmra.mxu0 %v1066
  %v1631 = vpop.f32.mrf.mxu0
  %v1632 = vadd.f32 0.0, %v1631
  %v1633 = vpop.f32.mrf.mxu0
  %v1634 = vadd.f32 0.0, %v1633
  %1635 = vmatprep.mubr.f32.mxu0 0.0
  %1636 = vmatmul.mubr.f32.gmra.mxu0 %v1067
  %v1637 = vpop.f32.mrf.mxu0
  %v1638 = vadd.f32 0.0, %v1637
  %v1639 = vpop.f32.mrf.mxu0
  %v1640 = vadd.f32 0.0, %v1639
  %1641 = vmatprep.mubr.f32.mxu0 0.0
  %1642 = vmatmul.mubr.f32.gmra.mxu0 %v1068
  %v1643 = vpop.f32.mrf.mxu0
  %v1644 = vadd.f32 0.0, %v1643
  %v1645 = vpop.f32.mrf.mxu0
  %v1646 = vadd.f32 0.0, %v1645
  %1647 = vmatprep.mubr.f32.mxu0 0.0
  %1648 = vmatmul.mubr.f32.gmra.mxu0 %v1069
  %v1649 = vpop.f32.mrf.mxu0
  %v1650 = vadd.f32 0.0, %v1649
  %v1651 = vpop.f32.mrf.mxu0
  %v1652 = vadd.f32 0.0, %v1651
  %1653 = vmatprep.mubr.f32.mxu0 0.0
  %1654 = vmatmul.mubr.f32.gmra.mxu0 %v1070
  %v1655 = vpop.f32.mrf.mxu0
  %v1656 = vadd.f32 0.0, %v1655
  %v1657 = vpop.f32.mrf.mxu0
  %v1658 = vadd.f32 0.0, %v1657
  %1659 = vmatprep.mubr.f32.mxu0 0.0
  %1660 = vmatmul.mubr.f32.gmra.mxu0 %v1071
  %v1661 = vpop.f32.mrf.mxu0
  %v1662 = vadd.f32 0.0, %v1661
  %v1663 = vpop.f32.mrf.mxu0
  %v1664 = vadd.f32 0.0, %v1663
  %1665 = vmatprep.mubr.f32.mxu0 0.0
  %1666 = vmatmul.mubr.f32.gmra.mxu0 %v1072
  %v1667 = vpop.f32.mrf.mxu0
  %v1668 = vadd.f32 0.0, %v1667
  %v1669 = vpop.f32.mrf.mxu0
  %v1670 = vadd.f32 0.0, %v1669
  %1671 = vmatprep.mubr.f32.mxu0 0.0
  %1672 = vmatmul.mubr.f32.gmra.mxu0 %v1073
  %v1673 = vpop.f32.mrf.mxu0
  %v1674 = vadd.f32 0.0, %v1673
  %v1675 = vpop.f32.mrf.mxu0
  %v1676 = vadd.f32 0.0, %v1675
  %1677 = vmatprep.mubr.f32.mxu0 0.0
  %1678 = vmatmul.mubr.f32.gmra.mxu0 %v1074
  %v1679 = vpop.f32.mrf.mxu0
  %v1680 = vadd.f32 0.0, %v1679
  %v1681 = vpop.f32.mrf.mxu0
  %v1682 = vadd.f32 0.0, %v1681
  %1683 = vmatprep.mubr.f32.mxu0 0.0
  %1684 = vmatmul.mubr.f32.gmra.mxu0 %v1075
  %v1685 = vpop.f32.mrf.mxu0
  %v1686 = vadd.f32 0.0, %v1685
  %v1687 = vpop.f32.mrf.mxu0
  %v1688 = vadd.f32 0.0, %v1687
  %1689 = vmatprep.mubr.f32.mxu0 0.0
  %1690 = vmatmul.mubr.f32.gmra.mxu0 %v1076
  %v1691 = vpop.f32.mrf.mxu0
  %v1692 = vadd.f32 0.0, %v1691
  %v1693 = vpop.f32.mrf.mxu0
  %v1694 = vadd.f32 0.0, %v1693
  %1695 = vmatprep.mubr.f32.mxu0 0.0
  %1696 = vmatmul.mubr.f32.gmra.mxu0 %v1077
  %v1697 = vpop.f32.mrf.mxu0
  %v1698 = vadd.f32 0.0, %v1697
  %v1699 = vpop.f32.mrf.mxu0
  %v1700 = vadd.f32 0.0, %v1699
  %1701 = vmatprep.mubr.f32.mxu0 0.0
  %1702 = vmatmul.mubr.f32.gmra.mxu0 %v1078
  %v1703 = vpop.f32.mrf.mxu0
  %v1704 = vadd.f32 0.0, %v1703
  %v1705 = vpop.f32.mrf.mxu0
  %v1706 = vadd.f32 0.0, %v1705
  %1707 = vmatprep.mubr.f32.mxu0 0.0
  %1708 = vmatmul.mubr.f32.gmra.mxu0 %v1079
  %v1709 = vpop.f32.mrf.mxu0
  %v1710 = vadd.f32 0.0, %v1709
  %v1711 = vpop.f32.mrf.mxu0
  %v1712 = vadd.f32 0.0, %v1711
  %1713 = vmatprep.mubr.f32.mxu0 0.0
  %1714 = vmatmul.mubr.f32.gmra.mxu0 %v1080
  %v1715 = vpop.f32.mrf.mxu0
  %v1716 = vadd.f32 0.0, %v1715
  %v1717 = vpop.f32.mrf.mxu0
  %v1718 = vadd.f32 0.0, %v1717
  %1719 = vmatprep.mubr.f32.mxu0 0.0
  %1720 = vmatmul.mubr.f32.gmra.mxu0 %v1081
  %v1721 = vpop.f32.mrf.mxu0
  %v1722 = vadd.f32 0.0, %v1721
  %v1723 = vpop.f32.mrf.mxu0
  %v1724 = vadd.f32 0.0, %v1723
  %1725 = vmatprep.mubr.f32.mxu0 0.0
  %1726 = vmatmul.mubr.f32.gmra.mxu0 %v1082
  %v1727 = vpop.f32.mrf.mxu0
  %v1728 = vadd.f32 0.0, %v1727
  %v1729 = vpop.f32.mrf.mxu0
  %v1730 = vadd.f32 0.0, %v1729
  %1731 = vmatprep.mubr.f32.mxu0 0.0
  %1732 = vmatmul.mubr.f32.gmra.mxu0 %v1083
  %v1733 = vpop.f32.mrf.mxu0
  %v1734 = vadd.f32 0.0, %v1733
  %v1735 = vpop.f32.mrf.mxu0
  %v1736 = vadd.f32 0.0, %v1735
  %1737 = vmatprep.mubr.f32.mxu0 0.0
  %1738 = vmatmul.mubr.f32.gmra.mxu0 %v1084
  %v1739 = vpop.f32.mrf.mxu0
  %v1740 = vadd.f32 0.0, %v1739
  %v1741 = vpop.f32.mrf.mxu0
  %v1742 = vadd.f32 0.0, %v1741
  %1743 = vmatprep.mubr.f32.mxu0 0.0
  %1744 = vmatmul.mubr.f32.gmra.mxu0 %v1085
  %v1745 = vpop.f32.mrf.mxu0
  %v1746 = vadd.f32 0.0, %v1745
  %v1747 = vpop.f32.mrf.mxu0
  %v1748 = vadd.f32 0.0, %v1747
  %1749 = vmatprep.mubr.f32.mxu0 0.0
  %1750 = vmatmul.mubr.f32.gmra.mxu0 %v1086
  %v1751 = vpop.f32.mrf.mxu0
  %v1752 = vadd.f32 0.0, %v1751
  %v1753 = vpop.f32.mrf.mxu0
  %v1754 = vadd.f32 0.0, %v1753
  %1755 = vmatprep.mubr.f32.mxu0 0.0
  %1756 = vmatmul.mubr.f32.gmra.mxu0 %v1087
  %v1757 = vpop.f32.mrf.mxu0
  %v1758 = vadd.f32 0.0, %v1757
  %v1759 = vpop.f32.mrf.mxu0
  %v1760 = vadd.f32 0.0, %v1759
  %1761 = vmatprep.mubr.f32.mxu0 0.0
  %1762 = vmatmul.mubr.f32.gmra.mxu0 %v1088
  %v1763 = vpop.f32.mrf.mxu0
  %v1764 = vadd.f32 0.0, %v1763
  %v1765 = vpop.f32.mrf.mxu0
  %v1766 = vadd.f32 0.0, %v1765
  %1767 = vmatprep.mubr.f32.mxu0 0.0
  %1768 = vmatmul.mubr.f32.gmra.mxu0 %v1089
  %v1769 = vpop.f32.mrf.mxu0
  %v1770 = vadd.f32 0.0, %v1769
  %v1771 = vpop.f32.mrf.mxu0
  %v1772 = vadd.f32 0.0, %v1771
  %1773 = vmatprep.mubr.f32.mxu0 0.0
  %1774 = vmatmul.mubr.f32.gmra.mxu0 %v1090
  %v1775 = vpop.f32.mrf.mxu0
  %v1776 = vadd.f32 0.0, %v1775
  %v1777 = vpop.f32.mrf.mxu0
  %v1778 = vadd.f32 0.0, %v1777
  %1779 = vmatprep.mubr.f32.mxu0 0.0
  %1780 = vmatmul.mubr.f32.gmra.mxu0 %v1091
  %v1781 = vpop.f32.mrf.mxu0
  %v1782 = vadd.f32 0.0, %v1781
  %v1783 = vpop.f32.mrf.mxu0
  %v1784 = vadd.f32 0.0, %v1783
  %1785 = vmatprep.mubr.f32.mxu0 0.0
  %1786 = vmatmul.mubr.f32.gmra.mxu0 %v1092
  %v1787 = vpop.f32.mrf.mxu0
  %v1788 = vadd.f32 0.0, %v1787
  %v1789 = vpop.f32.mrf.mxu0
  %v1790 = vadd.f32 0.0, %v1789
  %1791 = vmatprep.mubr.f32.mxu0 0.0
  %1792 = vmatmul.mubr.f32.gmra.mxu0 %v1093
  %v1793 = vpop.f32.mrf.mxu0
  %v1794 = vadd.f32 0.0, %v1793
  %v1795 = vpop.f32.mrf.mxu0
  %v1796 = vadd.f32 0.0, %v1795
  %1797 = vmatprep.mubr.f32.mxu0 0.0
  %1798 = vmatmul.mubr.f32.gmra.mxu0 %v1094
  %v1799 = vpop.f32.mrf.mxu0
  %v1800 = vadd.f32 0.0, %v1799
  %v1801 = vpop.f32.mrf.mxu0
  %v1802 = vadd.f32 0.0, %v1801
  %1803 = vmatprep.mubr.f32.mxu0 0.0
  %1804 = vmatmul.mubr.f32.gmra.mxu0 %v1095
  %v1805 = vpop.f32.mrf.mxu0
  %v1806 = vadd.f32 0.0, %v1805
  %v1807 = vpop.f32.mrf.mxu0
  %v1808 = vadd.f32 0.0, %v1807
  %1809 = vdwg.mxu0
  %v1810 = vmax.f32 %v1620, %v1626
  %v1811 = vmax.f32 %v1810, %v1632
  %v1812 = vmax.f32 %v1811, %v1638
  %v1813 = vmax.f32 %v1812, %v1644
  %v1814 = vmax.f32 %v1813, %v1650
  %v1815 = vmax.f32 %v1814, %v1656
  %v1816 = vmax.f32 %v1815, %v1662
  %v1817 = vmax.f32 %v1816, %v1668
  %v1818 = vmax.f32 %v1817, %v1674
  %v1819 = vmax.f32 %v1818, %v1680
  %v1820 = vmax.f32 %v1819, %v1686
  %v1821 = vmax.f32 %v1820, %v1692
  %v1822 = vmax.f32 %v1821, %v1698
  %v1823 = vmax.f32 %v1822, %v1704
  %v1824 = vmax.f32 %v1823, %v1710
  %v1825 = vrot.slane %v1824, 4
  %v1826 = vmax.f32 %v1824, %v1825
  %v1827 = vrot.slane %v1826, 2
  %v1828 = vmax.f32 %v1826, %v1827
  %v1829 = vrot.slane %v1828, 1
  %v1830 = vmax.f32 %v1828, %v1829
  %v1831 = vmax.f32 %v1622, %v1628
  %v1832 = vmax.f32 %v1831, %v1634
  %v1833 = vmax.f32 %v1832, %v1640
  %v1834 = vmax.f32 %v1833, %v1646
  %v1835 = vmax.f32 %v1834, %v1652
  %v1836 = vmax.f32 %v1835, %v1658
  %v1837 = vmax.f32 %v1836, %v1664
  %v1838 = vmax.f32 %v1837, %v1670
  %v1839 = vmax.f32 %v1838, %v1676
  %v1840 = vmax.f32 %v1839, %v1682
  %v1841 = vmax.f32 %v1840, %v1688
  %v1842 = vmax.f32 %v1841, %v1694
  %v1843 = vmax.f32 %v1842, %v1700
  %v1844 = vmax.f32 %v1843, %v1706
  %v1845 = vmax.f32 %v1844, %v1712
  %v1846 = vrot.slane %v1845, 4
  %v1847 = vmax.f32 %v1845, %v1846
  %v1848 = vrot.slane %v1847, 2
  %v1849 = vmax.f32 %v1847, %v1848
  %v1850 = vrot.slane %v1849, 1
  %v1851 = vmax.f32 %v1849, %v1850
  %v1852 = vmax.f32 %v1716, %v1722
  %v1853 = vmax.f32 %v1852, %v1728
  %v1854 = vmax.f32 %v1853, %v1734
  %v1855 = vmax.f32 %v1854, %v1740
  %v1856 = vmax.f32 %v1855, %v1746
  %v1857 = vmax.f32 %v1856, %v1752
  %v1858 = vmax.f32 %v1857, %v1758
  %v1859 = vmax.f32 %v1858, %v1764
  %v1860 = vmax.f32 %v1859, %v1770
  %v1861 = vmax.f32 %v1860, %v1776
  %v1862 = vmax.f32 %v1861, %v1782
  %v1863 = vmax.f32 %v1862, %v1788
  %v1864 = vmax.f32 %v1863, %v1794
  %v1865 = vmax.f32 %v1864, %v1800
  %v1866 = vmax.f32 %v1865, %v1806
  %v1867 = vrot.slane %v1866, 4
  %v1868 = vmax.f32 %v1866, %v1867
  %v1869 = vrot.slane %v1868, 2
  %v1870 = vmax.f32 %v1868, %v1869
  %v1871 = vrot.slane %v1870, 1
  %v1872 = vmax.f32 %v1870, %v1871
  %v1873 = vmax.f32 %v1718, %v1724
  %v1874 = vmax.f32 %v1873, %v1730
  %v1875 = vmax.f32 %v1874, %v1736
  %v1876 = vmax.f32 %v1875, %v1742
  %v1877 = vmax.f32 %v1876, %v1748
  %v1878 = vmax.f32 %v1877, %v1754
  %v1879 = vmax.f32 %v1878, %v1760
  %v1880 = vmax.f32 %v1879, %v1766
  %v1881 = vmax.f32 %v1880, %v1772
  %v1882 = vmax.f32 %v1881, %v1778
  %v1883 = vmax.f32 %v1882, %v1784
  %v1884 = vmax.f32 %v1883, %v1790
  %v1885 = vmax.f32 %v1884, %v1796
  %v1886 = vmax.f32 %v1885, %v1802
  %v1887 = vmax.f32 %v1886, %v1808
  %v1888 = vrot.slane %v1887, 4
  %v1889 = vmax.f32 %v1887, %v1888
  %v1890 = vrot.slane %v1889, 2
  %v1891 = vmax.f32 %v1889, %v1890
  %v1892 = vrot.slane %v1891, 1
  %v1893 = vmax.f32 %v1891, %v1892
  %v1894 = vld [vmem:[%s6 + $0x2] sm:$0x3]
  %v1896 = vlaneseq
  %v1897 = vshrl.u32 %v1896, 7
  %v1898 = vsub.s32 0, %v1897
  %v1899 = vrot.slane %v1894, %v1898
  %v1900 = vlaneseq
  %v1901 = vshrl.u32 %v1900, 7
  %v1902 = vsub.s32 1, %v1901
  %v1903 = vrot.slane %v1894, %v1902
  %v1906 = vadd.f32 %v1830, %v1899
  %v1907 = vadd.f32 %v1851, %v1903
  %v1908 = vadd.f32 %v1872, %v1899
  %v1909 = vadd.f32 %v1893, %v1903
  %v1910 = vmax.f32 %v1906, 0.0
  %v1911 = vmax.f32 %v1907, 0.0
  %v1912 = vmax.f32 %v1908, 0.0
  %v1913 = vmax.f32 %v1909, 0.0
  %v1914 = vld [vmem:[%s8 + $0x100] sm:$0xff]
  %v1915 = vld [vmem:[%s8 + $0x108] sm:$0xff]
  %v1916 = vld [vmem:[%s8 + $0x110] sm:$0xff]
  %v1917 = vld [vmem:[%s8 + $0x118] sm:$0xff]
  %v1918 = vld [vmem:[%s8 + $0x120] sm:$0xff]
  %v1919 = vld [vmem:[%s8 + $0x128] sm:$0xff]
  %v1920 = vld [vmem:[%s8 + $0x130] sm:$0xff]
  %v1921 = vld [vmem:[%s8 + $0x138] sm:$0xff]
  %v1922 = vld [vmem:[%s8 + $0x140] sm:$0xff]
  %v1923 = vld [vmem:[%s8 + $0x148] sm:$0xff]
  %v1924 = vld [vmem:[%s8 + $0x150] sm:$0xff]
  %v1925 = vld [vmem:[%s8 + $0x158] sm:$0xff]
  %v1926 = vld [vmem:[%s8 + $0x160] sm:$0xff]
  %v1927 = vld [vmem:[%s8 + $0x168] sm:$0xff]
  %v1928 = vld [vmem:[%s8 + $0x170] sm:$0xff]
  %v1929 = vld [vmem:[%s8 + $0x178] sm:$0xff]
  %v1930 = vld [vmem:[%s8 + $0x180] sm:$0xff]
  %v1931 = vld [vmem:[%s8 + $0x188] sm:$0xff]
  %v1932 = vld [vmem:[%s8 + $0x190] sm:$0xff]
  %v1933 = vld [vmem:[%s8 + $0x198] sm:$0xff]
  %v1934 = vld [vmem:[%s8 + $0x1a0] sm:$0xff]
  %v1935 = vld [vmem:[%s8 + $0x1a8] sm:$0xff]
  %v1936 = vld [vmem:[%s8 + $0x1b0] sm:$0xff]
  %v1937 = vld [vmem:[%s8 + $0x1b8] sm:$0xff]
  %v1938 = vld [vmem:[%s8 + $0x1c0] sm:$0xff]
  %v1939 = vld [vmem:[%s8 + $0x1c8] sm:$0xff]
  %v1940 = vld [vmem:[%s8 + $0x1d0] sm:$0xff]
  %v1941 = vld [vmem:[%s8 + $0x1d8] sm:$0xff]
  %v1942 = vld [vmem:[%s8 + $0x1e0] sm:$0xff]
  %v1943 = vld [vmem:[%s8 + $0x1e8] sm:$0xff]
  %v1944 = vld [vmem:[%s8 + $0x1f0] sm:$0xff]
  %v1945 = vld [vmem:[%s8 + $0x1f8] sm:$0xff]
  %v1950 = vrot.slane %v1912, 7
  %vm1951 = vcmask 1041409
  %v1952 = vsel %vm1951, %v1950, %v1910
  %v1953 = vrot.slane %v1913, 7
  %v1954 = vsel %vm1951, %v1953, %v1911
  %1957 = vmatprep.subr.mxu0 0.0
  %1958 = vmatpush1.msra.mxu0 %v1929
  %1959 = vmatprep.subr.mxu0 0.0
  %1960 = vmatpush1.msra.mxu0 %v1928
  %1961 = vmatprep.subr.mxu0 0.0
  %1962 = vmatpush1.msra.mxu0 %v1927
  %1963 = vmatprep.subr.mxu0 0.0
  %1964 = vmatpush1.msra.mxu0 %v1926
  %1965 = vmatprep.subr.mxu0 0.0
  %1966 = vmatpush1.msra.mxu0 %v1925
  %1967 = vmatprep.subr.mxu0 0.0
  %1968 = vmatpush1.msra.mxu0 %v1924
  %1969 = vmatprep.subr.mxu0 0.0
  %1970 = vmatpush1.msra.mxu0 %v1923
  %1971 = vmatprep.subr.mxu0 0.0
  %1972 = vmatpush1.msra.mxu0 %v1922
  %1973 = vmatprep.subr.mxu0 0.0
  %1974 = vmatpush1.msra.mxu0 %v1921
  %1975 = vmatprep.subr.mxu0 0.0
  %1976 = vmatpush1.msra.mxu0 %v1920
  %1977 = vmatprep.subr.mxu0 0.0
  %1978 = vmatpush1.msra.mxu0 %v1919
  %1979 = vmatprep.subr.mxu0 0.0
  %1980 = vmatpush1.msra.mxu0 %v1918
  %1981 = vmatprep.subr.mxu0 0.0
  %1982 = vmatpush1.msra.mxu0 %v1917
  %1983 = vmatprep.subr.mxu0 0.0
  %1984 = vmatpush1.msra.mxu0 %v1916
  %1985 = vmatprep.subr.mxu0 0.0
  %1986 = vmatpush1.msra.mxu0 %v1915
  %1987 = vmatprep.subr.mxu0 0.0
  %1988 = vmatpush1.msra.mxu0 %v1914
  %1989 = vmatprep.subr.mxu0 0.0
  %1990 = vmatpush2.msra.mxu0 %v1945
  %1991 = vmatprep.subr.mxu0 0.0
  %1992 = vmatpush2.msra.mxu0 %v1944
  %1993 = vmatprep.subr.mxu0 0.0
  %1994 = vmatpush2.msra.mxu0 %v1943
  %1995 = vmatprep.subr.mxu0 0.0
  %1996 = vmatpush2.msra.mxu0 %v1942
  %1997 = vmatprep.subr.mxu0 0.0
  %1998 = vmatpush2.msra.mxu0 %v1941
  %1999 = vmatprep.subr.mxu0 0.0
  %2000 = vmatpush2.msra.mxu0 %v1940
  %2001 = vmatprep.subr.mxu0 0.0
  %2002 = vmatpush2.msra.mxu0 %v1939
  %2003 = vmatprep.subr.mxu0 0.0
  %2004 = vmatpush2.msra.mxu0 %v1938
  %2005 = vmatprep.subr.mxu0 0.0
  %2006 = vmatpush2.msra.mxu0 %v1937
  %2007 = vmatprep.subr.mxu0 0.0
  %2008 = vmatpush2.msra.mxu0 %v1936
  %2009 = vmatprep.subr.mxu0 0.0
  %2010 = vmatpush2.msra.mxu0 %v1935
  %2011 = vmatprep.subr.mxu0 0.0
  %2012 = vmatpush2.msra.mxu0 %v1934
  %2013 = vmatprep.subr.mxu0 0.0
  %2014 = vmatpush2.msra.mxu0 %v1933
  %2015 = vmatprep.subr.mxu0 0.0
  %2016 = vmatpush2.msra.mxu0 %v1932
  %2017 = vmatprep.subr.mxu0 0.0
  %2018 = vmatpush2.msra.mxu0 %v1931
  %2019 = vmatprep.subr.mxu0 0.0
  %2020 = vmatpush2.msra.mxu0 %v1930
  %2021 = vmatprep.mubr.f32.mxu0 %v1954
  %2022 = vmatmul.mubr.f32.gmra.mxu0 %v1952
  %v2023 = vpop.f32.mrf.mxu0
  %v2024 = vadd.f32 0.0, %v2023
  %v2025 = vpop.f32.mrf.mxu0
  %2026 = vdwg.mxu0
  %v2031 = vrot.slane %v1487, 7
  %v2032 = vsel %vm1951, %v2031, %v1485
  %v2033 = vrot.slane %v1488, 7
  %v2034 = vsel %vm1951, %v2033, %v1486
  %2037 = vmatprep.subr.mxu0 0.0
  %2038 = vmatpush1.msra.mxu0 %v1504
  %2039 = vmatprep.subr.mxu0 0.0
  %2040 = vmatpush1.msra.mxu0 %v1503
  %2041 = vmatprep.subr.mxu0 0.0
  %2042 = vmatpush1.msra.mxu0 %v1502
  %2043 = vmatprep.subr.mxu0 0.0
  %2044 = vmatpush1.msra.mxu0 %v1501
  %2045 = vmatprep.subr.mxu0 0.0
  %2046 = vmatpush1.msra.mxu0 %v1500
  %2047 = vmatprep.subr.mxu0 0.0
  %2048 = vmatpush1.msra.mxu0 %v1499
  %2049 = vmatprep.subr.mxu0 0.0
  %2050 = vmatpush1.msra.mxu0 %v1498
  %2051 = vmatprep.subr.mxu0 0.0
  %2052 = vmatpush1.msra.mxu0 %v1497
  %2053 = vmatprep.subr.mxu0 0.0
  %2054 = vmatpush1.msra.mxu0 %v1496
  %2055 = vmatprep.subr.mxu0 0.0
  %2056 = vmatpush1.msra.mxu0 %v1495
  %2057 = vmatprep.subr.mxu0 0.0
  %2058 = vmatpush1.msra.mxu0 %v1494
  %2059 = vmatprep.subr.mxu0 0.0
  %2060 = vmatpush1.msra.mxu0 %v1493
  %2061 = vmatprep.subr.mxu0 0.0
  %2062 = vmatpush1.msra.mxu0 %v1492
  %2063 = vmatprep.subr.mxu0 0.0
  %2064 = vmatpush1.msra.mxu0 %v1491
  %2065 = vmatprep.subr.mxu0 0.0
  %2066 = vmatpush1.msra.mxu0 %v1490
  %2067 = vmatprep.subr.mxu0 0.0
  %2068 = vmatpush1.msra.mxu0 %v1489
  %2069 = vmatprep.subr.mxu0 0.0
  %2070 = vmatpush2.msra.mxu0 %v1520
  %2071 = vmatprep.subr.mxu0 0.0
  %2072 = vmatpush2.msra.mxu0 %v1519
  %2073 = vmatprep.subr.mxu0 0.0
  %2074 = vmatpush2.msra.mxu0 %v1518
  %2075 = vmatprep.subr.mxu0 0.0
  %2076 = vmatpush2.msra.mxu0 %v1517
  %2077 = vmatprep.subr.mxu0 0.0
  %2078 = vmatpush2.msra.mxu0 %v1516
  %2079 = vmatprep.subr.mxu0 0.0
  %2080 = vmatpush2.msra.mxu0 %v1515
  %2081 = vmatprep.subr.mxu0 0.0
  %2082 = vmatpush2.msra.mxu0 %v1514
  %2083 = vmatprep.subr.mxu0 0.0
  %2084 = vmatpush2.msra.mxu0 %v1513
  %2085 = vmatprep.subr.mxu0 0.0
  %2086 = vmatpush2.msra.mxu0 %v1512
  %2087 = vmatprep.subr.mxu0 0.0
  %2088 = vmatpush2.msra.mxu0 %v1511
  %2089 = vmatprep.subr.mxu0 0.0
  %2090 = vmatpush2.msra.mxu0 %v1510
  %2091 = vmatprep.subr.mxu0 0.0
  %2092 = vmatpush2.msra.mxu0 %v1509
  %2093 = vmatprep.subr.mxu0 0.0
  %2094 = vmatpush2.msra.mxu0 %v1508
  %2095 = vmatprep.subr.mxu0 0.0
  %2096 = vmatpush2.msra.mxu0 %v1507
  %2097 = vmatprep.subr.mxu0 0.0
  %2098 = vmatpush2.msra.mxu0 %v1506
  %2099 = vmatprep.subr.mxu0 0.0
  %2100 = vmatpush2.msra.mxu0 %v1505
  %2101 = vmatprep.mubr.f32.mxu0 %v2034
  %2102 = vmatmul.mubr.f32.gmra.mxu0 %v2032
  %v2103 = vpop.f32.mrf.mxu0
  %v2104 = vadd.f32 %v2024, %v2103
  %v2105 = vpop.f32.mrf.mxu0
  %2106 = vdwg.mxu0
  %v2107 = vld [vmem:[%s5 + $0x20] sm:$0xff]
  %v2108 = vld [vmem:[%s5 + $0x28] sm:$0xff]
  %v2109 = vld [vmem:[%s5 + $0x60] sm:$0xff]
  %v2110 = vld [vmem:[%s5 + $0x68] sm:$0xff]
  %v2111 = vld [vmem:[%s5 + $0xa0] sm:$0xff]
  %v2112 = vld [vmem:[%s5 + $0xa8] sm:$0xff]
  %v2113 = vld [vmem:[%s5 + $0xe0] sm:$0xff]
  %v2114 = vld [vmem:[%s5 + $0xe8] sm:$0xff]
  %v2115 = vld [vmem:[%s5 + $0x120] sm:$0xff]
  %v2116 = vld [vmem:[%s5 + $0x128] sm:$0xff]
  %v2117 = vld [vmem:[%s5 + $0x160] sm:$0xff]
  %v2118 = vld [vmem:[%s5 + $0x168] sm:$0xff]
  %v2119 = vld [vmem:[%s5 + $0x1a0] sm:$0xff]
  %v2120 = vld [vmem:[%s5 + $0x1a8] sm:$0xff]
  %v2121 = vld [vmem:[%s5 + $0x1e0] sm:$0xff]
  %v2122 = vld [vmem:[%s5 + $0x1e8] sm:$0xff]
  %v2123 = vld [vmem:[%s5 + $0x220] sm:$0xff]
  %v2124 = vld [vmem:[%s5 + $0x228] sm:$0xff]
  %v2125 = vld [vmem:[%s5 + $0x260] sm:$0xff]
  %v2126 = vld [vmem:[%s5 + $0x268] sm:$0xff]
  %v2127 = vld [vmem:[%s5 + $0x2a0] sm:$0xff]
  %v2128 = vld [vmem:[%s5 + $0x2a8] sm:$0xff]
  %v2129 = vld [vmem:[%s5 + $0x2e0] sm:$0xff]
  %v2130 = vld [vmem:[%s5 + $0x2e8] sm:$0xff]
  %v2131 = vld [vmem:[%s5 + $0x320] sm:$0xff]
  %v2132 = vld [vmem:[%s5 + $0x328] sm:$0xff]
  %v2133 = vld [vmem:[%s5 + $0x360] sm:$0xff]
  %v2134 = vld [vmem:[%s5 + $0x368] sm:$0xff]
  %v2135 = vld [vmem:[%s5 + $0x3a0] sm:$0xff]
  %v2136 = vld [vmem:[%s5 + $0x3a8] sm:$0xff]
  %v2137 = vld [vmem:[%s5 + $0x3e0] sm:$0xff]
  %v2138 = vld [vmem:[%s5 + $0x3e8] sm:$0xff]
  %2139 = vmatprep.subr.mxu0 %v2138
  %2140 = vmatpush1.msra.mxu0 %v2137
  %2141 = vmatprep.subr.mxu0 %v2136
  %2142 = vmatpush1.msra.mxu0 %v2135
  %2143 = vmatprep.subr.mxu0 %v2134
  %2144 = vmatpush1.msra.mxu0 %v2133
  %2145 = vmatprep.subr.mxu0 %v2132
  %2146 = vmatpush1.msra.mxu0 %v2131
  %2147 = vmatprep.subr.mxu0 %v2130
  %2148 = vmatpush1.msra.mxu0 %v2129
  %2149 = vmatprep.subr.mxu0 %v2128
  %2150 = vmatpush1.msra.mxu0 %v2127
  %2151 = vmatprep.subr.mxu0 %v2126
  %2152 = vmatpush1.msra.mxu0 %v2125
  %2153 = vmatprep.subr.mxu0 %v2124
  %2154 = vmatpush1.msra.mxu0 %v2123
  %2155 = vmatprep.subr.mxu0 %v2122
  %2156 = vmatpush1.msra.mxu0 %v2121
  %2157 = vmatprep.subr.mxu0 %v2120
  %2158 = vmatpush1.msra.mxu0 %v2119
  %2159 = vmatprep.subr.mxu0 %v2118
  %2160 = vmatpush1.msra.mxu0 %v2117
  %2161 = vmatprep.subr.mxu0 %v2116
  %2162 = vmatpush1.msra.mxu0 %v2115
  %2163 = vmatprep.subr.mxu0 %v2114
  %2164 = vmatpush1.msra.mxu0 %v2113
  %2165 = vmatprep.subr.mxu0 %v2112
  %2166 = vmatpush1.msra.mxu0 %v2111
  %2167 = vmatprep.subr.mxu0 %v2110
  %2168 = vmatpush1.msra.mxu0 %v2109
  %2169 = vmatprep.subr.mxu0 %v2108
  %2170 = vmatpush1.msra.mxu0 %v2107
  %2171 = vmatprep.subr.mxu0 0.0
  %2172 = vmatpush2.msra.mxu0 0.0
  %2173 = vmatprep.subr.mxu0 0.0
  %2174 = vmatpush2.msra.mxu0 0.0
  %2175 = vmatprep.subr.mxu0 0.0
  %2176 = vmatpush2.msra.mxu0 0.0
  %2177 = vmatprep.subr.mxu0 0.0
  %2178 = vmatpush2.msra.mxu0 0.0
  %2179 = vmatprep.subr.mxu0 0.0
  %2180 = vmatpush2.msra.mxu0 0.0
  %2181 = vmatprep.subr.mxu0 0.0
  %2182 = vmatpush2.msra.mxu0 0.0
  %2183 = vmatprep.subr.mxu0 0.0
  %2184 = vmatpush2.msra.mxu0 0.0
  %2185 = vmatprep.subr.mxu0 0.0
  %2186 = vmatpush2.msra.mxu0 0.0
  %2187 = vmatprep.subr.mxu0 0.0
  %2188 = vmatpush2.msra.mxu0 0.0
  %2189 = vmatprep.subr.mxu0 0.0
  %2190 = vmatpush2.msra.mxu0 0.0
  %2191 = vmatprep.subr.mxu0 0.0
  %2192 = vmatpush2.msra.mxu0 0.0
  %2193 = vmatprep.subr.mxu0 0.0
  %2194 = vmatpush2.msra.mxu0 0.0
  %2195 = vmatprep.subr.mxu0 0.0
  %2196 = vmatpush2.msra.mxu0 0.0
  %2197 = vmatprep.subr.mxu0 0.0
  %2198 = vmatpush2.msra.mxu0 0.0
  %2199 = vmatprep.subr.mxu0 0.0
  %2200 = vmatpush2.msra.mxu0 0.0
  %2201 = vmatprep.subr.mxu0 0.0
  %2202 = vmatpush2.msra.mxu0 0.0
  %2203 = vmatprep.mubr.f32.mxu0 0.0
  %2204 = vmatmul.mubr.f32.gmra.mxu0 %v1064
  %v2205 = vpop.f32.mrf.mxu0
  %v2206 = vadd.f32 0.0, %v2205
  %v2207 = vpop.f32.mrf.mxu0
  %v2208 = vadd.f32 0.0, %v2207
  %2209 = vmatprep.mubr.f32.mxu0 0.0
  %2210 = vmatmul.mubr.f32.gmra.mxu0 %v1065
  %v2211 = vpop.f32.mrf.mxu0
  %v2212 = vadd.f32 0.0, %v2211
  %v2213 = vpop.f32.mrf.mxu0
  %v2214 = vadd.f32 0.0, %v2213
  %2215 = vmatprep.mubr.f32.mxu0 0.0
  %2216 = vmatmul.mubr.f32.gmra.mxu0 %v1066
  %v2217 = vpop.f32.mrf.mxu0
  %v2218 = vadd.f32 0.0, %v2217
  %v2219 = vpop.f32.mrf.mxu0
  %v2220 = vadd.f32 0.0, %v2219
  %2221 = vmatprep.mubr.f32.mxu0 0.0
  %2222 = vmatmul.mubr.f32.gmra.mxu0 %v1067
  %v2223 = vpop.f32.mrf.mxu0
  %v2224 = vadd.f32 0.0, %v2223
  %v2225 = vpop.f32.mrf.mxu0
  %v2226 = vadd.f32 0.0, %v2225
  %2227 = vmatprep.mubr.f32.mxu0 0.0
  %2228 = vmatmul.mubr.f32.gmra.mxu0 %v1068
  %v2229 = vpop.f32.mrf.mxu0
  %v2230 = vadd.f32 0.0, %v2229
  %v2231 = vpop.f32.mrf.mxu0
  %v2232 = vadd.f32 0.0, %v2231
  %2233 = vmatprep.mubr.f32.mxu0 0.0
  %2234 = vmatmul.mubr.f32.gmra.mxu0 %v1069
  %v2235 = vpop.f32.mrf.mxu0
  %v2236 = vadd.f32 0.0, %v2235
  %v2237 = vpop.f32.mrf.mxu0
  %v2238 = vadd.f32 0.0, %v2237
  %2239 = vmatprep.mubr.f32.mxu0 0.0
  %2240 = vmatmul.mubr.f32.gmra.mxu0 %v1070
  %v2241 = vpop.f32.mrf.mxu0
  %v2242 = vadd.f32 0.0, %v2241
  %v2243 = vpop.f32.mrf.mxu0
  %v2244 = vadd.f32 0.0, %v2243
  %2245 = vmatprep.mubr.f32.mxu0 0.0
  %2246 = vmatmul.mubr.f32.gmra.mxu0 %v1071
  %v2247 = vpop.f32.mrf.mxu0
  %v2248 = vadd.f32 0.0, %v2247
  %v2249 = vpop.f32.mrf.mxu0
  %v2250 = vadd.f32 0.0, %v2249
  %2251 = vmatprep.mubr.f32.mxu0 0.0
  %2252 = vmatmul.mubr.f32.gmra.mxu0 %v1072
  %v2253 = vpop.f32.mrf.mxu0
  %v2254 = vadd.f32 0.0, %v2253
  %v2255 = vpop.f32.mrf.mxu0
  %v2256 = vadd.f32 0.0, %v2255
  %2257 = vmatprep.mubr.f32.mxu0 0.0
  %2258 = vmatmul.mubr.f32.gmra.mxu0 %v1073
  %v2259 = vpop.f32.mrf.mxu0
  %v2260 = vadd.f32 0.0, %v2259
  %v2261 = vpop.f32.mrf.mxu0
  %v2262 = vadd.f32 0.0, %v2261
  %2263 = vmatprep.mubr.f32.mxu0 0.0
  %2264 = vmatmul.mubr.f32.gmra.mxu0 %v1074
  %v2265 = vpop.f32.mrf.mxu0
  %v2266 = vadd.f32 0.0, %v2265
  %v2267 = vpop.f32.mrf.mxu0
  %v2268 = vadd.f32 0.0, %v2267
  %2269 = vmatprep.mubr.f32.mxu0 0.0
  %2270 = vmatmul.mubr.f32.gmra.mxu0 %v1075
  %v2271 = vpop.f32.mrf.mxu0
  %v2272 = vadd.f32 0.0, %v2271
  %v2273 = vpop.f32.mrf.mxu0
  %v2274 = vadd.f32 0.0, %v2273
  %2275 = vmatprep.mubr.f32.mxu0 0.0
  %2276 = vmatmul.mubr.f32.gmra.mxu0 %v1076
  %v2277 = vpop.f32.mrf.mxu0
  %v2278 = vadd.f32 0.0, %v2277
  %v2279 = vpop.f32.mrf.mxu0
  %v2280 = vadd.f32 0.0, %v2279
  %2281 = vmatprep.mubr.f32.mxu0 0.0
  %2282 = vmatmul.mubr.f32.gmra.mxu0 %v1077
  %v2283 = vpop.f32.mrf.mxu0
  %v2284 = vadd.f32 0.0, %v2283
  %v2285 = vpop.f32.mrf.mxu0
  %v2286 = vadd.f32 0.0, %v2285
  %2287 = vmatprep.mubr.f32.mxu0 0.0
  %2288 = vmatmul.mubr.f32.gmra.mxu0 %v1078
  %v2289 = vpop.f32.mrf.mxu0
  %v2290 = vadd.f32 0.0, %v2289
  %v2291 = vpop.f32.mrf.mxu0
  %v2292 = vadd.f32 0.0, %v2291
  %2293 = vmatprep.mubr.f32.mxu0 0.0
  %2294 = vmatmul.mubr.f32.gmra.mxu0 %v1079
  %v2295 = vpop.f32.mrf.mxu0
  %v2296 = vadd.f32 0.0, %v2295
  %v2297 = vpop.f32.mrf.mxu0
  %v2298 = vadd.f32 0.0, %v2297
  %2299 = vmatprep.mubr.f32.mxu0 0.0
  %2300 = vmatmul.mubr.f32.gmra.mxu0 %v1080
  %v2301 = vpop.f32.mrf.mxu0
  %v2302 = vadd.f32 0.0, %v2301
  %v2303 = vpop.f32.mrf.mxu0
  %v2304 = vadd.f32 0.0, %v2303
  %2305 = vmatprep.mubr.f32.mxu0 0.0
  %2306 = vmatmul.mubr.f32.gmra.mxu0 %v1081
  %v2307 = vpop.f32.mrf.mxu0
  %v2308 = vadd.f32 0.0, %v2307
  %v2309 = vpop.f32.mrf.mxu0
  %v2310 = vadd.f32 0.0, %v2309
  %2311 = vmatprep.mubr.f32.mxu0 0.0
  %2312 = vmatmul.mubr.f32.gmra.mxu0 %v1082
  %v2313 = vpop.f32.mrf.mxu0
  %v2314 = vadd.f32 0.0, %v2313
  %v2315 = vpop.f32.mrf.mxu0
  %v2316 = vadd.f32 0.0, %v2315
  %2317 = vmatprep.mubr.f32.mxu0 0.0
  %2318 = vmatmul.mubr.f32.gmra.mxu0 %v1083
  %v2319 = vpop.f32.mrf.mxu0
  %v2320 = vadd.f32 0.0, %v2319
  %v2321 = vpop.f32.mrf.mxu0
  %v2322 = vadd.f32 0.0, %v2321
  %2323 = vmatprep.mubr.f32.mxu0 0.0
  %2324 = vmatmul.mubr.f32.gmra.mxu0 %v1084
  %v2325 = vpop.f32.mrf.mxu0
  %v2326 = vadd.f32 0.0, %v2325
  %v2327 = vpop.f32.mrf.mxu0
  %v2328 = vadd.f32 0.0, %v2327
  %2329 = vmatprep.mubr.f32.mxu0 0.0
  %2330 = vmatmul.mubr.f32.gmra.mxu0 %v1085
  %v2331 = vpop.f32.mrf.mxu0
  %v2332 = vadd.f32 0.0, %v2331
  %v2333 = vpop.f32.mrf.mxu0
  %v2334 = vadd.f32 0.0, %v2333
  %2335 = vmatprep.mubr.f32.mxu0 0.0
  %2336 = vmatmul.mubr.f32.gmra.mxu0 %v1086
  %v2337 = vpop.f32.mrf.mxu0
  %v2338 = vadd.f32 0.0, %v2337
  %v2339 = vpop.f32.mrf.mxu0
  %v2340 = vadd.f32 0.0, %v2339
  %2341 = vmatprep.mubr.f32.mxu0 0.0
  %2342 = vmatmul.mubr.f32.gmra.mxu0 %v1087
  %v2343 = vpop.f32.mrf.mxu0
  %v2344 = vadd.f32 0.0, %v2343
  %v2345 = vpop.f32.mrf.mxu0
  %v2346 = vadd.f32 0.0, %v2345
  %2347 = vmatprep.mubr.f32.mxu0 0.0
  %2348 = vmatmul.mubr.f32.gmra.mxu0 %v1088
  %v2349 = vpop.f32.mrf.mxu0
  %v2350 = vadd.f32 0.0, %v2349
  %v2351 = vpop.f32.mrf.mxu0
  %v2352 = vadd.f32 0.0, %v2351
  %2353 = vmatprep.mubr.f32.mxu0 0.0
  %2354 = vmatmul.mubr.f32.gmra.mxu0 %v1089
  %v2355 = vpop.f32.mrf.mxu0
  %v2356 = vadd.f32 0.0, %v2355
  %v2357 = vpop.f32.mrf.mxu0
  %v2358 = vadd.f32 0.0, %v2357
  %2359 = vmatprep.mubr.f32.mxu0 0.0
  %2360 = vmatmul.mubr.f32.gmra.mxu0 %v1090
  %v2361 = vpop.f32.mrf.mxu0
  %v2362 = vadd.f32 0.0, %v2361
  %v2363 = vpop.f32.mrf.mxu0
  %v2364 = vadd.f32 0.0, %v2363
  %2365 = vmatprep.mubr.f32.mxu0 0.0
  %2366 = vmatmul.mubr.f32.gmra.mxu0 %v1091
  %v2367 = vpop.f32.mrf.mxu0
  %v2368 = vadd.f32 0.0, %v2367
  %v2369 = vpop.f32.mrf.mxu0
  %v2370 = vadd.f32 0.0, %v2369
  %2371 = vmatprep.mubr.f32.mxu0 0.0
  %2372 = vmatmul.mubr.f32.gmra.mxu0 %v1092
  %v2373 = vpop.f32.mrf.mxu0
  %v2374 = vadd.f32 0.0, %v2373
  %v2375 = vpop.f32.mrf.mxu0
  %v2376 = vadd.f32 0.0, %v2375
  %2377 = vmatprep.mubr.f32.mxu0 0.0
  %2378 = vmatmul.mubr.f32.gmra.mxu0 %v1093
  %v2379 = vpop.f32.mrf.mxu0
  %v2380 = vadd.f32 0.0, %v2379
  %v2381 = vpop.f32.mrf.mxu0
  %v2382 = vadd.f32 0.0, %v2381
  %2383 = vmatprep.mubr.f32.mxu0 0.0
  %2384 = vmatmul.mubr.f32.gmra.mxu0 %v1094
  %v2385 = vpop.f32.mrf.mxu0
  %v2386 = vadd.f32 0.0, %v2385
  %v2387 = vpop.f32.mrf.mxu0
  %v2388 = vadd.f32 0.0, %v2387
  %2389 = vmatprep.mubr.f32.mxu0 0.0
  %2390 = vmatmul.mubr.f32.gmra.mxu0 %v1095
  %v2391 = vpop.f32.mrf.mxu0
  %v2392 = vadd.f32 0.0, %v2391
  %v2393 = vpop.f32.mrf.mxu0
  %v2394 = vadd.f32 0.0, %v2393
  %2395 = vdwg.mxu0
  %v2396 = vmax.f32 %v2206, %v2212
  %v2397 = vmax.f32 %v2396, %v2218
  %v2398 = vmax.f32 %v2397, %v2224
  %v2399 = vmax.f32 %v2398, %v2230
  %v2400 = vmax.f32 %v2399, %v2236
  %v2401 = vmax.f32 %v2400, %v2242
  %v2402 = vmax.f32 %v2401, %v2248
  %v2403 = vmax.f32 %v2402, %v2254
  %v2404 = vmax.f32 %v2403, %v2260
  %v2405 = vmax.f32 %v2404, %v2266
  %v2406 = vmax.f32 %v2405, %v2272
  %v2407 = vmax.f32 %v2406, %v2278
  %v2408 = vmax.f32 %v2407, %v2284
  %v2409 = vmax.f32 %v2408, %v2290
  %v2410 = vmax.f32 %v2409, %v2296
  %v2411 = vrot.slane %v2410, 4
  %v2412 = vmax.f32 %v2410, %v2411
  %v2413 = vrot.slane %v2412, 2
  %v2414 = vmax.f32 %v2412, %v2413
  %v2415 = vrot.slane %v2414, 1
  %v2416 = vmax.f32 %v2414, %v2415
  %v2417 = vmax.f32 %v2208, %v2214
  %v2418 = vmax.f32 %v2417, %v2220
  %v2419 = vmax.f32 %v2418, %v2226
  %v2420 = vmax.f32 %v2419, %v2232
  %v2421 = vmax.f32 %v2420, %v2238
  %v2422 = vmax.f32 %v2421, %v2244
  %v2423 = vmax.f32 %v2422, %v2250
  %v2424 = vmax.f32 %v2423, %v2256
  %v2425 = vmax.f32 %v2424, %v2262
  %v2426 = vmax.f32 %v2425, %v2268
  %v2427 = vmax.f32 %v2426, %v2274
  %v2428 = vmax.f32 %v2427, %v2280
  %v2429 = vmax.f32 %v2428, %v2286
  %v2430 = vmax.f32 %v2429, %v2292
  %v2431 = vmax.f32 %v2430, %v2298
  %v2432 = vrot.slane %v2431, 4
  %v2433 = vmax.f32 %v2431, %v2432
  %v2434 = vrot.slane %v2433, 2
  %v2435 = vmax.f32 %v2433, %v2434
  %v2436 = vrot.slane %v2435, 1
  %v2437 = vmax.f32 %v2435, %v2436
  %v2438 = vmax.f32 %v2302, %v2308
  %v2439 = vmax.f32 %v2438, %v2314
  %v2440 = vmax.f32 %v2439, %v2320
  %v2441 = vmax.f32 %v2440, %v2326
  %v2442 = vmax.f32 %v2441, %v2332
  %v2443 = vmax.f32 %v2442, %v2338
  %v2444 = vmax.f32 %v2443, %v2344
  %v2445 = vmax.f32 %v2444, %v2350
  %v2446 = vmax.f32 %v2445, %v2356
  %v2447 = vmax.f32 %v2446, %v2362
  %v2448 = vmax.f32 %v2447, %v2368
  %v2449 = vmax.f32 %v2448, %v2374
  %v2450 = vmax.f32 %v2449, %v2380
  %v2451 = vmax.f32 %v2450, %v2386
  %v2452 = vmax.f32 %v2451, %v2392
  %v2453 = vrot.slane %v2452, 4
  %v2454 = vmax.f32 %v2452, %v2453
  %v2455 = vrot.slane %v2454, 2
  %v2456 = vmax.f32 %v2454, %v2455
  %v2457 = vrot.slane %v2456, 1
  %v2458 = vmax.f32 %v2456, %v2457
  %v2459 = vmax.f32 %v2304, %v2310
  %v2460 = vmax.f32 %v2459, %v2316
  %v2461 = vmax.f32 %v2460, %v2322
  %v2462 = vmax.f32 %v2461, %v2328
  %v2463 = vmax.f32 %v2462, %v2334
  %v2464 = vmax.f32 %v2463, %v2340
  %v2465 = vmax.f32 %v2464, %v2346
  %v2466 = vmax.f32 %v2465, %v2352
  %v2467 = vmax.f32 %v2466, %v2358
  %v2468 = vmax.f32 %v2467, %v2364
  %v2469 = vmax.f32 %v2468, %v2370
  %v2470 = vmax.f32 %v2469, %v2376
  %v2471 = vmax.f32 %v2470, %v2382
  %v2472 = vmax.f32 %v2471, %v2388
  %v2473 = vmax.f32 %v2472, %v2394
  %v2474 = vrot.slane %v2473, 4
  %v2475 = vmax.f32 %v2473, %v2474
  %v2476 = vrot.slane %v2475, 2
  %v2477 = vmax.f32 %v2475, %v2476
  %v2478 = vrot.slane %v2477, 1
  %v2479 = vmax.f32 %v2477, %v2478
  %v2480 = vld [vmem:[%s6 + $0x4] sm:$0x3]
  %v2482 = vlaneseq
  %v2483 = vshrl.u32 %v2482, 7
  %v2484 = vsub.s32 0, %v2483
  %v2485 = vrot.slane %v2480, %v2484
  %v2486 = vlaneseq
  %v2487 = vshrl.u32 %v2486, 7
  %v2488 = vsub.s32 1, %v2487
  %v2489 = vrot.slane %v2480, %v2488
  %v2492 = vadd.f32 %v2416, %v2485
  %v2493 = vadd.f32 %v2437, %v2489
  %v2494 = vadd.f32 %v2458, %v2485
  %v2495 = vadd.f32 %v2479, %v2489
  %v2496 = vmax.f32 %v2492, 0.0
  %v2497 = vmax.f32 %v2493, 0.0
  %v2498 = vmax.f32 %v2494, 0.0
  %v2499 = vmax.f32 %v2495, 0.0
  %v2500 = vld [vmem:[%s8 + $0x200] sm:$0xff]
  %v2501 = vld [vmem:[%s8 + $0x208] sm:$0xff]
  %v2502 = vld [vmem:[%s8 + $0x210] sm:$0xff]
  %v2503 = vld [vmem:[%s8 + $0x218] sm:$0xff]
  %v2504 = vld [vmem:[%s8 + $0x220] sm:$0xff]
  %v2505 = vld [vmem:[%s8 + $0x228] sm:$0xff]
  %v2506 = vld [vmem:[%s8 + $0x230] sm:$0xff]
  %v2507 = vld [vmem:[%s8 + $0x238] sm:$0xff]
  %v2508 = vld [vmem:[%s8 + $0x240] sm:$0xff]
  %v2509 = vld [vmem:[%s8 + $0x248] sm:$0xff]
  %v2510 = vld [vmem:[%s8 + $0x250] sm:$0xff]
  %v2511 = vld [vmem:[%s8 + $0x258] sm:$0xff]
  %v2512 = vld [vmem:[%s8 + $0x260] sm:$0xff]
  %v2513 = vld [vmem:[%s8 + $0x268] sm:$0xff]
  %v2514 = vld [vmem:[%s8 + $0x270] sm:$0xff]
  %v2515 = vld [vmem:[%s8 + $0x278] sm:$0xff]
  %v2516 = vld [vmem:[%s8 + $0x280] sm:$0xff]
  %v2517 = vld [vmem:[%s8 + $0x288] sm:$0xff]
  %v2518 = vld [vmem:[%s8 + $0x290] sm:$0xff]
  %v2519 = vld [vmem:[%s8 + $0x298] sm:$0xff]
  %v2520 = vld [vmem:[%s8 + $0x2a0] sm:$0xff]
  %v2521 = vld [vmem:[%s8 + $0x2a8] sm:$0xff]
  %v2522 = vld [vmem:[%s8 + $0x2b0] sm:$0xff]
  %v2523 = vld [vmem:[%s8 + $0x2b8] sm:$0xff]
  %v2524 = vld [vmem:[%s8 + $0x2c0] sm:$0xff]
  %v2525 = vld [vmem:[%s8 + $0x2c8] sm:$0xff]
  %v2526 = vld [vmem:[%s8 + $0x2d0] sm:$0xff]
  %v2527 = vld [vmem:[%s8 + $0x2d8] sm:$0xff]
  %v2528 = vld [vmem:[%s8 + $0x2e0] sm:$0xff]
  %v2529 = vld [vmem:[%s8 + $0x2e8] sm:$0xff]
  %v2530 = vld [vmem:[%s8 + $0x2f0] sm:$0xff]
  %v2531 = vld [vmem:[%s8 + $0x2f8] sm:$0xff]
  %v2536 = vrot.slane %v2498, 7
  %v2537 = vsel %vm1951, %v2536, %v2496
  %v2538 = vrot.slane %v2499, 7
  %v2539 = vsel %vm1951, %v2538, %v2497
  %2542 = vmatprep.subr.mxu0 0.0
  %2543 = vmatpush1.msra.mxu0 %v2515
  %2544 = vmatprep.subr.mxu0 0.0
  %2545 = vmatpush1.msra.mxu0 %v2514
  %2546 = vmatprep.subr.mxu0 0.0
  %2547 = vmatpush1.msra.mxu0 %v2513
  %2548 = vmatprep.subr.mxu0 0.0
  %2549 = vmatpush1.msra.mxu0 %v2512
  %2550 = vmatprep.subr.mxu0 0.0
  %2551 = vmatpush1.msra.mxu0 %v2511
  %2552 = vmatprep.subr.mxu0 0.0
  %2553 = vmatpush1.msra.mxu0 %v2510
  %2554 = vmatprep.subr.mxu0 0.0
  %2555 = vmatpush1.msra.mxu0 %v2509
  %2556 = vmatprep.subr.mxu0 0.0
  %2557 = vmatpush1.msra.mxu0 %v2508
  %2558 = vmatprep.subr.mxu0 0.0
  %2559 = vmatpush1.msra.mxu0 %v2507
  %2560 = vmatprep.subr.mxu0 0.0
  %2561 = vmatpush1.msra.mxu0 %v2506
  %2562 = vmatprep.subr.mxu0 0.0
  %2563 = vmatpush1.msra.mxu0 %v2505
  %2564 = vmatprep.subr.mxu0 0.0
  %2565 = vmatpush1.msra.mxu0 %v2504
  %2566 = vmatprep.subr.mxu0 0.0
  %2567 = vmatpush1.msra.mxu0 %v2503
  %2568 = vmatprep.subr.mxu0 0.0
  %2569 = vmatpush1.msra.mxu0 %v2502
  %2570 = vmatprep.subr.mxu0 0.0
  %2571 = vmatpush1.msra.mxu0 %v2501
  %2572 = vmatprep.subr.mxu0 0.0
  %2573 = vmatpush1.msra.mxu0 %v2500
  %2574 = vmatprep.subr.mxu0 0.0
  %2575 = vmatpush2.msra.mxu0 %v2531
  %2576 = vmatprep.subr.mxu0 0.0
  %2577 = vmatpush2.msra.mxu0 %v2530
  %2578 = vmatprep.subr.mxu0 0.0
  %2579 = vmatpush2.msra.mxu0 %v2529
  %2580 = vmatprep.subr.mxu0 0.0
  %2581 = vmatpush2.msra.mxu0 %v2528
  %2582 = vmatprep.subr.mxu0 0.0
  %2583 = vmatpush2.msra.mxu0 %v2527
  %2584 = vmatprep.subr.mxu0 0.0
  %2585 = vmatpush2.msra.mxu0 %v2526
  %2586 = vmatprep.subr.mxu0 0.0
  %2587 = vmatpush2.msra.mxu0 %v2525
  %2588 = vmatprep.subr.mxu0 0.0
  %2589 = vmatpush2.msra.mxu0 %v2524
  %2590 = vmatprep.subr.mxu0 0.0
  %2591 = vmatpush2.msra.mxu0 %v2523
  %2592 = vmatprep.subr.mxu0 0.0
  %2593 = vmatpush2.msra.mxu0 %v2522
  %2594 = vmatprep.subr.mxu0 0.0
  %2595 = vmatpush2.msra.mxu0 %v2521
  %2596 = vmatprep.subr.mxu0 0.0
  %2597 = vmatpush2.msra.mxu0 %v2520
  %2598 = vmatprep.subr.mxu0 0.0
  %2599 = vmatpush2.msra.mxu0 %v2519
  %2600 = vmatprep.subr.mxu0 0.0
  %2601 = vmatpush2.msra.mxu0 %v2518
  %2602 = vmatprep.subr.mxu0 0.0
  %2603 = vmatpush2.msra.mxu0 %v2517
  %2604 = vmatprep.subr.mxu0 0.0
  %2605 = vmatpush2.msra.mxu0 %v2516
  %2606 = vmatprep.mubr.f32.mxu0 %v2539
  %2607 = vmatmul.mubr.f32.gmra.mxu0 %v2537
  %v2608 = vpop.f32.mrf.mxu0
  %v2609 = vadd.f32 0.0, %v2608
  %v2610 = vpop.f32.mrf.mxu0
  %2611 = vdwg.mxu0
  %v2612 = vadd.f32 %v2104, %v2609
  %v2613 = vld [vmem:[%s5 + $0x30] sm:$0xff]
  %v2614 = vld [vmem:[%s5 + $0x38] sm:$0xff]
  %v2615 = vld [vmem:[%s5 + $0x70] sm:$0xff]
  %v2616 = vld [vmem:[%s5 + $0x78] sm:$0xff]
  %v2617 = vld [vmem:[%s5 + $0xb0] sm:$0xff]
  %v2618 = vld [vmem:[%s5 + $0xb8] sm:$0xff]
  %v2619 = vld [vmem:[%s5 + $0xf0] sm:$0xff]
  %v2620 = vld [vmem:[%s5 + $0xf8] sm:$0xff]
  %v2621 = vld [vmem:[%s5 + $0x130] sm:$0xff]
  %v2622 = vld [vmem:[%s5 + $0x138] sm:$0xff]
  %v2623 = vld [vmem:[%s5 + $0x170] sm:$0xff]
  %v2624 = vld [vmem:[%s5 + $0x178] sm:$0xff]
  %v2625 = vld [vmem:[%s5 + $0x1b0] sm:$0xff]
  %v2626 = vld [vmem:[%s5 + $0x1b8] sm:$0xff]
  %v2627 = vld [vmem:[%s5 + $0x1f0] sm:$0xff]
  %v2628 = vld [vmem:[%s5 + $0x1f8] sm:$0xff]
  %v2629 = vld [vmem:[%s5 + $0x230] sm:$0xff]
  %v2630 = vld [vmem:[%s5 + $0x238] sm:$0xff]
  %v2631 = vld [vmem:[%s5 + $0x270] sm:$0xff]
  %v2632 = vld [vmem:[%s5 + $0x278] sm:$0xff]
  %v2633 = vld [vmem:[%s5 + $0x2b0] sm:$0xff]
  %v2634 = vld [vmem:[%s5 + $0x2b8] sm:$0xff]
  %v2635 = vld [vmem:[%s5 + $0x2f0] sm:$0xff]
  %v2636 = vld [vmem:[%s5 + $0x2f8] sm:$0xff]
  %v2637 = vld [vmem:[%s5 + $0x330] sm:$0xff]
  %v2638 = vld [vmem:[%s5 + $0x338] sm:$0xff]
  %v2639 = vld [vmem:[%s5 + $0x370] sm:$0xff]
  %v2640 = vld [vmem:[%s5 + $0x378] sm:$0xff]
  %v2641 = vld [vmem:[%s5 + $0x3b0] sm:$0xff]
  %v2642 = vld [vmem:[%s5 + $0x3b8] sm:$0xff]
  %v2643 = vld [vmem:[%s5 + $0x3f0] sm:$0xff]
  %v2644 = vld [vmem:[%s5 + $0x3f8] sm:$0xff]
  %2645 = vmatprep.subr.mxu0 %v2644
  %2646 = vmatpush1.msra.mxu0 %v2643
  %2647 = vmatprep.subr.mxu0 %v2642
  %2648 = vmatpush1.msra.mxu0 %v2641
  %2649 = vmatprep.subr.mxu0 %v2640
  %2650 = vmatpush1.msra.mxu0 %v2639
  %2651 = vmatprep.subr.mxu0 %v2638
  %2652 = vmatpush1.msra.mxu0 %v2637
  %2653 = vmatprep.subr.mxu0 %v2636
  %2654 = vmatpush1.msra.mxu0 %v2635
  %2655 = vmatprep.subr.mxu0 %v2634
  %2656 = vmatpush1.msra.mxu0 %v2633
  %2657 = vmatprep.subr.mxu0 %v2632
  %2658 = vmatpush1.msra.mxu0 %v2631
  %2659 = vmatprep.subr.mxu0 %v2630
  %2660 = vmatpush1.msra.mxu0 %v2629
  %2661 = vmatprep.subr.mxu0 %v2628
  %2662 = vmatpush1.msra.mxu0 %v2627
  %2663 = vmatprep.subr.mxu0 %v2626
  %2664 = vmatpush1.msra.mxu0 %v2625
  %2665 = vmatprep.subr.mxu0 %v2624
  %2666 = vmatpush1.msra.mxu0 %v2623
  %2667 = vmatprep.subr.mxu0 %v2622
  %2668 = vmatpush1.msra.mxu0 %v2621
  %2669 = vmatprep.subr.mxu0 %v2620
  %2670 = vmatpush1.msra.mxu0 %v2619
  %2671 = vmatprep.subr.mxu0 %v2618
  %2672 = vmatpush1.msra.mxu0 %v2617
  %2673 = vmatprep.subr.mxu0 %v2616
  %2674 = vmatpush1.msra.mxu0 %v2615
  %2675 = vmatprep.subr.mxu0 %v2614
  %2676 = vmatpush1.msra.mxu0 %v2613
  %2677 = vmatprep.subr.mxu0 0.0
  %2678 = vmatpush2.msra.mxu0 0.0
  %2679 = vmatprep.subr.mxu0 0.0
  %2680 = vmatpush2.msra.mxu0 0.0
  %2681 = vmatprep.subr.mxu0 0.0
  %2682 = vmatpush2.msra.mxu0 0.0
  %2683 = vmatprep.subr.mxu0 0.0
  %2684 = vmatpush2.msra.mxu0 0.0
  %2685 = vmatprep.subr.mxu0 0.0
  %2686 = vmatpush2.msra.mxu0 0.0
  %2687 = vmatprep.subr.mxu0 0.0
  %2688 = vmatpush2.msra.mxu0 0.0
  %2689 = vmatprep.subr.mxu0 0.0
  %2690 = vmatpush2.msra.mxu0 0.0
  %2691 = vmatprep.subr.mxu0 0.0
  %2692 = vmatpush2.msra.mxu0 0.0
  %2693 = vmatprep.subr.mxu0 0.0
  %2694 = vmatpush2.msra.mxu0 0.0
  %2695 = vmatprep.subr.mxu0 0.0
  %2696 = vmatpush2.msra.mxu0 0.0
  %2697 = vmatprep.subr.mxu0 0.0
  %2698 = vmatpush2.msra.mxu0 0.0
  %2699 = vmatprep.subr.mxu0 0.0
  %2700 = vmatpush2.msra.mxu0 0.0
  %2701 = vmatprep.subr.mxu0 0.0
  %2702 = vmatpush2.msra.mxu0 0.0
  %2703 = vmatprep.subr.mxu0 0.0
  %2704 = vmatpush2.msra.mxu0 0.0
  %2705 = vmatprep.subr.mxu0 0.0
  %2706 = vmatpush2.msra.mxu0 0.0
  %2707 = vmatprep.subr.mxu0 0.0
  %2708 = vmatpush2.msra.mxu0 0.0
  %2709 = vmatprep.mubr.f32.mxu0 0.0
  %2710 = vmatmul.mubr.f32.gmra.mxu0 %v1064
  %v2711 = vpop.f32.mrf.mxu0
  %v2712 = vadd.f32 0.0, %v2711
  %v2713 = vpop.f32.mrf.mxu0
  %v2714 = vadd.f32 0.0, %v2713
  %2715 = vmatprep.mubr.f32.mxu0 0.0
  %2716 = vmatmul.mubr.f32.gmra.mxu0 %v1065
  %v2717 = vpop.f32.mrf.mxu0
  %v2718 = vadd.f32 0.0, %v2717
  %v2719 = vpop.f32.mrf.mxu0
  %v2720 = vadd.f32 0.0, %v2719
  %2721 = vmatprep.mubr.f32.mxu0 0.0
  %2722 = vmatmul.mubr.f32.gmra.mxu0 %v1066
  %v2723 = vpop.f32.mrf.mxu0
  %v2724 = vadd.f32 0.0, %v2723
  %v2725 = vpop.f32.mrf.mxu0
  %v2726 = vadd.f32 0.0, %v2725
  %2727 = vmatprep.mubr.f32.mxu0 0.0
  %2728 = vmatmul.mubr.f32.gmra.mxu0 %v1067
  %v2729 = vpop.f32.mrf.mxu0
  %v2730 = vadd.f32 0.0, %v2729
  %v2731 = vpop.f32.mrf.mxu0
  %v2732 = vadd.f32 0.0, %v2731
  %2733 = vmatprep.mubr.f32.mxu0 0.0
  %2734 = vmatmul.mubr.f32.gmra.mxu0 %v1068
  %v2735 = vpop.f32.mrf.mxu0
  %v2736 = vadd.f32 0.0, %v2735
  %v2737 = vpop.f32.mrf.mxu0
  %v2738 = vadd.f32 0.0, %v2737
  %2739 = vmatprep.mubr.f32.mxu0 0.0
  %2740 = vmatmul.mubr.f32.gmra.mxu0 %v1069
  %v2741 = vpop.f32.mrf.mxu0
  %v2742 = vadd.f32 0.0, %v2741
  %v2743 = vpop.f32.mrf.mxu0
  %v2744 = vadd.f32 0.0, %v2743
  %2745 = vmatprep.mubr.f32.mxu0 0.0
  %2746 = vmatmul.mubr.f32.gmra.mxu0 %v1070
  %v2747 = vpop.f32.mrf.mxu0
  %v2748 = vadd.f32 0.0, %v2747
  %v2749 = vpop.f32.mrf.mxu0
  %v2750 = vadd.f32 0.0, %v2749
  %2751 = vmatprep.mubr.f32.mxu0 0.0
  %2752 = vmatmul.mubr.f32.gmra.mxu0 %v1071
  %v2753 = vpop.f32.mrf.mxu0
  %v2754 = vadd.f32 0.0, %v2753
  %v2755 = vpop.f32.mrf.mxu0
  %v2756 = vadd.f32 0.0, %v2755
  %2757 = vmatprep.mubr.f32.mxu0 0.0
  %2758 = vmatmul.mubr.f32.gmra.mxu0 %v1072
  %v2759 = vpop.f32.mrf.mxu0
  %v2760 = vadd.f32 0.0, %v2759
  %v2761 = vpop.f32.mrf.mxu0
  %v2762 = vadd.f32 0.0, %v2761
  %2763 = vmatprep.mubr.f32.mxu0 0.0
  %2764 = vmatmul.mubr.f32.gmra.mxu0 %v1073
  %v2765 = vpop.f32.mrf.mxu0
  %v2766 = vadd.f32 0.0, %v2765
  %v2767 = vpop.f32.mrf.mxu0
  %v2768 = vadd.f32 0.0, %v2767
  %2769 = vmatprep.mubr.f32.mxu0 0.0
  %2770 = vmatmul.mubr.f32.gmra.mxu0 %v1074
  %v2771 = vpop.f32.mrf.mxu0
  %v2772 = vadd.f32 0.0, %v2771
  %v2773 = vpop.f32.mrf.mxu0
  %v2774 = vadd.f32 0.0, %v2773
  %2775 = vmatprep.mubr.f32.mxu0 0.0
  %2776 = vmatmul.mubr.f32.gmra.mxu0 %v1075
  %v2777 = vpop.f32.mrf.mxu0
  %v2778 = vadd.f32 0.0, %v2777
  %v2779 = vpop.f32.mrf.mxu0
  %v2780 = vadd.f32 0.0, %v2779
  %2781 = vmatprep.mubr.f32.mxu0 0.0
  %2782 = vmatmul.mubr.f32.gmra.mxu0 %v1076
  %v2783 = vpop.f32.mrf.mxu0
  %v2784 = vadd.f32 0.0, %v2783
  %v2785 = vpop.f32.mrf.mxu0
  %v2786 = vadd.f32 0.0, %v2785
  %2787 = vmatprep.mubr.f32.mxu0 0.0
  %2788 = vmatmul.mubr.f32.gmra.mxu0 %v1077
  %v2789 = vpop.f32.mrf.mxu0
  %v2790 = vadd.f32 0.0, %v2789
  %v2791 = vpop.f32.mrf.mxu0
  %v2792 = vadd.f32 0.0, %v2791
  %2793 = vmatprep.mubr.f32.mxu0 0.0
  %2794 = vmatmul.mubr.f32.gmra.mxu0 %v1078
  %v2795 = vpop.f32.mrf.mxu0
  %v2796 = vadd.f32 0.0, %v2795
  %v2797 = vpop.f32.mrf.mxu0
  %v2798 = vadd.f32 0.0, %v2797
  %2799 = vmatprep.mubr.f32.mxu0 0.0
  %2800 = vmatmul.mubr.f32.gmra.mxu0 %v1079
  %v2801 = vpop.f32.mrf.mxu0
  %v2802 = vadd.f32 0.0, %v2801
  %v2803 = vpop.f32.mrf.mxu0
  %v2804 = vadd.f32 0.0, %v2803
  %2805 = vmatprep.mubr.f32.mxu0 0.0
  %2806 = vmatmul.mubr.f32.gmra.mxu0 %v1080
  %v2807 = vpop.f32.mrf.mxu0
  %v2808 = vadd.f32 0.0, %v2807
  %v2809 = vpop.f32.mrf.mxu0
  %v2810 = vadd.f32 0.0, %v2809
  %2811 = vmatprep.mubr.f32.mxu0 0.0
  %2812 = vmatmul.mubr.f32.gmra.mxu0 %v1081
  %v2813 = vpop.f32.mrf.mxu0
  %v2814 = vadd.f32 0.0, %v2813
  %v2815 = vpop.f32.mrf.mxu0
  %v2816 = vadd.f32 0.0, %v2815
  %2817 = vmatprep.mubr.f32.mxu0 0.0
  %2818 = vmatmul.mubr.f32.gmra.mxu0 %v1082
  %v2819 = vpop.f32.mrf.mxu0
  %v2820 = vadd.f32 0.0, %v2819
  %v2821 = vpop.f32.mrf.mxu0
  %v2822 = vadd.f32 0.0, %v2821
  %2823 = vmatprep.mubr.f32.mxu0 0.0
  %2824 = vmatmul.mubr.f32.gmra.mxu0 %v1083
  %v2825 = vpop.f32.mrf.mxu0
  %v2826 = vadd.f32 0.0, %v2825
  %v2827 = vpop.f32.mrf.mxu0
  %v2828 = vadd.f32 0.0, %v2827
  %2829 = vmatprep.mubr.f32.mxu0 0.0
  %2830 = vmatmul.mubr.f32.gmra.mxu0 %v1084
  %v2831 = vpop.f32.mrf.mxu0
  %v2832 = vadd.f32 0.0, %v2831
  %v2833 = vpop.f32.mrf.mxu0
  %v2834 = vadd.f32 0.0, %v2833
  %2835 = vmatprep.mubr.f32.mxu0 0.0
  %2836 = vmatmul.mubr.f32.gmra.mxu0 %v1085
  %v2837 = vpop.f32.mrf.mxu0
  %v2838 = vadd.f32 0.0, %v2837
  %v2839 = vpop.f32.mrf.mxu0
  %v2840 = vadd.f32 0.0, %v2839
  %2841 = vmatprep.mubr.f32.mxu0 0.0
  %2842 = vmatmul.mubr.f32.gmra.mxu0 %v1086
  %v2843 = vpop.f32.mrf.mxu0
  %v2844 = vadd.f32 0.0, %v2843
  %v2845 = vpop.f32.mrf.mxu0
  %v2846 = vadd.f32 0.0, %v2845
  %2847 = vmatprep.mubr.f32.mxu0 0.0
  %2848 = vmatmul.mubr.f32.gmra.mxu0 %v1087
  %v2849 = vpop.f32.mrf.mxu0
  %v2850 = vadd.f32 0.0, %v2849
  %v2851 = vpop.f32.mrf.mxu0
  %v2852 = vadd.f32 0.0, %v2851
  %2853 = vmatprep.mubr.f32.mxu0 0.0
  %2854 = vmatmul.mubr.f32.gmra.mxu0 %v1088
  %v2855 = vpop.f32.mrf.mxu0
  %v2856 = vadd.f32 0.0, %v2855
  %v2857 = vpop.f32.mrf.mxu0
  %v2858 = vadd.f32 0.0, %v2857
  %2859 = vmatprep.mubr.f32.mxu0 0.0
  %2860 = vmatmul.mubr.f32.gmra.mxu0 %v1089
  %v2861 = vpop.f32.mrf.mxu0
  %v2862 = vadd.f32 0.0, %v2861
  %v2863 = vpop.f32.mrf.mxu0
  %v2864 = vadd.f32 0.0, %v2863
  %2865 = vmatprep.mubr.f32.mxu0 0.0
  %2866 = vmatmul.mubr.f32.gmra.mxu0 %v1090
  %v2867 = vpop.f32.mrf.mxu0
  %v2868 = vadd.f32 0.0, %v2867
  %v2869 = vpop.f32.mrf.mxu0
  %v2870 = vadd.f32 0.0, %v2869
  %2871 = vmatprep.mubr.f32.mxu0 0.0
  %2872 = vmatmul.mubr.f32.gmra.mxu0 %v1091
  %v2873 = vpop.f32.mrf.mxu0
  %v2874 = vadd.f32 0.0, %v2873
  %v2875 = vpop.f32.mrf.mxu0
  %v2876 = vadd.f32 0.0, %v2875
  %2877 = vmatprep.mubr.f32.mxu0 0.0
  %2878 = vmatmul.mubr.f32.gmra.mxu0 %v1092
  %v2879 = vpop.f32.mrf.mxu0
  %v2880 = vadd.f32 0.0, %v2879
  %v2881 = vpop.f32.mrf.mxu0
  %v2882 = vadd.f32 0.0, %v2881
  %2883 = vmatprep.mubr.f32.mxu0 0.0
  %2884 = vmatmul.mubr.f32.gmra.mxu0 %v1093
  %v2885 = vpop.f32.mrf.mxu0
  %v2886 = vadd.f32 0.0, %v2885
  %v2887 = vpop.f32.mrf.mxu0
  %v2888 = vadd.f32 0.0, %v2887
  %2889 = vmatprep.mubr.f32.mxu0 0.0
  %2890 = vmatmul.mubr.f32.gmra.mxu0 %v1094
  %v2891 = vpop.f32.mrf.mxu0
  %v2892 = vadd.f32 0.0, %v2891
  %v2893 = vpop.f32.mrf.mxu0
  %v2894 = vadd.f32 0.0, %v2893
  %2895 = vmatprep.mubr.f32.mxu0 0.0
  %2896 = vmatmul.mubr.f32.gmra.mxu0 %v1095
  %v2897 = vpop.f32.mrf.mxu0
  %v2898 = vadd.f32 0.0, %v2897
  %v2899 = vpop.f32.mrf.mxu0
  %v2900 = vadd.f32 0.0, %v2899
  %2901 = vdwg.mxu0
  %v2902 = vmax.f32 %v2712, %v2718
  %v2903 = vmax.f32 %v2902, %v2724
  %v2904 = vmax.f32 %v2903, %v2730
  %v2905 = vmax.f32 %v2904, %v2736
  %v2906 = vmax.f32 %v2905, %v2742
  %v2907 = vmax.f32 %v2906, %v2748
  %v2908 = vmax.f32 %v2907, %v2754
  %v2909 = vmax.f32 %v2908, %v2760
  %v2910 = vmax.f32 %v2909, %v2766
  %v2911 = vmax.f32 %v2910, %v2772
  %v2912 = vmax.f32 %v2911, %v2778
  %v2913 = vmax.f32 %v2912, %v2784
  %v2914 = vmax.f32 %v2913, %v2790
  %v2915 = vmax.f32 %v2914, %v2796
  %v2916 = vmax.f32 %v2915, %v2802
  %v2917 = vrot.slane %v2916, 4
  %v2918 = vmax.f32 %v2916, %v2917
  %v2919 = vrot.slane %v2918, 2
  %v2920 = vmax.f32 %v2918, %v2919
  %v2921 = vrot.slane %v2920, 1
  %v2922 = vmax.f32 %v2920, %v2921
  %v2923 = vmax.f32 %v2714, %v2720
  %v2924 = vmax.f32 %v2923, %v2726
  %v2925 = vmax.f32 %v2924, %v2732
  %v2926 = vmax.f32 %v2925, %v2738
  %v2927 = vmax.f32 %v2926, %v2744
  %v2928 = vmax.f32 %v2927, %v2750
  %v2929 = vmax.f32 %v2928, %v2756
  %v2930 = vmax.f32 %v2929, %v2762
  %v2931 = vmax.f32 %v2930, %v2768
  %v2932 = vmax.f32 %v2931, %v2774
  %v2933 = vmax.f32 %v2932, %v2780
  %v2934 = vmax.f32 %v2933, %v2786
  %v2935 = vmax.f32 %v2934, %v2792
  %v2936 = vmax.f32 %v2935, %v2798
  %v2937 = vmax.f32 %v2936, %v2804
  %v2938 = vrot.slane %v2937, 4
  %v2939 = vmax.f32 %v2937, %v2938
  %v2940 = vrot.slane %v2939, 2
  %v2941 = vmax.f32 %v2939, %v2940
  %v2942 = vrot.slane %v2941, 1
  %v2943 = vmax.f32 %v2941, %v2942
  %v2944 = vmax.f32 %v2808, %v2814
  %v2945 = vmax.f32 %v2944, %v2820
  %v2946 = vmax.f32 %v2945, %v2826
  %v2947 = vmax.f32 %v2946, %v2832
  %v2948 = vmax.f32 %v2947, %v2838
  %v2949 = vmax.f32 %v2948, %v2844
  %v2950 = vmax.f32 %v2949, %v2850
  %v2951 = vmax.f32 %v2950, %v2856
  %v2952 = vmax.f32 %v2951, %v2862
  %v2953 = vmax.f32 %v2952, %v2868
  %v2954 = vmax.f32 %v2953, %v2874
  %v2955 = vmax.f32 %v2954, %v2880
  %v2956 = vmax.f32 %v2955, %v2886
  %v2957 = vmax.f32 %v2956, %v2892
  %v2958 = vmax.f32 %v2957, %v2898
  %v2959 = vrot.slane %v2958, 4
  %v2960 = vmax.f32 %v2958, %v2959
  %v2961 = vrot.slane %v2960, 2
  %v2962 = vmax.f32 %v2960, %v2961
  %v2963 = vrot.slane %v2962, 1
  %v2964 = vmax.f32 %v2962, %v2963
  %v2965 = vmax.f32 %v2810, %v2816
  %v2966 = vmax.f32 %v2965, %v2822
  %v2967 = vmax.f32 %v2966, %v2828
  %v2968 = vmax.f32 %v2967, %v2834
  %v2969 = vmax.f32 %v2968, %v2840
  %v2970 = vmax.f32 %v2969, %v2846
  %v2971 = vmax.f32 %v2970, %v2852
  %v2972 = vmax.f32 %v2971, %v2858
  %v2973 = vmax.f32 %v2972, %v2864
  %v2974 = vmax.f32 %v2973, %v2870
  %v2975 = vmax.f32 %v2974, %v2876
  %v2976 = vmax.f32 %v2975, %v2882
  %v2977 = vmax.f32 %v2976, %v2888
  %v2978 = vmax.f32 %v2977, %v2894
  %v2979 = vmax.f32 %v2978, %v2900
  %v2980 = vrot.slane %v2979, 4
  %v2981 = vmax.f32 %v2979, %v2980
  %v2982 = vrot.slane %v2981, 2
  %v2983 = vmax.f32 %v2981, %v2982
  %v2984 = vrot.slane %v2983, 1
  %v2985 = vmax.f32 %v2983, %v2984
  %v2986 = vld [vmem:[%s6 + $0x6] sm:$0x3]
  %v2988 = vlaneseq
  %v2989 = vshrl.u32 %v2988, 7
  %v2990 = vsub.s32 0, %v2989
  %v2991 = vrot.slane %v2986, %v2990
  %v2992 = vlaneseq
  %v2993 = vshrl.u32 %v2992, 7
  %v2994 = vsub.s32 1, %v2993
  %v2995 = vrot.slane %v2986, %v2994
  %v2998 = vadd.f32 %v2922, %v2991
  %v2999 = vadd.f32 %v2943, %v2995
  %v3000 = vadd.f32 %v2964, %v2991
  %v3001 = vadd.f32 %v2985, %v2995
  %v3002 = vmax.f32 %v2998, 0.0
  %v3003 = vmax.f32 %v2999, 0.0
  %v3004 = vmax.f32 %v3000, 0.0
  %v3005 = vmax.f32 %v3001, 0.0
  %v3006 = vld [vmem:[%s8 + $0x300] sm:$0xff]
  %v3007 = vld [vmem:[%s8 + $0x308] sm:$0xff]
  %v3008 = vld [vmem:[%s8 + $0x310] sm:$0xff]
  %v3009 = vld [vmem:[%s8 + $0x318] sm:$0xff]
  %v3010 = vld [vmem:[%s8 + $0x320] sm:$0xff]
  %v3011 = vld [vmem:[%s8 + $0x328] sm:$0xff]
  %v3012 = vld [vmem:[%s8 + $0x330] sm:$0xff]
  %v3013 = vld [vmem:[%s8 + $0x338] sm:$0xff]
  %v3014 = vld [vmem:[%s8 + $0x340] sm:$0xff]
  %v3015 = vld [vmem:[%s8 + $0x348] sm:$0xff]
  %v3016 = vld [vmem:[%s8 + $0x350] sm:$0xff]
  %v3017 = vld [vmem:[%s8 + $0x358] sm:$0xff]
  %v3018 = vld [vmem:[%s8 + $0x360] sm:$0xff]
  %v3019 = vld [vmem:[%s8 + $0x368] sm:$0xff]
  %v3020 = vld [vmem:[%s8 + $0x370] sm:$0xff]
  %v3021 = vld [vmem:[%s8 + $0x378] sm:$0xff]
  %v3022 = vld [vmem:[%s8 + $0x380] sm:$0xff]
  %v3023 = vld [vmem:[%s8 + $0x388] sm:$0xff]
  %v3024 = vld [vmem:[%s8 + $0x390] sm:$0xff]
  %v3025 = vld [vmem:[%s8 + $0x398] sm:$0xff]
  %v3026 = vld [vmem:[%s8 + $0x3a0] sm:$0xff]
  %v3027 = vld [vmem:[%s8 + $0x3a8] sm:$0xff]
  %v3028 = vld [vmem:[%s8 + $0x3b0] sm:$0xff]
  %v3029 = vld [vmem:[%s8 + $0x3b8] sm:$0xff]
  %v3030 = vld [vmem:[%s8 + $0x3c0] sm:$0xff]
  %v3031 = vld [vmem:[%s8 + $0x3c8] sm:$0xff]
  %v3032 = vld [vmem:[%s8 + $0x3d0] sm:$0xff]
  %v3033 = vld [vmem:[%s8 + $0x3d8] sm:$0xff]
  %v3034 = vld [vmem:[%s8 + $0x3e0] sm:$0xff]
  %v3035 = vld [vmem:[%s8 + $0x3e8] sm:$0xff]
  %v3036 = vld [vmem:[%s8 + $0x3f0] sm:$0xff]
  %v3037 = vld [vmem:[%s8 + $0x3f8] sm:$0xff]
  %v3042 = vrot.slane %v3004, 7
  %v3043 = vsel %vm1951, %v3042, %v3002
  %v3044 = vrot.slane %v3005, 7
  %v3045 = vsel %vm1951, %v3044, %v3003
  %3048 = vmatprep.subr.mxu0 0.0
  %3049 = vmatpush1.msra.mxu0 %v3021
  %3050 = vmatprep.subr.mxu0 0.0
  %3051 = vmatpush1.msra.mxu0 %v3020
  %3052 = vmatprep.subr.mxu0 0.0
  %3053 = vmatpush1.msra.mxu0 %v3019
  %3054 = vmatprep.subr.mxu0 0.0
  %3055 = vmatpush1.msra.mxu0 %v3018
  %3056 = vmatprep.subr.mxu0 0.0
  %3057 = vmatpush1.msra.mxu0 %v3017
  %3058 = vmatprep.subr.mxu0 0.0
  %3059 = vmatpush1.msra.mxu0 %v3016
  %3060 = vmatprep.subr.mxu0 0.0
  %3061 = vmatpush1.msra.mxu0 %v3015
  %3062 = vmatprep.subr.mxu0 0.0
  %3063 = vmatpush1.msra.mxu0 %v3014
  %3064 = vmatprep.subr.mxu0 0.0
  %3065 = vmatpush1.msra.mxu0 %v3013
  %3066 = vmatprep.subr.mxu0 0.0
  %3067 = vmatpush1.msra.mxu0 %v3012
  %3068 = vmatprep.subr.mxu0 0.0
  %3069 = vmatpush1.msra.mxu0 %v3011
  %3070 = vmatprep.subr.mxu0 0.0
  %3071 = vmatpush1.msra.mxu0 %v3010
  %3072 = vmatprep.subr.mxu0 0.0
  %3073 = vmatpush1.msra.mxu0 %v3009
  %3074 = vmatprep.subr.mxu0 0.0
  %3075 = vmatpush1.msra.mxu0 %v3008
  %3076 = vmatprep.subr.mxu0 0.0
  %3077 = vmatpush1.msra.mxu0 %v3007
  %3078 = vmatprep.subr.mxu0 0.0
  %3079 = vmatpush1.msra.mxu0 %v3006
  %3080 = vmatprep.subr.mxu0 0.0
  %3081 = vmatpush2.msra.mxu0 %v3037
  %3082 = vmatprep.subr.mxu0 0.0
  %3083 = vmatpush2.msra.mxu0 %v3036
  %3084 = vmatprep.subr.mxu0 0.0
  %3085 = vmatpush2.msra.mxu0 %v3035
  %3086 = vmatprep.subr.mxu0 0.0
  %3087 = vmatpush2.msra.mxu0 %v3034
  %3088 = vmatprep.subr.mxu0 0.0
  %3089 = vmatpush2.msra.mxu0 %v3033
  %3090 = vmatprep.subr.mxu0 0.0
  %3091 = vmatpush2.msra.mxu0 %v3032
  %3092 = vmatprep.subr.mxu0 0.0
  %3093 = vmatpush2.msra.mxu0 %v3031
  %3094 = vmatprep.subr.mxu0 0.0
  %3095 = vmatpush2.msra.mxu0 %v3030
  %3096 = vmatprep.subr.mxu0 0.0
  %3097 = vmatpush2.msra.mxu0 %v3029
  %3098 = vmatprep.subr.mxu0 0.0
  %3099 = vmatpush2.msra.mxu0 %v3028
  %3100 = vmatprep.subr.mxu0 0.0
  %3101 = vmatpush2.msra.mxu0 %v3027
  %3102 = vmatprep.subr.mxu0 0.0
  %3103 = vmatpush2.msra.mxu0 %v3026
  %3104 = vmatprep.subr.mxu0 0.0
  %3105 = vmatpush2.msra.mxu0 %v3025
  %3106 = vmatprep.subr.mxu0 0.0
  %3107 = vmatpush2.msra.mxu0 %v3024
  %3108 = vmatprep.subr.mxu0 0.0
  %3109 = vmatpush2.msra.mxu0 %v3023
  %3110 = vmatprep.subr.mxu0 0.0
  %3111 = vmatpush2.msra.mxu0 %v3022
  %3112 = vmatprep.mubr.f32.mxu0 %v3045
  %3113 = vmatmul.mubr.f32.gmra.mxu0 %v3043
  %v3114 = vpop.f32.mrf.mxu0
  %v3115 = vadd.f32 0.0, %v3114
  %v3116 = vpop.f32.mrf.mxu0
  %3117 = vdwg.mxu0
  %v3118 = vadd.f32 %v2612, %v3115
  %v3119 = vld [vmem:[%s9] sm:$0x1]
  %v3121 = vlaneseq
  %v3122 = vshrl.u32 %v3121, 7
  %v3123 = vsub.s32 0, %v3122
  %v3124 = vrot.slane %v3119, %v3123
  %v3126 = vadd.f32 %v3118, %v3124
  %v3127 = vld [vmem:[%s7] sm:$0xff]
  %v3128 = vld [vmem:[%s7 + $0x8] sm:$0xff]
  %v3129 = vld [vmem:[%s7 + $0x10] sm:$0xff]
  %v3130 = vld [vmem:[%s7 + $0x18] sm:$0xff]
  %v3131 = vld [vmem:[%s7 + $0x20] sm:$0xff]
  %v3132 = vld [vmem:[%s7 + $0x28] sm:$0xff]
  %v3133 = vld [vmem:[%s7 + $0x30] sm:$0xff]
  %v3134 = vld [vmem:[%s7 + $0x38] sm:$0xff]
  %3135 = vmatprep.subr.mxu0 0.0
  %3136 = vmatpush1.msra.mxu0 0.0
  %3137 = vmatprep.subr.mxu0 0.0
  %3138 = vmatpush1.msra.mxu0 0.0
  %3139 = vmatprep.subr.mxu0 0.0
  %3140 = vmatpush1.msra.mxu0 0.0
  %3141 = vmatprep.subr.mxu0 0.0
  %3142 = vmatpush1.msra.mxu0 0.0
  %3143 = vmatprep.subr.mxu0 0.0
  %3144 = vmatpush1.msra.mxu0 0.0
  %3145 = vmatprep.subr.mxu0 0.0
  %3146 = vmatpush1.msra.mxu0 0.0
  %3147 = vmatprep.subr.mxu0 0.0
  %3148 = vmatpush1.msra.mxu0 0.0
  %3149 = vmatprep.subr.mxu0 0.0
  %3150 = vmatpush1.msra.mxu0 0.0
  %3151 = vmatprep.subr.mxu0 0.0
  %3152 = vmatpush1.msra.mxu0 %v3134
  %3153 = vmatprep.subr.mxu0 0.0
  %3154 = vmatpush1.msra.mxu0 %v3133
  %3155 = vmatprep.subr.mxu0 0.0
  %3156 = vmatpush1.msra.mxu0 %v3132
  %3157 = vmatprep.subr.mxu0 0.0
  %3158 = vmatpush1.msra.mxu0 %v3131
  %3159 = vmatprep.subr.mxu0 0.0
  %3160 = vmatpush1.msra.mxu0 %v3130
  %3161 = vmatprep.subr.mxu0 0.0
  %3162 = vmatpush1.msra.mxu0 %v3129
  %3163 = vmatprep.subr.mxu0 0.0
  %3164 = vmatpush1.msra.mxu0 %v3128
  %3165 = vmatprep.subr.mxu0 0.0
  %3166 = vmatpush1.msra.mxu0 %v3127
  %3167 = vmatprep.subr.mxu0 0.0
  %3168 = vmatpush2.msra.mxu0 0.0
  %3169 = vmatprep.subr.mxu0 0.0
  %3170 = vmatpush2.msra.mxu0 0.0
  %3171 = vmatprep.subr.mxu0 0.0
  %3172 = vmatpush2.msra.mxu0 0.0
  %3173 = vmatprep.subr.mxu0 0.0
  %3174 = vmatpush2.msra.mxu0 0.0
  %3175 = vmatprep.subr.mxu0 0.0
  %3176 = vmatpush2.msra.mxu0 0.0
  %3177 = vmatprep.subr.mxu0 0.0
  %3178 = vmatpush2.msra.mxu0 0.0
  %3179 = vmatprep.subr.mxu0 0.0
  %3180 = vmatpush2.msra.mxu0 0.0
  %3181 = vmatprep.subr.mxu0 0.0
  %3182 = vmatpush2.msra.mxu0 0.0
  %3183 = vmatprep.subr.mxu0 0.0
  %3184 = vmatpush2.msra.mxu0 0.0
  %3185 = vmatprep.subr.mxu0 0.0
  %3186 = vmatpush2.msra.mxu0 0.0
  %3187 = vmatprep.subr.mxu0 0.0
  %3188 = vmatpush2.msra.mxu0 0.0
  %3189 = vmatprep.subr.mxu0 0.0
  %3190 = vmatpush2.msra.mxu0 0.0
  %3191 = vmatprep.subr.mxu0 0.0
  %3192 = vmatpush2.msra.mxu0 0.0
  %3193 = vmatprep.subr.mxu0 0.0
  %3194 = vmatpush2.msra.mxu0 0.0
  %3195 = vmatprep.subr.mxu0 0.0
  %3196 = vmatpush2.msra.mxu0 0.0
  %3197 = vmatprep.subr.mxu0 0.0
  %3198 = vmatpush2.msra.mxu0 0.0
  %3199 = vmatprep.mubr.f32.mxu0 0.0
  %3200 = vmatmul.mubr.f32.gmra.mxu0 %v744
  %v3201 = vpop.f32.mrf.mxu0
  %v3202 = vadd.f32 0.0, %v3201
  %v3203 = vpop.f32.mrf.mxu0
  %3204 = vmatprep.mubr.f32.mxu0 0.0
  %3205 = vmatmul.mubr.f32.gmra.mxu0 %v747
  %v3206 = vpop.f32.mrf.mxu0
  %v3207 = vadd.f32 0.0, %v3206
  %v3208 = vpop.f32.mrf.mxu0
  %3209 = vmatprep.mubr.f32.mxu0 0.0
  %3210 = vmatmul.mubr.f32.gmra.mxu0 %v750
  %v3211 = vpop.f32.mrf.mxu0
  %v3212 = vadd.f32 0.0, %v3211
  %v3213 = vpop.f32.mrf.mxu0
  %3214 = vmatprep.mubr.f32.mxu0 0.0
  %3215 = vmatmul.mubr.f32.gmra.mxu0 %v753
  %v3216 = vpop.f32.mrf.mxu0
  %v3217 = vadd.f32 0.0, %v3216
  %v3218 = vpop.f32.mrf.mxu0
  %3219 = vmatprep.mubr.f32.mxu0 0.0
  %3220 = vmatmul.mubr.f32.gmra.mxu0 %v756
  %v3221 = vpop.f32.mrf.mxu0
  %v3222 = vadd.f32 0.0, %v3221
  %v3223 = vpop.f32.mrf.mxu0
  %3224 = vmatprep.mubr.f32.mxu0 0.0
  %3225 = vmatmul.mubr.f32.gmra.mxu0 %v759
  %v3226 = vpop.f32.mrf.mxu0
  %v3227 = vadd.f32 0.0, %v3226
  %v3228 = vpop.f32.mrf.mxu0
  %3229 = vmatprep.mubr.f32.mxu0 0.0
  %3230 = vmatmul.mubr.f32.gmra.mxu0 %v762
  %v3231 = vpop.f32.mrf.mxu0
  %v3232 = vadd.f32 0.0, %v3231
  %v3233 = vpop.f32.mrf.mxu0
  %3234 = vmatprep.mubr.f32.mxu0 0.0
  %3235 = vmatmul.mubr.f32.gmra.mxu0 %v765
  %v3236 = vpop.f32.mrf.mxu0
  %v3237 = vadd.f32 0.0, %v3236
  %v3238 = vpop.f32.mrf.mxu0
  %3239 = vmatprep.mubr.f32.mxu0 0.0
  %3240 = vmatmul.mubr.f32.gmra.mxu0 %v768
  %v3241 = vpop.f32.mrf.mxu0
  %v3242 = vadd.f32 0.0, %v3241
  %v3243 = vpop.f32.mrf.mxu0
  %3244 = vmatprep.mubr.f32.mxu0 0.0
  %3245 = vmatmul.mubr.f32.gmra.mxu0 %v771
  %v3246 = vpop.f32.mrf.mxu0
  %v3247 = vadd.f32 0.0, %v3246
  %v3248 = vpop.f32.mrf.mxu0
  %3249 = vmatprep.mubr.f32.mxu0 0.0
  %3250 = vmatmul.mubr.f32.gmra.mxu0 %v774
  %v3251 = vpop.f32.mrf.mxu0
  %v3252 = vadd.f32 0.0, %v3251
  %v3253 = vpop.f32.mrf.mxu0
  %3254 = vmatprep.mubr.f32.mxu0 0.0
  %3255 = vmatmul.mubr.f32.gmra.mxu0 %v777
  %v3256 = vpop.f32.mrf.mxu0
  %v3257 = vadd.f32 0.0, %v3256
  %v3258 = vpop.f32.mrf.mxu0
  %3259 = vmatprep.mubr.f32.mxu0 0.0
  %3260 = vmatmul.mubr.f32.gmra.mxu0 %v780
  %v3261 = vpop.f32.mrf.mxu0
  %v3262 = vadd.f32 0.0, %v3261
  %v3263 = vpop.f32.mrf.mxu0
  %3264 = vmatprep.mubr.f32.mxu0 0.0
  %3265 = vmatmul.mubr.f32.gmra.mxu0 %v783
  %v3266 = vpop.f32.mrf.mxu0
  %v3267 = vadd.f32 0.0, %v3266
  %v3268 = vpop.f32.mrf.mxu0
  %3269 = vmatprep.mubr.f32.mxu0 0.0
  %3270 = vmatmul.mubr.f32.gmra.mxu0 %v786
  %v3271 = vpop.f32.mrf.mxu0
  %v3272 = vadd.f32 0.0, %v3271
  %v3273 = vpop.f32.mrf.mxu0
  %3274 = vmatprep.mubr.f32.mxu0 0.0
  %3275 = vmatmul.mubr.f32.gmra.mxu0 %v789
  %v3276 = vpop.f32.mrf.mxu0
  %v3277 = vadd.f32 0.0, %v3276
  %v3278 = vpop.f32.mrf.mxu0
  %3279 = vmatprep.mubr.f32.mxu0 0.0
  %3280 = vmatmul.mubr.f32.gmra.mxu0 %v792
  %v3281 = vpop.f32.mrf.mxu0
  %v3282 = vadd.f32 0.0, %v3281
  %v3283 = vpop.f32.mrf.mxu0
  %3284 = vmatprep.mubr.f32.mxu0 0.0
  %3285 = vmatmul.mubr.f32.gmra.mxu0 %v795
  %v3286 = vpop.f32.mrf.mxu0
  %v3287 = vadd.f32 0.0, %v3286
  %v3288 = vpop.f32.mrf.mxu0
  %3289 = vmatprep.mubr.f32.mxu0 0.0
  %3290 = vmatmul.mubr.f32.gmra.mxu0 %v798
  %v3291 = vpop.f32.mrf.mxu0
  %v3292 = vadd.f32 0.0, %v3291
  %v3293 = vpop.f32.mrf.mxu0
  %3294 = vmatprep.mubr.f32.mxu0 0.0
  %3295 = vmatmul.mubr.f32.gmra.mxu0 %v801
  %v3296 = vpop.f32.mrf.mxu0
  %v3297 = vadd.f32 0.0, %v3296
  %v3298 = vpop.f32.mrf.mxu0
  %3299 = vmatprep.mubr.f32.mxu0 0.0
  %3300 = vmatmul.mubr.f32.gmra.mxu0 %v804
  %v3301 = vpop.f32.mrf.mxu0
  %v3302 = vadd.f32 0.0, %v3301
  %v3303 = vpop.f32.mrf.mxu0
  %3304 = vmatprep.mubr.f32.mxu0 0.0
  %3305 = vmatmul.mubr.f32.gmra.mxu0 %v807
  %v3306 = vpop.f32.mrf.mxu0
  %v3307 = vadd.f32 0.0, %v3306
  %v3308 = vpop.f32.mrf.mxu0
  %3309 = vmatprep.mubr.f32.mxu0 0.0
  %3310 = vmatmul.mubr.f32.gmra.mxu0 %v810
  %v3311 = vpop.f32.mrf.mxu0
  %v3312 = vadd.f32 0.0, %v3311
  %v3313 = vpop.f32.mrf.mxu0
  %3314 = vmatprep.mubr.f32.mxu0 0.0
  %3315 = vmatmul.mubr.f32.gmra.mxu0 %v813
  %v3316 = vpop.f32.mrf.mxu0
  %v3317 = vadd.f32 0.0, %v3316
  %v3318 = vpop.f32.mrf.mxu0
  %3319 = vmatprep.mubr.f32.mxu0 0.0
  %3320 = vmatmul.mubr.f32.gmra.mxu0 %v816
  %v3321 = vpop.f32.mrf.mxu0
  %v3322 = vadd.f32 0.0, %v3321
  %v3323 = vpop.f32.mrf.mxu0
  %3324 = vmatprep.mubr.f32.mxu0 0.0
  %3325 = vmatmul.mubr.f32.gmra.mxu0 %v819
  %v3326 = vpop.f32.mrf.mxu0
  %v3327 = vadd.f32 0.0, %v3326
  %v3328 = vpop.f32.mrf.mxu0
  %3329 = vmatprep.mubr.f32.mxu0 0.0
  %3330 = vmatmul.mubr.f32.gmra.mxu0 %v822
  %v3331 = vpop.f32.mrf.mxu0
  %v3332 = vadd.f32 0.0, %v3331
  %v3333 = vpop.f32.mrf.mxu0
  %3334 = vmatprep.mubr.f32.mxu0 0.0
  %3335 = vmatmul.mubr.f32.gmra.mxu0 %v825
  %v3336 = vpop.f32.mrf.mxu0
  %v3337 = vadd.f32 0.0, %v3336
  %v3338 = vpop.f32.mrf.mxu0
  %3339 = vmatprep.mubr.f32.mxu0 0.0
  %3340 = vmatmul.mubr.f32.gmra.mxu0 %v828
  %v3341 = vpop.f32.mrf.mxu0
  %v3342 = vadd.f32 0.0, %v3341
  %v3343 = vpop.f32.mrf.mxu0
  %3344 = vmatprep.mubr.f32.mxu0 0.0
  %3345 = vmatmul.mubr.f32.gmra.mxu0 %v831
  %v3346 = vpop.f32.mrf.mxu0
  %v3347 = vadd.f32 0.0, %v3346
  %v3348 = vpop.f32.mrf.mxu0
  %3349 = vmatprep.mubr.f32.mxu0 0.0
  %3350 = vmatmul.mubr.f32.gmra.mxu0 %v834
  %v3351 = vpop.f32.mrf.mxu0
  %v3352 = vadd.f32 0.0, %v3351
  %v3353 = vpop.f32.mrf.mxu0
  %3354 = vmatprep.mubr.f32.mxu0 0.0
  %3355 = vmatmul.mubr.f32.gmra.mxu0 %v837
  %v3356 = vpop.f32.mrf.mxu0
  %v3357 = vadd.f32 0.0, %v3356
  %v3358 = vpop.f32.mrf.mxu0
  %3359 = vdwg.mxu0
  %v3362 = vunpack.c.l.s4 1966171168
  %v3363 = vunpack.c.0.s8 %v3362
  %v3364 = vlaneseq
  %v3365 = vshrl.u32 %v3364, 7
  %v3366 = vsub.s32 %v3363, %v3365
  %v3367 = vrot.slane %v3126, %v3366
  %v3368 = vcombine.high %v3367, %v3367
  %v3370 = vunpack.c.l.s4 1966171168
  %v3371 = vunpack.c.0.s8 %v3370
  %v3372 = vlaneseq
  %v3373 = vshrl.u32 %v3372, 7
  %v3374 = vsub.s32 %v3371, %v3373
  %v3375 = vrot.slane %v3367, %v3374
  %v3377 = vunpack.c.l.s4 1966171168
  %v3378 = vunpack.c.0.s8 %v3377
  %v3379 = vlaneseq
  %v3380 = vshrl.u32 %v3379, 7
  %v3381 = vsub.s32 %v3378, %v3380
  %v3382 = vrot.slane %v3368, %v3381
  %v3383 = vlaneseq
  %v3384 = vshrl.u32 %v3383, 7
  %v3385 = vsub.s32 0, %v3384
  %v3386 = vrot.slane %v3375, %v3385
  %v3387 = vlaneseq
  %v3388 = vshrl.u32 %v3387, 7
  %v3389 = vsub.s32 0, %v3388
  %v3390 = vrot.slane %v3382, %v3389
  %v3393 = vadd.f32 %v3202, %v3386
  %v3394 = vadd.f32 %v3207, %v3386
  %v3395 = vadd.f32 %v3212, %v3386
  %v3396 = vadd.f32 %v3217, %v3386
  %v3397 = vadd.f32 %v3222, %v3386
  %v3398 = vadd.f32 %v3227, %v3386
  %v3399 = vadd.f32 %v3232, %v3386
  %v3400 = vadd.f32 %v3237, %v3386
  %v3401 = vadd.f32 %v3242, %v3386
  %v3402 = vadd.f32 %v3247, %v3386
  %v3403 = vadd.f32 %v3252, %v3386
  %v3404 = vadd.f32 %v3257, %v3386
  %v3405 = vadd.f32 %v3262, %v3386
  %v3406 = vadd.f32 %v3267, %v3386
  %v3407 = vadd.f32 %v3272, %v3386
  %v3408 = vadd.f32 %v3277, %v3386
  %v3409 = vadd.f32 %v3282, %v3390
  %v3410 = vadd.f32 %v3287, %v3390
  %v3411 = vadd.f32 %v3292, %v3390
  %v3412 = vadd.f32 %v3297, %v3390
  %v3413 = vadd.f32 %v3302, %v3390
  %v3414 = vadd.f32 %v3307, %v3390
  %v3415 = vadd.f32 %v3312, %v3390
  %v3416 = vadd.f32 %v3317, %v3390
  %v3417 = vadd.f32 %v3322, %v3390
  %v3418 = vadd.f32 %v3327, %v3390
  %v3419 = vadd.f32 %v3332, %v3390
  %v3420 = vadd.f32 %v3337, %v3390
  %v3421 = vadd.f32 %v3342, %v3390
  %v3422 = vadd.f32 %v3347, %v3390
  %v3423 = vadd.f32 %v3352, %v3390
  %v3424 = vadd.f32 %v3357, %v3390
  %vm3425 = vcmask 72704
  %3426 = vst.msk [vmem:[%s10] sm:$0xff] %vm3425, %v3393
  %3427 = vst.msk [vmem:[%s10 + $0x8] sm:$0xff] %vm3425, %v3394
  %3428 = vst.msk [vmem:[%s10 + $0x10] sm:$0xff] %vm3425, %v3395
  %3429 = vst.msk [vmem:[%s10 + $0x18] sm:$0xff] %vm3425, %v3396
  %3430 = vst.msk [vmem:[%s10 + $0x20] sm:$0xff] %vm3425, %v3397
  %3431 = vst.msk [vmem:[%s10 + $0x28] sm:$0xff] %vm3425, %v3398
  %3432 = vst.msk [vmem:[%s10 + $0x30] sm:$0xff] %vm3425, %v3399
  %3433 = vst.msk [vmem:[%s10 + $0x38] sm:$0xff] %vm3425, %v3400
  %3434 = vst.msk [vmem:[%s10 + $0x40] sm:$0xff] %vm3425, %v3401
  %3435 = vst.msk [vmem:[%s10 + $0x48] sm:$0xff] %vm3425, %v3402
  %3436 = vst.msk [vmem:[%s10 + $0x50] sm:$0xff] %vm3425, %v3403
  %3437 = vst.msk [vmem:[%s10 + $0x58] sm:$0xff] %vm3425, %v3404
  %3438 = vst.msk [vmem:[%s10 + $0x60] sm:$0xff] %vm3425, %v3405
  %3439 = vst.msk [vmem:[%s10 + $0x68] sm:$0xff] %vm3425, %v3406
  %3440 = vst.msk [vmem:[%s10 + $0x70] sm:$0xff] %vm3425, %v3407
  %3441 = vst.msk [vmem:[%s10 + $0x78] sm:$0xff] %vm3425, %v3408
  %3442 = vst.msk [vmem:[%s10 + $0x80] sm:$0xff] %vm3425, %v3409
  %3443 = vst.msk [vmem:[%s10 + $0x88] sm:$0xff] %vm3425, %v3410
  %3444 = vst.msk [vmem:[%s10 + $0x90] sm:$0xff] %vm3425, %v3411
  %3445 = vst.msk [vmem:[%s10 + $0x98] sm:$0xff] %vm3425, %v3412
  %3446 = vst.msk [vmem:[%s10 + $0xa0] sm:$0xff] %vm3425, %v3413
  %3447 = vst.msk [vmem:[%s10 + $0xa8] sm:$0xff] %vm3425, %v3414
  %3448 = vst.msk [vmem:[%s10 + $0xb0] sm:$0xff] %vm3425, %v3415
  %3449 = vst.msk [vmem:[%s10 + $0xb8] sm:$0xff] %vm3425, %v3416
  %3450 = vst.msk [vmem:[%s10 + $0xc0] sm:$0xff] %vm3425, %v3417
  %3451 = vst.msk [vmem:[%s10 + $0xc8] sm:$0xff] %vm3425, %v3418
  %3452 = vst.msk [vmem:[%s10 + $0xd0] sm:$0xff] %vm3425, %v3419
  %3453 = vst.msk [vmem:[%s10 + $0xd8] sm:$0xff] %vm3425, %v3420
  %3454 = vst.msk [vmem:[%s10 + $0xe0] sm:$0xff] %vm3425, %v3421
  %3455 = vst.msk [vmem:[%s10 + $0xe8] sm:$0xff] %vm3425, %v3422
  %3456 = vst.msk [vmem:[%s10 + $0xf0] sm:$0xff] %vm3425, %v3423
  %3457 = vst.msk [vmem:[%s10 + $0xf8] sm:$0xff] %vm3425, %v3424
  // Predicated region
  $region42: #{tpu_custom_call.1} parent=0 // pred_check
    _
  $region43: #{tpu_custom_call.1} parent=0 // pred_check_branch
    %3459 = sbr.rel (0) target = $region45
  $region44: #{tpu_custom_call.1} parent=0 // pred_region
    _
  $region45: #{tpu_custom_call.1} parent=0 // pred_fallthru
    _
  // Predicated region
  $region46: #{tpu_custom_call.1} parent=0 // pred_check
    _
  $region47: #{tpu_custom_call.1} parent=0 // pred_check_branch
    %3461 = sbr.rel (0) target = $region49
  $region48: #{tpu_custom_call.1} parent=0 // pred_region
    _
  $region49: #{tpu_custom_call.1} parent=0 // pred_fallthru
    _

</llo_original>
